<compile_context>
chip_gen: v7x
topology: tpu7x:2x2x1
jax: 0.10.0
libtpu: 0.0.40
codegen_flags: <defaults>
</compile_context>

<pallas_src>
import jax
import jax.numpy as jnp
import numpy as np
from jax.experimental import pallas as pl
from jax.experimental.pallas import tpu as pltpu


def _sigmoid(x):
    # tanh-based sigmoid: same math as 1/(1+exp(-x)), runs on the EUP
    # (no f32 VALU divide).
    return 0.5 * (jnp.tanh(0.5 * x) + 1.0)


def _mm(a, w):
    # Activations follow the weight dtype (f32 or bf16); accumulate in f32.
    return jnp.dot(a.astype(w.dtype), w, preferred_element_type=jnp.float32)


def abcgru_encoder_kernel(x_ref,     # (Tb, Bb, N, C)   time-major x slab
                          wx_ref,    # (Tb, C, 2*Hh)    [W_ha1 | W_xh]
                          wsx_ref,   # (Tb, C, 2*Hh)    [W_xr  | W_xz]
                          wh_ref,    # (Tb, 2, Hh, Hh)  [W_ha2 ; W_hh]
                          b_ref,     # (Tb, 5, Hh)      [b_ha2, b_xr, b_xz, b_xh, b_hh]
                          h_ref):    # (Bb, N, Hh)      output / recurrent carry
    ti = pl.program_id(1)            # time-chunk index (inner, "arbitrary")
    Tb, Bb, N, C = x_ref.shape
    Hh = h_ref.shape[-1]
    R = Bb * N                       # flattened matmul row dimension

    # H = zeros at the first time chunk of each batch block.
    @pl.when(ti == 0)
    def _():
        h_ref[...] = jnp.zeros_like(h_ref)

    def step(tl, h):                 # h: (R, Hh) f32 carry
        xc = x_ref[tl]               # (Bb, N, C)
        xf = xc.reshape(R, C)
        w_h2 = wh_ref[tl]            # (2, Hh, Hh)
        bt = b_ref[tl]               # (5, Hh)
        b_ha2, b_xr, b_xz, b_xh, b_hh = (bt[i:i + 1] for i in range(5))

        # ---- graph attention -------------------------------------------
        # [W_ha1(Xc) | W_xh(Xc)] : one (R, C) @ (C, 2*Hh) MXU pass.
        xw = _mm(xf, wx_ref[tl])                         # (R, 2*Hh)
        lhs = xw[:, :Hh]                                 # W_ha1(Xc)
        xh_pre = xw[:, Hh:] + b_xh                       # W_xh(Xc) + b_xh

        rhs = _mm(h, w_h2[0]) + b_ha2                    # W_ha2(H) + b_ha2

        # S = leaky_relu(lhs @ rhs^T), batched over Bb in one einsum.
        s = jnp.einsum("bnh,bmh->bnm",
                       lhs.reshape(Bb, N, Hh), rhs.reshape(Bb, N, Hh),
                       preferred_element_type=jnp.float32)   # (Bb, N, N)
        s = jnp.where(s >= 0.0, s, 0.01 * s)             # leaky_relu(0.01)
        s = s - jnp.max(s, axis=-1, keepdims=True)
        e = jnp.exp(s)
        sn = e * pl.reciprocal(jnp.sum(e, axis=-1, keepdims=True), approx=True)

        sx = jnp.einsum("bnm,bmc->bnc", sn, xc,
                        preferred_element_type=jnp.float32).reshape(R, C)

        # ---- GRU gates ---------------------------------------------------
        # [W_xr(SX) | W_xz(SX)] : one (R, C) @ (C, 2*Hh) MXU pass.
        rz = _mm(sx, wsx_ref[tl])                        # (R, 2*Hh)
        rt = _sigmoid(rz[:, :Hh] + b_xr)
        zt = _sigmoid(rz[:, Hh:] + b_xz)

        h_cand = jnp.tanh(xh_pre + _mm(rt * h, w_h2[1]) + b_hh)
        return zt * h + (1.0 - zt) * h_cand

    h0 = h_ref[...].reshape(R, Hh)
    h_final = jax.lax.fori_loop(0, Tb, step, h0, unroll=True)
    h_ref[...] = h_final.reshape(Bb, N, Hh)


def abcgru_encoder(X, params, *, batch_block=None, time_block=None,
                   weight_dtype=jnp.float32):
    """X: (B, N, T, C) float32. Returns H: (B, N, hidden) float32.

    batch_block: batch elements per grid step (parallel axis).  Default B
      (max row fusion on single-TC chips); use B // 2 on v7x to occupy both
      TensorCores.
    time_block: timesteps per grid step (arbitrary / carry axis).  Default T
      (everything DMA'd once).  For long T / large Hh, pick a divisor of T
      that keeps 2*(weights + x slab) within the scoped VMEM limit
      (raise pltpu.CompilerParams(vmem_limit_bytes=...) if needed; remember
      v7x has 64 MiB physical VMEM vs 128 MiB on v5e/v6e).
    weight_dtype: jnp.bfloat16 halves weight HBM traffic on v6e/v7x; H, gates
      and accumulation stay float32.
    """
    B, N, T, C = X.shape
    Hh = params["W_xr"].shape[-1]
    Bb = B if batch_block is None else batch_block
    Tb = T if time_block is None else time_block
    assert B % Bb == 0 and T % Tb == 0

    x_t = jnp.transpose(X, (2, 0, 1, 3)).astype(jnp.float32)      # (T, B, N, C)

    wd = weight_dtype
    w_x = jnp.concatenate([params["W_ha1"], params["W_xh"]], axis=-1).astype(wd)
    w_sx = jnp.concatenate([params["W_xr"], params["W_xz"]], axis=-1).astype(wd)
    w_h = jnp.stack([params["W_ha2"], params["W_hh"]], axis=1).astype(wd)
    b_all = jnp.stack([params["b_ha2"], params["b_xr"], params["b_xz"],
                       params["b_xh"], params["b_hh"]],
                      axis=1).astype(jnp.float32)                 # (T, 5, Hh)

    grid = (B // Bb, T // Tb)

    x_spec = pl.BlockSpec((Tb, Bb, N, C), lambda bi, ti: (ti, bi, 0, 0))
    wx_spec = pl.BlockSpec((Tb, C, 2 * Hh), lambda bi, ti: (ti, 0, 0))
    wsx_spec = pl.BlockSpec((Tb, C, 2 * Hh), lambda bi, ti: (ti, 0, 0))
    wh_spec = pl.BlockSpec((Tb, 2, Hh, Hh), lambda bi, ti: (ti, 0, 0, 0))
    b_spec = pl.BlockSpec((Tb, 5, Hh), lambda bi, ti: (ti, 0, 0))
    out_spec = pl.BlockSpec((Bb, N, Hh), lambda bi, ti: (bi, 0, 0))  # carry over ti

    return pl.pallas_call(
        abcgru_encoder_kernel,
        out_shape=jax.ShapeDtypeStruct((B, N, Hh), jnp.float32),
        grid_spec=pltpu.PrefetchScalarGridSpec(
            num_scalar_prefetch=0,
            grid=grid,
            in_specs=[x_spec, wx_spec, wsx_spec, wh_spec, b_spec],
            out_specs=out_spec),
        compiler_params=pltpu.CompilerParams(
            dimension_semantics=("parallel", "arbitrary")),
    )(x_t, w_x, w_sx, w_h, b_all)


def abcgru_encoder_reference(X, params):
    """Pure-JAX mirror of the PyTorch forward (for correctness checking)."""
    B, N, T, C = X.shape
    Hh = params["W_xr"].shape[-1]
    H = jnp.zeros((B, N, Hh), jnp.float32)
    for t in range(T):
        Xc = X[:, :, t]                                        # (B, N, C)
        lhs = Xc @ params["W_ha1"][t]                          # (B, N, Hh)
        rhs = H @ params["W_ha2"][t] + params["b_ha2"][t]      # (B, N, Hh)
        S = jnp.where(jnp.einsum("bnh,bmh->bnm", lhs, rhs) >= 0,
                      jnp.einsum("bnh,bmh->bnm", lhs, rhs),
                      0.01 * jnp.einsum("bnh,bmh->bnm", lhs, rhs))
        Sn = jax.nn.softmax(S, axis=-1)
        SX = Sn @ Xc
        Rt = jax.nn.sigmoid(SX @ params["W_xr"][t] + params["b_xr"][t])
        Zt = jax.nn.sigmoid(SX @ params["W_xz"][t] + params["b_xz"][t])
        Hc = jnp.tanh(Xc @ params["W_xh"][t] + params["b_xh"][t]
                      + (Rt * H) @ params["W_hh"][t] + params["b_hh"][t])
        H = Zt * H + (1.0 - Zt) * Hc
    return H


def init_params(key, T, C, Hh):
    """Deterministic synthetic parameters (stored as (in, out); PyTorch Linear
    stores (out, in) but applies x @ W^T, so the math is identical)."""
    ks = jax.random.split(key, 12)
    s = 0.2
    return {
        "W_ha1": s * jax.random.normal(ks[0], (T, C, Hh), jnp.float32),
        "W_ha2": s * jax.random.normal(ks[1], (T, Hh, Hh), jnp.float32),
        "b_ha2": s * jax.random.normal(ks[2], (T, Hh), jnp.float32),
        "W_xr": s * jax.random.normal(ks[3], (T, C, Hh), jnp.float32),
        "b_xr": s * jax.random.normal(ks[4], (T, Hh), jnp.float32),
        "W_xz": s * jax.random.normal(ks[5], (T, C, Hh), jnp.float32),
        "b_xz": s * jax.random.normal(ks[6], (T, Hh), jnp.float32),
        "W_xh": s * jax.random.normal(ks[7], (T, C, Hh), jnp.float32),
        "b_xh": s * jax.random.normal(ks[8], (T, Hh), jnp.float32),
        "W_hh": s * jax.random.normal(ks[9], (T, Hh, Hh), jnp.float32),
        "b_hh": s * jax.random.normal(ks[10], (T, Hh), jnp.float32),
        # W_hr, W_hz, W_y exist in __init__ but never reach the encoder output.
    }


if __name__ == "__main__":
    B, N, T, C, Hh = 2, 8, 4, 4, 32   # batch, nodes, time_length, input_size, hidden_size

    key = jax.random.PRNGKey(0)
    kx, kp = jax.random.split(key)
    X = jax.random.normal(kx, (B, N, T, C), jnp.float32)
    params = init_params(kp, T, C, Hh)

    H_ref = jax.block_until_ready(abcgru_encoder_reference(X, params))

    # Default config: whole batch flattened into the MXU row dim, all T steps
    # in one grid step (grid = (1, 1)); every operand is DMA'd exactly once.
    H1 = jax.block_until_ready(abcgru_encoder(X, params))
    # Tolerance 2e-3: approx reciprocal in the softmax + tanh-based sigmoid.
    np.testing.assert_allclose(np.asarray(H1), np.asarray(H_ref),
                               rtol=2e-3, atol=2e-3)

    # Chunked config: exercises the (parallel batch, arbitrary time) grid and
    # the resident-H carry across time chunks (the shape a v7x 2-TC split uses).
    H2 = jax.block_until_ready(
        abcgru_encoder(X, params, batch_block=1, time_block=2))
    np.testing.assert_allclose(np.asarray(H2), np.asarray(H_ref),
                               rtol=2e-3, atol=2e-3)

    print("KERNEL_OK")
</pallas_src>

<mosaic_0001>
module attributes {stable_mosaic.version = 11 : i64} {
  func.func @abcgru_encoder_kernel(%arg0: i32, %arg1: i32, %arg2: memref<4x2x8x4xf32, #tpu.memory_space<vmem>>, %arg3: memref<4x4x64xf32, #tpu.memory_space<vmem>>, %arg4: memref<4x4x64xf32, #tpu.memory_space<vmem>>, %arg5: memref<4x2x32x32xf32, #tpu.memory_space<vmem>>, %arg6: memref<4x5x32xf32, #tpu.memory_space<vmem>>, %arg7: memref<2x8x32xf32, #tpu.memory_space<vmem>>) attributes {dimension_semantics = [#tpu.dimension_semantics<parallel>, #tpu.dimension_semantics<arbitrary>], iteration_bounds = array<i64: 1, 1>, scalar_prefetch = 0 : i64, scratch_operands = 0 : i64, tpu.core_type = #tpu.core_type<tc>, window_params = [{transform_indices = @transform_0, window_bounds = array<i64: 4, 2, 8, 4>}, {transform_indices = @transform_1, window_bounds = array<i64: 4, 4, 64>}, {transform_indices = @transform_2, window_bounds = array<i64: 4, 4, 64>}, {transform_indices = @transform_3, window_bounds = array<i64: 4, 2, 32, 32>}, {transform_indices = @transform_4, window_bounds = array<i64: 4, 5, 32>}, {transform_indices = @transform_5, window_bounds = array<i64: 2, 8, 32>}]} {
    %c0_i32 = arith.constant 0 : i32
    %0 = arith.cmpi eq, %arg1, %c0_i32 : i32
    %1 = arith.extui %0 : i1 to i32
    %c0_i32_0 = arith.constant 0 : i32
    %2 = arith.cmpi ne, %1, %c0_i32_0 : i32
    scf.if %2 {
      %cst_122 = arith.constant 0.000000e+00 : f32
      %347 = vector.broadcast %cst_122 : f32 to vector<2x8x32xf32>
      %c0_123 = arith.constant 0 : index
      %c0_124 = arith.constant 0 : index
      %c0_125 = arith.constant 0 : index
      %348 = vector.load %arg7[%c0_123, %c0_124, %c0_125] : memref<2x8x32xf32, #tpu.memory_space<vmem>>, vector<2x8x32xf32>
      tpu.vector_store %arg7[%c0_123, %c0_124, %c0_125], %347 {strides = array<i32>} : memref<2x8x32xf32, #tpu.memory_space<vmem>>, vector<2x8x32xf32>,
    } else {
    }
    %c0 = arith.constant 0 : index
    %c0_1 = arith.constant 0 : index
    %c0_2 = arith.constant 0 : index
    %3 = vector.load %arg7[%c0, %c0_1, %c0_2] : memref<2x8x32xf32, #tpu.memory_space<vmem>>, vector<2x8x32xf32>
    %4 = vector.shape_cast %3 : vector<2x8x32xf32> to vector<16x32xf32>
    %c0_i32_3 = arith.constant 0 : i32
    %5 = arith.index_cast %c0_i32_3 : i32 to index
    %c0_4 = arith.constant 0 : index
    %c0_5 = arith.constant 0 : index
    %c0_6 = arith.constant 0 : index
    %6 = vector.load %arg2[%5, %c0_4, %c0_5, %c0_6] : memref<4x2x8x4xf32, #tpu.memory_space<vmem>>, vector<1x2x8x4xf32>
    %7 = vector.shape_cast %6 : vector<1x2x8x4xf32> to vector<2x8x4xf32>
    %8 = vector.shape_cast %7 : vector<2x8x4xf32> to vector<16x4xf32>
    %9 = arith.index_cast %c0_i32_3 : i32 to index
    %c0_7 = arith.constant 0 : index
    %c0_8 = arith.constant 0 : index
    %c0_9 = arith.constant 0 : index
    %10 = vector.load %arg5[%9, %c0_7, %c0_8, %c0_9] : memref<4x2x32x32xf32, #tpu.memory_space<vmem>>, vector<1x2x32x32xf32>
    %11 = vector.shape_cast %10 : vector<1x2x32x32xf32> to vector<2x32x32xf32>
    %12 = arith.index_cast %c0_i32_3 : i32 to index
    %c0_10 = arith.constant 0 : index
    %c0_11 = arith.constant 0 : index
    %13 = vector.load %arg6[%12, %c0_10, %c0_11] : memref<4x5x32xf32, #tpu.memory_space<vmem>>, vector<1x5x32xf32>
    %14 = vector.shape_cast %13 : vector<1x5x32xf32> to vector<5x32xf32>
    %15 = vector.extract_strided_slice %14 {offsets = [0, 0], sizes = [1, 32], strides = [1, 1]} : vector<5x32xf32> to vector<1x32xf32>
    %16 = vector.extract_strided_slice %14 {offsets = [1, 0], sizes = [1, 32], strides = [1, 1]} : vector<5x32xf32> to vector<1x32xf32>
    %17 = vector.extract_strided_slice %14 {offsets = [2, 0], sizes = [1, 32], strides = [1, 1]} : vector<5x32xf32> to vector<1x32xf32>
    %18 = vector.extract_strided_slice %14 {offsets = [3, 0], sizes = [1, 32], strides = [1, 1]} : vector<5x32xf32> to vector<1x32xf32>
    %19 = vector.extract_strided_slice %14 {offsets = [4, 0], sizes = [1, 32], strides = [1, 1]} : vector<5x32xf32> to vector<1x32xf32>
    %20 = arith.index_cast %c0_i32_3 : i32 to index
    %c0_12 = arith.constant 0 : index
    %c0_13 = arith.constant 0 : index
    %21 = vector.load %arg3[%20, %c0_12, %c0_13] : memref<4x4x64xf32, #tpu.memory_space<vmem>>, vector<1x4x64xf32>
    %22 = vector.shape_cast %21 : vector<1x4x64xf32> to vector<4x64xf32>
    %cst = arith.constant dense<0.000000e+00> : vector<16x64xf32>
    %23 = tpu.matmul %8, %22, %cst {dimension_numbers = #tpu.dot_dimension_numbers<[1], [0], [0], [1], [0, 0, 1, 1], [], []>} : vector<16x4xf32>, vector<4x64xf32>, vector<16x64xf32> -> vector<16x64xf32>
    %24 = vector.extract_strided_slice %23 {offsets = [0, 0], sizes = [16, 32], strides = [1, 1]} : vector<16x64xf32> to vector<16x32xf32>
    %25 = vector.extract_strided_slice %23 {offsets = [0, 32], sizes = [16, 32], strides = [1, 1]} : vector<16x64xf32> to vector<16x32xf32>
    %26 = vector.broadcast %18 : vector<1x32xf32> to vector<16x32xf32>
    %27 = arith.addf %25, %26 : vector<16x32xf32>
    %28 = vector.extract_strided_slice %11 {offsets = [0, 0, 0], sizes = [1, 32, 32], strides = [1, 1, 1]} : vector<2x32x32xf32> to vector<1x32x32xf32>
    %29 = vector.shape_cast %28 : vector<1x32x32xf32> to vector<32x32xf32>
    %cst_14 = arith.constant dense<0.000000e+00> : vector<16x32xf32>
    %30 = tpu.matmul %4, %29, %cst_14 {dimension_numbers = #tpu.dot_dimension_numbers<[1], [0], [0], [1], [0, 0, 1, 1], [], []>} : vector<16x32xf32>, vector<32x32xf32>, vector<16x32xf32> -> vector<16x32xf32>
    %31 = vector.broadcast %15 : vector<1x32xf32> to vector<16x32xf32>
    %32 = arith.addf %30, %31 : vector<16x32xf32>
    %33 = vector.shape_cast %24 : vector<16x32xf32> to vector<2x8x32xf32>
    %34 = vector.shape_cast %32 : vector<16x32xf32> to vector<2x8x32xf32>
    "tpu.trace_start"() <{level = 10 : i32, message = "bnh,bmh->bnm"}> : () -> ()
    %cst_15 = arith.constant dense<0.000000e+00> : vector<2x8x8xf32>
    %35 = tpu.matmul %33, %34, %cst_15 {dimension_numbers = #tpu.dot_dimension_numbers<[2], [2], [1], [1], [0, 0, 0, 1, 1, 1], [0], [0]>} : vector<2x8x32xf32>, vector<2x8x32xf32>, vector<2x8x8xf32> -> vector<2x8x8xf32>
    %cst_16 = arith.constant 0.000000e+00 : f32
    "tpu.trace_stop"() : () -> ()
    %36 = vector.broadcast %cst_16 : f32 to vector<2x8x8xf32>
    %37 = arith.cmpf oge, %35, %36 : vector<2x8x8xf32>
    %cst_17 = arith.constant 0.00999999977 : f32
    %38 = vector.broadcast %cst_17 : f32 to vector<2x8x8xf32>
    %39 = arith.mulf %38, %35 : vector<2x8x8xf32>
    %40 = arith.select %37, %35, %39 : vector<2x8x8xi1>, vector<2x8x8xf32>
    %cst_18 = arith.constant dense<0xFF800000> : vector<2x8xf32>
    %41 = vector.multi_reduction <maximumf>, %40, %cst_18 [2] : vector<2x8x8xf32> to vector<2x8xf32>
    %42 = vector.shape_cast %41 : vector<2x8xf32> to vector<2x8x1xf32>
    %43 = vector.broadcast %42 : vector<2x8x1xf32> to vector<2x8x8xf32>
    %44 = arith.subf %40, %43 : vector<2x8x8xf32>
    %45 = math.exp %44 : vector<2x8x8xf32>
    %cst_19 = arith.constant dense<0.000000e+00> : vector<2x8xf32>
    %46 = vector.multi_reduction <add>, %45, %cst_19 [2] : vector<2x8x8xf32> to vector<2x8xf32>
    %47 = vector.shape_cast %46 : vector<2x8xf32> to vector<2x8x1xf32>
    %48 = tpu.reciprocal %47 {approx = true} : vector<2x8x1xf32> -> vector<2x8x1xf32>
    %49 = vector.broadcast %48 : vector<2x8x1xf32> to vector<2x8x8xf32>
    %50 = arith.mulf %45, %49 : vector<2x8x8xf32>
    "tpu.trace_start"() <{level = 10 : i32, message = "bnm,bmc->bnc"}> : () -> ()
    %cst_20 = arith.constant dense<0.000000e+00> : vector<2x8x4xf32>
    %51 = tpu.matmul %50, %7, %cst_20 {dimension_numbers = #tpu.dot_dimension_numbers<[2], [1], [1], [2], [0, 0, 0, 1, 1, 2], [0], [0]>} : vector<2x8x8xf32>, vector<2x8x4xf32>, vector<2x8x4xf32> -> vector<2x8x4xf32>
    "tpu.trace_stop"() : () -> ()
    %52 = vector.shape_cast %51 : vector<2x8x4xf32> to vector<16x4xf32>
    %53 = arith.index_cast %c0_i32_3 : i32 to index
    %c0_21 = arith.constant 0 : index
    %c0_22 = arith.constant 0 : index
    %54 = vector.load %arg4[%53, %c0_21, %c0_22] : memref<4x4x64xf32, #tpu.memory_space<vmem>>, vector<1x4x64xf32>
    %55 = vector.shape_cast %54 : vector<1x4x64xf32> to vector<4x64xf32>
    %cst_23 = arith.constant dense<0.000000e+00> : vector<16x64xf32>
    %56 = tpu.matmul %52, %55, %cst_23 {dimension_numbers = #tpu.dot_dimension_numbers<[1], [0], [0], [1], [0, 0, 1, 1], [], []>} : vector<16x4xf32>, vector<4x64xf32>, vector<16x64xf32> -> vector<16x64xf32>
    %57 = vector.extract_strided_slice %56 {offsets = [0, 0], sizes = [16, 32], strides = [1, 1]} : vector<16x64xf32> to vector<16x32xf32>
    %58 = vector.broadcast %16 : vector<1x32xf32> to vector<16x32xf32>
    %59 = arith.addf %57, %58 : vector<16x32xf32>
    %cst_24 = arith.constant 5.000000e-01 : f32
    %60 = vector.broadcast %cst_24 : f32 to vector<16x32xf32>
    %61 = arith.mulf %60, %59 : vector<16x32xf32>
    %62 = math.tanh %61 : vector<16x32xf32>
    %cst_25 = arith.constant 1.000000e+00 : f32
    %63 = vector.broadcast %cst_25 : f32 to vector<16x32xf32>
    %64 = arith.addf %62, %63 : vector<16x32xf32>
    %cst_26 = arith.constant 5.000000e-01 : f32
    %65 = vector.broadcast %cst_26 : f32 to vector<16x32xf32>
    %66 = arith.mulf %65, %64 : vector<16x32xf32>
    %67 = vector.extract_strided_slice %56 {offsets = [0, 32], sizes = [16, 32], strides = [1, 1]} : vector<16x64xf32> to vector<16x32xf32>
    %68 = vector.broadcast %17 : vector<1x32xf32> to vector<16x32xf32>
    %69 = arith.addf %67, %68 : vector<16x32xf32>
    %cst_27 = arith.constant 5.000000e-01 : f32
    %70 = vector.broadcast %cst_27 : f32 to vector<16x32xf32>
    %71 = arith.mulf %70, %69 : vector<16x32xf32>
    %72 = math.tanh %71 : vector<16x32xf32>
    %cst_28 = arith.constant 1.000000e+00 : f32
    %73 = vector.broadcast %cst_28 : f32 to vector<16x32xf32>
    %74 = arith.addf %72, %73 : vector<16x32xf32>
    %cst_29 = arith.constant 5.000000e-01 : f32
    %75 = vector.broadcast %cst_29 : f32 to vector<16x32xf32>
    %76 = arith.mulf %75, %74 : vector<16x32xf32>
    %77 = arith.mulf %66, %4 : vector<16x32xf32>
    %78 = vector.extract_strided_slice %11 {offsets = [1, 0, 0], sizes = [1, 32, 32], strides = [1, 1, 1]} : vector<2x32x32xf32> to vector<1x32x32xf32>
    %79 = vector.shape_cast %78 : vector<1x32x32xf32> to vector<32x32xf32>
    %cst_30 = arith.constant dense<0.000000e+00> : vector<16x32xf32>
    %80 = tpu.matmul %77, %79, %cst_30 {dimension_numbers = #tpu.dot_dimension_numbers<[1], [0], [0], [1], [0, 0, 1, 1], [], []>} : vector<16x32xf32>, vector<32x32xf32>, vector<16x32xf32> -> vector<16x32xf32>
    %81 = arith.addf %27, %80 : vector<16x32xf32>
    %82 = vector.broadcast %19 : vector<1x32xf32> to vector<16x32xf32>
    %83 = arith.addf %81, %82 : vector<16x32xf32>
    %84 = math.tanh %83 : vector<16x32xf32>
    %85 = arith.mulf %76, %4 : vector<16x32xf32>
    %cst_31 = arith.constant 1.000000e+00 : f32
    %86 = vector.broadcast %cst_31 : f32 to vector<16x32xf32>
    %87 = arith.subf %86, %76 : vector<16x32xf32>
    %88 = arith.mulf %87, %84 : vector<16x32xf32>
    %89 = arith.addf %85, %88 : vector<16x32xf32>
    %c1_i32 = arith.constant 1 : i32
    %90 = arith.index_cast %c1_i32 : i32 to index
    %c0_32 = arith.constant 0 : index
    %c0_33 = arith.constant 0 : index
    %c0_34 = arith.constant 0 : index
    %91 = vector.load %arg2[%90, %c0_32, %c0_33, %c0_34] : memref<4x2x8x4xf32, #tpu.memory_space<vmem>>, vector<1x2x8x4xf32>
    %92 = vector.shape_cast %91 : vector<1x2x8x4xf32> to vector<2x8x4xf32>
    %93 = vector.shape_cast %92 : vector<2x8x4xf32> to vector<16x4xf32>
    %94 = arith.index_cast %c1_i32 : i32 to index
    %c0_35 = arith.constant 0 : index
    %c0_36 = arith.constant 0 : index
    %c0_37 = arith.constant 0 : index
    %95 = vector.load %arg5[%94, %c0_35, %c0_36, %c0_37] : memref<4x2x32x32xf32, #tpu.memory_space<vmem>>, vector<1x2x32x32xf32>
    %96 = vector.shape_cast %95 : vector<1x2x32x32xf32> to vector<2x32x32xf32>
    %97 = arith.index_cast %c1_i32 : i32 to index
    %c0_38 = arith.constant 0 : index
    %c0_39 = arith.constant 0 : index
    %98 = vector.load %arg6[%97, %c0_38, %c0_39] : memref<4x5x32xf32, #tpu.memory_space<vmem>>, vector<1x5x32xf32>
    %99 = vector.shape_cast %98 : vector<1x5x32xf32> to vector<5x32xf32>
    %100 = vector.extract_strided_slice %99 {offsets = [0, 0], sizes = [1, 32], strides = [1, 1]} : vector<5x32xf32> to vector<1x32xf32>
    %101 = vector.extract_strided_slice %99 {offsets = [1, 0], sizes = [1, 32], strides = [1, 1]} : vector<5x32xf32> to vector<1x32xf32>
    %102 = vector.extract_strided_slice %99 {offsets = [2, 0], sizes = [1, 32], strides = [1, 1]} : vector<5x32xf32> to vector<1x32xf32>
    %103 = vector.extract_strided_slice %99 {offsets = [3, 0], sizes = [1, 32], strides = [1, 1]} : vector<5x32xf32> to vector<1x32xf32>
    %104 = vector.extract_strided_slice %99 {offsets = [4, 0], sizes = [1, 32], strides = [1, 1]} : vector<5x32xf32> to vector<1x32xf32>
    %105 = arith.index_cast %c1_i32 : i32 to index
    %c0_40 = arith.constant 0 : index
    %c0_41 = arith.constant 0 : index
    %106 = vector.load %arg3[%105, %c0_40, %c0_41] : memref<4x4x64xf32, #tpu.memory_space<vmem>>, vector<1x4x64xf32>
    %107 = vector.shape_cast %106 : vector<1x4x64xf32> to vector<4x64xf32>
    %cst_42 = arith.constant dense<0.000000e+00> : vector<16x64xf32>
    %108 = tpu.matmul %93, %107, %cst_42 {dimension_numbers = #tpu.dot_dimension_numbers<[1], [0], [0], [1], [0, 0, 1, 1], [], []>} : vector<16x4xf32>, vector<4x64xf32>, vector<16x64xf32> -> vector<16x64xf32>
    %109 = vector.extract_strided_slice %108 {offsets = [0, 0], sizes = [16, 32], strides = [1, 1]} : vector<16x64xf32> to vector<16x32xf32>
    %110 = vector.extract_strided_slice %108 {offsets = [0, 32], sizes = [16, 32], strides = [1, 1]} : vector<16x64xf32> to vector<16x32xf32>
    %111 = vector.broadcast %103 : vector<1x32xf32> to vector<16x32xf32>
    %112 = arith.addf %110, %111 : vector<16x32xf32>
    %113 = vector.extract_strided_slice %96 {offsets = [0, 0, 0], sizes = [1, 32, 32], strides = [1, 1, 1]} : vector<2x32x32xf32> to vector<1x32x32xf32>
    %114 = vector.shape_cast %113 : vector<1x32x32xf32> to vector<32x32xf32>
    %cst_43 = arith.constant dense<0.000000e+00> : vector<16x32xf32>
    %115 = tpu.matmul %89, %114, %cst_43 {dimension_numbers = #tpu.dot_dimension_numbers<[1], [0], [0], [1], [0, 0, 1, 1], [], []>} : vector<16x32xf32>, vector<32x32xf32>, vector<16x32xf32> -> vector<16x32xf32>
    %116 = vector.broadcast %100 : vector<1x32xf32> to vector<16x32xf32>
    %117 = arith.addf %115, %116 : vector<16x32xf32>
    %118 = vector.shape_cast %109 : vector<16x32xf32> to vector<2x8x32xf32>
    %119 = vector.shape_cast %117 : vector<16x32xf32> to vector<2x8x32xf32>
    "tpu.trace_start"() <{level = 10 : i32, message = "bnh,bmh->bnm"}> : () -> ()
    %cst_44 = arith.constant dense<0.000000e+00> : vector<2x8x8xf32>
    %120 = tpu.matmul %118, %119, %cst_44 {dimension_numbers = #tpu.dot_dimension_numbers<[2], [2], [1], [1], [0, 0, 0, 1, 1, 1], [0], [0]>} : vector<2x8x32xf32>, vector<2x8x32xf32>, vector<2x8x8xf32> -> vector<2x8x8xf32>
    %cst_45 = arith.constant 0.000000e+00 : f32
    "tpu.trace_stop"() : () -> ()
    %121 = vector.broadcast %cst_45 : f32 to vector<2x8x8xf32>
    %122 = arith.cmpf oge, %120, %121 : vector<2x8x8xf32>
    %cst_46 = arith.constant 0.00999999977 : f32
    %123 = vector.broadcast %cst_46 : f32 to vector<2x8x8xf32>
    %124 = arith.mulf %123, %120 : vector<2x8x8xf32>
    %125 = arith.select %122, %120, %124 : vector<2x8x8xi1>, vector<2x8x8xf32>
    %cst_47 = arith.constant dense<0xFF800000> : vector<2x8xf32>
    %126 = vector.multi_reduction <maximumf>, %125, %cst_47 [2] : vector<2x8x8xf32> to vector<2x8xf32>
    %127 = vector.shape_cast %126 : vector<2x8xf32> to vector<2x8x1xf32>
    %128 = vector.broadcast %127 : vector<2x8x1xf32> to vector<2x8x8xf32>
    %129 = arith.subf %125, %128 : vector<2x8x8xf32>
    %130 = math.exp %129 : vector<2x8x8xf32>
    %cst_48 = arith.constant dense<0.000000e+00> : vector<2x8xf32>
    %131 = vector.multi_reduction <add>, %130, %cst_48 [2] : vector<2x8x8xf32> to vector<2x8xf32>
    %132 = vector.shape_cast %131 : vector<2x8xf32> to vector<2x8x1xf32>
    %133 = tpu.reciprocal %132 {approx = true} : vector<2x8x1xf32> -> vector<2x8x1xf32>
    %134 = vector.broadcast %133 : vector<2x8x1xf32> to vector<2x8x8xf32>
    %135 = arith.mulf %130, %134 : vector<2x8x8xf32>
    "tpu.trace_start"() <{level = 10 : i32, message = "bnm,bmc->bnc"}> : () -> ()
    %cst_49 = arith.constant dense<0.000000e+00> : vector<2x8x4xf32>
    %136 = tpu.matmul %135, %92, %cst_49 {dimension_numbers = #tpu.dot_dimension_numbers<[2], [1], [1], [2], [0, 0, 0, 1, 1, 2], [0], [0]>} : vector<2x8x8xf32>, vector<2x8x4xf32>, vector<2x8x4xf32> -> vector<2x8x4xf32>
    "tpu.trace_stop"() : () -> ()
    %137 = vector.shape_cast %136 : vector<2x8x4xf32> to vector<16x4xf32>
    %138 = arith.index_cast %c1_i32 : i32 to index
    %c0_50 = arith.constant 0 : index
    %c0_51 = arith.constant 0 : index
    %139 = vector.load %arg4[%138, %c0_50, %c0_51] : memref<4x4x64xf32, #tpu.memory_space<vmem>>, vector<1x4x64xf32>
    %140 = vector.shape_cast %139 : vector<1x4x64xf32> to vector<4x64xf32>
    %cst_52 = arith.constant dense<0.000000e+00> : vector<16x64xf32>
    %141 = tpu.matmul %137, %140, %cst_52 {dimension_numbers = #tpu.dot_dimension_numbers<[1], [0], [0], [1], [0, 0, 1, 1], [], []>} : vector<16x4xf32>, vector<4x64xf32>, vector<16x64xf32> -> vector<16x64xf32>
    %142 = vector.extract_strided_slice %141 {offsets = [0, 0], sizes = [16, 32], strides = [1, 1]} : vector<16x64xf32> to vector<16x32xf32>
    %143 = vector.broadcast %101 : vector<1x32xf32> to vector<16x32xf32>
    %144 = arith.addf %142, %143 : vector<16x32xf32>
    %cst_53 = arith.constant 5.000000e-01 : f32
    %145 = vector.broadcast %cst_53 : f32 to vector<16x32xf32>
    %146 = arith.mulf %145, %144 : vector<16x32xf32>
    %147 = math.tanh %146 : vector<16x32xf32>
    %cst_54 = arith.constant 1.000000e+00 : f32
    %148 = vector.broadcast %cst_54 : f32 to vector<16x32xf32>
    %149 = arith.addf %147, %148 : vector<16x32xf32>
    %cst_55 = arith.constant 5.000000e-01 : f32
    %150 = vector.broadcast %cst_55 : f32 to vector<16x32xf32>
    %151 = arith.mulf %150, %149 : vector<16x32xf32>
    %152 = vector.extract_strided_slice %141 {offsets = [0, 32], sizes = [16, 32], strides = [1, 1]} : vector<16x64xf32> to vector<16x32xf32>
    %153 = vector.broadcast %102 : vector<1x32xf32> to vector<16x32xf32>
    %154 = arith.addf %152, %153 : vector<16x32xf32>
    %cst_56 = arith.constant 5.000000e-01 : f32
    %155 = vector.broadcast %cst_56 : f32 to vector<16x32xf32>
    %156 = arith.mulf %155, %154 : vector<16x32xf32>
    %157 = math.tanh %156 : vector<16x32xf32>
    %cst_57 = arith.constant 1.000000e+00 : f32
    %158 = vector.broadcast %cst_57 : f32 to vector<16x32xf32>
    %159 = arith.addf %157, %158 : vector<16x32xf32>
    %cst_58 = arith.constant 5.000000e-01 : f32
    %160 = vector.broadcast %cst_58 : f32 to vector<16x32xf32>
    %161 = arith.mulf %160, %159 : vector<16x32xf32>
    %162 = arith.mulf %151, %89 : vector<16x32xf32>
    %163 = vector.extract_strided_slice %96 {offsets = [1, 0, 0], sizes = [1, 32, 32], strides = [1, 1, 1]} : vector<2x32x32xf32> to vector<1x32x32xf32>
    %164 = vector.shape_cast %163 : vector<1x32x32xf32> to vector<32x32xf32>
    %cst_59 = arith.constant dense<0.000000e+00> : vector<16x32xf32>
    %165 = tpu.matmul %162, %164, %cst_59 {dimension_numbers = #tpu.dot_dimension_numbers<[1], [0], [0], [1], [0, 0, 1, 1], [], []>} : vector<16x32xf32>, vector<32x32xf32>, vector<16x32xf32> -> vector<16x32xf32>
    %166 = arith.addf %112, %165 : vector<16x32xf32>
    %167 = vector.broadcast %104 : vector<1x32xf32> to vector<16x32xf32>
    %168 = arith.addf %166, %167 : vector<16x32xf32>
    %169 = math.tanh %168 : vector<16x32xf32>
    %170 = arith.mulf %161, %89 : vector<16x32xf32>
    %cst_60 = arith.constant 1.000000e+00 : f32
    %171 = vector.broadcast %cst_60 : f32 to vector<16x32xf32>
    %172 = arith.subf %171, %161 : vector<16x32xf32>
    %173 = arith.mulf %172, %169 : vector<16x32xf32>
    %174 = arith.addf %170, %173 : vector<16x32xf32>
    %c2_i32 = arith.constant 2 : i32
    %175 = arith.index_cast %c2_i32 : i32 to index
    %c0_61 = arith.constant 0 : index
    %c0_62 = arith.constant 0 : index
    %c0_63 = arith.constant 0 : index
    %176 = vector.load %arg2[%175, %c0_61, %c0_62, %c0_63] : memref<4x2x8x4xf32, #tpu.memory_space<vmem>>, vector<1x2x8x4xf32>
    %177 = vector.shape_cast %176 : vector<1x2x8x4xf32> to vector<2x8x4xf32>
    %178 = vector.shape_cast %177 : vector<2x8x4xf32> to vector<16x4xf32>
    %179 = arith.index_cast %c2_i32 : i32 to index
    %c0_64 = arith.constant 0 : index
    %c0_65 = arith.constant 0 : index
    %c0_66 = arith.constant 0 : index
    %180 = vector.load %arg5[%179, %c0_64, %c0_65, %c0_66] : memref<4x2x32x32xf32, #tpu.memory_space<vmem>>, vector<1x2x32x32xf32>
    %181 = vector.shape_cast %180 : vector<1x2x32x32xf32> to vector<2x32x32xf32>
    %182 = arith.index_cast %c2_i32 : i32 to index
    %c0_67 = arith.constant 0 : index
    %c0_68 = arith.constant 0 : index
    %183 = vector.load %arg6[%182, %c0_67, %c0_68] : memref<4x5x32xf32, #tpu.memory_space<vmem>>, vector<1x5x32xf32>
    %184 = vector.shape_cast %183 : vector<1x5x32xf32> to vector<5x32xf32>
    %185 = vector.extract_strided_slice %184 {offsets = [0, 0], sizes = [1, 32], strides = [1, 1]} : vector<5x32xf32> to vector<1x32xf32>
    %186 = vector.extract_strided_slice %184 {offsets = [1, 0], sizes = [1, 32], strides = [1, 1]} : vector<5x32xf32> to vector<1x32xf32>
    %187 = vector.extract_strided_slice %184 {offsets = [2, 0], sizes = [1, 32], strides = [1, 1]} : vector<5x32xf32> to vector<1x32xf32>
    %188 = vector.extract_strided_slice %184 {offsets = [3, 0], sizes = [1, 32], strides = [1, 1]} : vector<5x32xf32> to vector<1x32xf32>
    %189 = vector.extract_strided_slice %184 {offsets = [4, 0], sizes = [1, 32], strides = [1, 1]} : vector<5x32xf32> to vector<1x32xf32>
    %190 = arith.index_cast %c2_i32 : i32 to index
    %c0_69 = arith.constant 0 : index
    %c0_70 = arith.constant 0 : index
    %191 = vector.load %arg3[%190, %c0_69, %c0_70] : memref<4x4x64xf32, #tpu.memory_space<vmem>>, vector<1x4x64xf32>
    %192 = vector.shape_cast %191 : vector<1x4x64xf32> to vector<4x64xf32>
    %cst_71 = arith.constant dense<0.000000e+00> : vector<16x64xf32>
    %193 = tpu.matmul %178, %192, %cst_71 {dimension_numbers = #tpu.dot_dimension_numbers<[1], [0], [0], [1], [0, 0, 1, 1], [], []>} : vector<16x4xf32>, vector<4x64xf32>, vector<16x64xf32> -> vector<16x64xf32>
    %194 = vector.extract_strided_slice %193 {offsets = [0, 0], sizes = [16, 32], strides = [1, 1]} : vector<16x64xf32> to vector<16x32xf32>
    %195 = vector.extract_strided_slice %193 {offsets = [0, 32], sizes = [16, 32], strides = [1, 1]} : vector<16x64xf32> to vector<16x32xf32>
    %196 = vector.broadcast %188 : vector<1x32xf32> to vector<16x32xf32>
    %197 = arith.addf %195, %196 : vector<16x32xf32>
    %198 = vector.extract_strided_slice %181 {offsets = [0, 0, 0], sizes = [1, 32, 32], strides = [1, 1, 1]} : vector<2x32x32xf32> to vector<1x32x32xf32>
    %199 = vector.shape_cast %198 : vector<1x32x32xf32> to vector<32x32xf32>
    %cst_72 = arith.constant dense<0.000000e+00> : vector<16x32xf32>
    %200 = tpu.matmul %174, %199, %cst_72 {dimension_numbers = #tpu.dot_dimension_numbers<[1], [0], [0], [1], [0, 0, 1, 1], [], []>} : vector<16x32xf32>, vector<32x32xf32>, vector<16x32xf32> -> vector<16x32xf32>
    %201 = vector.broadcast %185 : vector<1x32xf32> to vector<16x32xf32>
    %202 = arith.addf %200, %201 : vector<16x32xf32>
    %203 = vector.shape_cast %194 : vector<16x32xf32> to vector<2x8x32xf32>
    %204 = vector.shape_cast %202 : vector<16x32xf32> to vector<2x8x32xf32>
    "tpu.trace_start"() <{level = 10 : i32, message = "bnh,bmh->bnm"}> : () -> ()
    %cst_73 = arith.constant dense<0.000000e+00> : vector<2x8x8xf32>
    %205 = tpu.matmul %203, %204, %cst_73 {dimension_numbers = #tpu.dot_dimension_numbers<[2], [2], [1], [1], [0, 0, 0, 1, 1, 1], [0], [0]>} : vector<2x8x32xf32>, vector<2x8x32xf32>, vector<2x8x8xf32> -> vector<2x8x8xf32>
    %cst_74 = arith.constant 0.000000e+00 : f32
    "tpu.trace_stop"() : () -> ()
    %206 = vector.broadcast %cst_74 : f32 to vector<2x8x8xf32>
    %207 = arith.cmpf oge, %205, %206 : vector<2x8x8xf32>
    %cst_75 = arith.constant 0.00999999977 : f32
    %208 = vector.broadcast %cst_75 : f32 to vector<2x8x8xf32>
    %209 = arith.mulf %208, %205 : vector<2x8x8xf32>
    %210 = arith.select %207, %205, %209 : vector<2x8x8xi1>, vector<2x8x8xf32>
    %cst_76 = arith.constant dense<0xFF800000> : vector<2x8xf32>
    %211 = vector.multi_reduction <maximumf>, %210, %cst_76 [2] : vector<2x8x8xf32> to vector<2x8xf32>
    %212 = vector.shape_cast %211 : vector<2x8xf32> to vector<2x8x1xf32>
    %213 = vector.broadcast %212 : vector<2x8x1xf32> to vector<2x8x8xf32>
    %214 = arith.subf %210, %213 : vector<2x8x8xf32>
    %215 = math.exp %214 : vector<2x8x8xf32>
    %cst_77 = arith.constant dense<0.000000e+00> : vector<2x8xf32>
    %216 = vector.multi_reduction <add>, %215, %cst_77 [2] : vector<2x8x8xf32> to vector<2x8xf32>
    %217 = vector.shape_cast %216 : vector<2x8xf32> to vector<2x8x1xf32>
    %218 = tpu.reciprocal %217 {approx = true} : vector<2x8x1xf32> -> vector<2x8x1xf32>
    %219 = vector.broadcast %218 : vector<2x8x1xf32> to vector<2x8x8xf32>
    %220 = arith.mulf %215, %219 : vector<2x8x8xf32>
    "tpu.trace_start"() <{level = 10 : i32, message = "bnm,bmc->bnc"}> : () -> ()
    %cst_78 = arith.constant dense<0.000000e+00> : vector<2x8x4xf32>
    %221 = tpu.matmul %220, %177, %cst_78 {dimension_numbers = #tpu.dot_dimension_numbers<[2], [1], [1], [2], [0, 0, 0, 1, 1, 2], [0], [0]>} : vector<2x8x8xf32>, vector<2x8x4xf32>, vector<2x8x4xf32> -> vector<2x8x4xf32>
    "tpu.trace_stop"() : () -> ()
    %222 = vector.shape_cast %221 : vector<2x8x4xf32> to vector<16x4xf32>
    %223 = arith.index_cast %c2_i32 : i32 to index
    %c0_79 = arith.constant 0 : index
    %c0_80 = arith.constant 0 : index
    %224 = vector.load %arg4[%223, %c0_79, %c0_80] : memref<4x4x64xf32, #tpu.memory_space<vmem>>, vector<1x4x64xf32>
    %225 = vector.shape_cast %224 : vector<1x4x64xf32> to vector<4x64xf32>
    %cst_81 = arith.constant dense<0.000000e+00> : vector<16x64xf32>
    %226 = tpu.matmul %222, %225, %cst_81 {dimension_numbers = #tpu.dot_dimension_numbers<[1], [0], [0], [1], [0, 0, 1, 1], [], []>} : vector<16x4xf32>, vector<4x64xf32>, vector<16x64xf32> -> vector<16x64xf32>
    %227 = vector.extract_strided_slice %226 {offsets = [0, 0], sizes = [16, 32], strides = [1, 1]} : vector<16x64xf32> to vector<16x32xf32>
    %228 = vector.broadcast %186 : vector<1x32xf32> to vector<16x32xf32>
    %229 = arith.addf %227, %228 : vector<16x32xf32>
    %cst_82 = arith.constant 5.000000e-01 : f32
    %230 = vector.broadcast %cst_82 : f32 to vector<16x32xf32>
    %231 = arith.mulf %230, %229 : vector<16x32xf32>
    %232 = math.tanh %231 : vector<16x32xf32>
    %cst_83 = arith.constant 1.000000e+00 : f32
    %233 = vector.broadcast %cst_83 : f32 to vector<16x32xf32>
    %234 = arith.addf %232, %233 : vector<16x32xf32>
    %cst_84 = arith.constant 5.000000e-01 : f32
    %235 = vector.broadcast %cst_84 : f32 to vector<16x32xf32>
    %236 = arith.mulf %235, %234 : vector<16x32xf32>
    %237 = vector.extract_strided_slice %226 {offsets = [0, 32], sizes = [16, 32], strides = [1, 1]} : vector<16x64xf32> to vector<16x32xf32>
    %238 = vector.broadcast %187 : vector<1x32xf32> to vector<16x32xf32>
    %239 = arith.addf %237, %238 : vector<16x32xf32>
    %cst_85 = arith.constant 5.000000e-01 : f32
    %240 = vector.broadcast %cst_85 : f32 to vector<16x32xf32>
    %241 = arith.mulf %240, %239 : vector<16x32xf32>
    %242 = math.tanh %241 : vector<16x32xf32>
    %cst_86 = arith.constant 1.000000e+00 : f32
    %243 = vector.broadcast %cst_86 : f32 to vector<16x32xf32>
    %244 = arith.addf %242, %243 : vector<16x32xf32>
    %cst_87 = arith.constant 5.000000e-01 : f32
    %245 = vector.broadcast %cst_87 : f32 to vector<16x32xf32>
    %246 = arith.mulf %245, %244 : vector<16x32xf32>
    %247 = arith.mulf %236, %174 : vector<16x32xf32>
    %248 = vector.extract_strided_slice %181 {offsets = [1, 0, 0], sizes = [1, 32, 32], strides = [1, 1, 1]} : vector<2x32x32xf32> to vector<1x32x32xf32>
    %249 = vector.shape_cast %248 : vector<1x32x32xf32> to vector<32x32xf32>
    %cst_88 = arith.constant dense<0.000000e+00> : vector<16x32xf32>
    %250 = tpu.matmul %247, %249, %cst_88 {dimension_numbers = #tpu.dot_dimension_numbers<[1], [0], [0], [1], [0, 0, 1, 1], [], []>} : vector<16x32xf32>, vector<32x32xf32>, vector<16x32xf32> -> vector<16x32xf32>
    %251 = arith.addf %197, %250 : vector<16x32xf32>
    %252 = vector.broadcast %189 : vector<1x32xf32> to vector<16x32xf32>
    %253 = arith.addf %251, %252 : vector<16x32xf32>
    %254 = math.tanh %253 : vector<16x32xf32>
    %255 = arith.mulf %246, %174 : vector<16x32xf32>
    %cst_89 = arith.constant 1.000000e+00 : f32
    %256 = vector.broadcast %cst_89 : f32 to vector<16x32xf32>
    %257 = arith.subf %256, %246 : vector<16x32xf32>
    %258 = arith.mulf %257, %254 : vector<16x32xf32>
    %259 = arith.addf %255, %258 : vector<16x32xf32>
    %c3_i32 = arith.constant 3 : i32
    %260 = arith.index_cast %c3_i32 : i32 to index
    %c0_90 = arith.constant 0 : index
    %c0_91 = arith.constant 0 : index
    %c0_92 = arith.constant 0 : index
    %261 = vector.load %arg2[%260, %c0_90, %c0_91, %c0_92] : memref<4x2x8x4xf32, #tpu.memory_space<vmem>>, vector<1x2x8x4xf32>
    %262 = vector.shape_cast %261 : vector<1x2x8x4xf32> to vector<2x8x4xf32>
    %263 = vector.shape_cast %262 : vector<2x8x4xf32> to vector<16x4xf32>
    %264 = arith.index_cast %c3_i32 : i32 to index
    %c0_93 = arith.constant 0 : index
    %c0_94 = arith.constant 0 : index
    %c0_95 = arith.constant 0 : index
    %265 = vector.load %arg5[%264, %c0_93, %c0_94, %c0_95] : memref<4x2x32x32xf32, #tpu.memory_space<vmem>>, vector<1x2x32x32xf32>
    %266 = vector.shape_cast %265 : vector<1x2x32x32xf32> to vector<2x32x32xf32>
    %267 = arith.index_cast %c3_i32 : i32 to index
    %c0_96 = arith.constant 0 : index
    %c0_97 = arith.constant 0 : index
    %268 = vector.load %arg6[%267, %c0_96, %c0_97] : memref<4x5x32xf32, #tpu.memory_space<vmem>>, vector<1x5x32xf32>
    %269 = vector.shape_cast %268 : vector<1x5x32xf32> to vector<5x32xf32>
    %270 = vector.extract_strided_slice %269 {offsets = [0, 0], sizes = [1, 32], strides = [1, 1]} : vector<5x32xf32> to vector<1x32xf32>
    %271 = vector.extract_strided_slice %269 {offsets = [1, 0], sizes = [1, 32], strides = [1, 1]} : vector<5x32xf32> to vector<1x32xf32>
    %272 = vector.extract_strided_slice %269 {offsets = [2, 0], sizes = [1, 32], strides = [1, 1]} : vector<5x32xf32> to vector<1x32xf32>
    %273 = vector.extract_strided_slice %269 {offsets = [3, 0], sizes = [1, 32], strides = [1, 1]} : vector<5x32xf32> to vector<1x32xf32>
    %274 = vector.extract_strided_slice %269 {offsets = [4, 0], sizes = [1, 32], strides = [1, 1]} : vector<5x32xf32> to vector<1x32xf32>
    %275 = arith.index_cast %c3_i32 : i32 to index
    %c0_98 = arith.constant 0 : index
    %c0_99 = arith.constant 0 : index
    %276 = vector.load %arg3[%275, %c0_98, %c0_99] : memref<4x4x64xf32, #tpu.memory_space<vmem>>, vector<1x4x64xf32>
    %277 = vector.shape_cast %276 : vector<1x4x64xf32> to vector<4x64xf32>
    %cst_100 = arith.constant dense<0.000000e+00> : vector<16x64xf32>
    %278 = tpu.matmul %263, %277, %cst_100 {dimension_numbers = #tpu.dot_dimension_numbers<[1], [0], [0], [1], [0, 0, 1, 1], [], []>} : vector<16x4xf32>, vector<4x64xf32>, vector<16x64xf32> -> vector<16x64xf32>
    %279 = vector.extract_strided_slice %278 {offsets = [0, 0], sizes = [16, 32], strides = [1, 1]} : vector<16x64xf32> to vector<16x32xf32>
    %280 = vector.extract_strided_slice %278 {offsets = [0, 32], sizes = [16, 32], strides = [1, 1]} : vector<16x64xf32> to vector<16x32xf32>
    %281 = vector.broadcast %273 : vector<1x32xf32> to vector<16x32xf32>
    %282 = arith.addf %280, %281 : vector<16x32xf32>
    %283 = vector.extract_strided_slice %266 {offsets = [0, 0, 0], sizes = [1, 32, 32], strides = [1, 1, 1]} : vector<2x32x32xf32> to vector<1x32x32xf32>
    %284 = vector.shape_cast %283 : vector<1x32x32xf32> to vector<32x32xf32>
    %cst_101 = arith.constant dense<0.000000e+00> : vector<16x32xf32>
    %285 = tpu.matmul %259, %284, %cst_101 {dimension_numbers = #tpu.dot_dimension_numbers<[1], [0], [0], [1], [0, 0, 1, 1], [], []>} : vector<16x32xf32>, vector<32x32xf32>, vector<16x32xf32> -> vector<16x32xf32>
    %286 = vector.broadcast %270 : vector<1x32xf32> to vector<16x32xf32>
    %287 = arith.addf %285, %286 : vector<16x32xf32>
    %288 = vector.shape_cast %279 : vector<16x32xf32> to vector<2x8x32xf32>
    %289 = vector.shape_cast %287 : vector<16x32xf32> to vector<2x8x32xf32>
    "tpu.trace_start"() <{level = 10 : i32, message = "bnh,bmh->bnm"}> : () -> ()
    %cst_102 = arith.constant dense<0.000000e+00> : vector<2x8x8xf32>
    %290 = tpu.matmul %288, %289, %cst_102 {dimension_numbers = #tpu.dot_dimension_numbers<[2], [2], [1], [1], [0, 0, 0, 1, 1, 1], [0], [0]>} : vector<2x8x32xf32>, vector<2x8x32xf32>, vector<2x8x8xf32> -> vector<2x8x8xf32>
    %cst_103 = arith.constant 0.000000e+00 : f32
    "tpu.trace_stop"() : () -> ()
    %291 = vector.broadcast %cst_103 : f32 to vector<2x8x8xf32>
    %292 = arith.cmpf oge, %290, %291 : vector<2x8x8xf32>
    %cst_104 = arith.constant 0.00999999977 : f32
    %293 = vector.broadcast %cst_104 : f32 to vector<2x8x8xf32>
    %294 = arith.mulf %293, %290 : vector<2x8x8xf32>
    %295 = arith.select %292, %290, %294 : vector<2x8x8xi1>, vector<2x8x8xf32>
    %cst_105 = arith.constant dense<0xFF800000> : vector<2x8xf32>
    %296 = vector.multi_reduction <maximumf>, %295, %cst_105 [2] : vector<2x8x8xf32> to vector<2x8xf32>
    %297 = vector.shape_cast %296 : vector<2x8xf32> to vector<2x8x1xf32>
    %298 = vector.broadcast %297 : vector<2x8x1xf32> to vector<2x8x8xf32>
    %299 = arith.subf %295, %298 : vector<2x8x8xf32>
    %300 = math.exp %299 : vector<2x8x8xf32>
    %cst_106 = arith.constant dense<0.000000e+00> : vector<2x8xf32>
    %301 = vector.multi_reduction <add>, %300, %cst_106 [2] : vector<2x8x8xf32> to vector<2x8xf32>
    %302 = vector.shape_cast %301 : vector<2x8xf32> to vector<2x8x1xf32>
    %303 = tpu.reciprocal %302 {approx = true} : vector<2x8x1xf32> -> vector<2x8x1xf32>
    %304 = vector.broadcast %303 : vector<2x8x1xf32> to vector<2x8x8xf32>
    %305 = arith.mulf %300, %304 : vector<2x8x8xf32>
    "tpu.trace_start"() <{level = 10 : i32, message = "bnm,bmc->bnc"}> : () -> ()
    %cst_107 = arith.constant dense<0.000000e+00> : vector<2x8x4xf32>
    %306 = tpu.matmul %305, %262, %cst_107 {dimension_numbers = #tpu.dot_dimension_numbers<[2], [1], [1], [2], [0, 0, 0, 1, 1, 2], [0], [0]>} : vector<2x8x8xf32>, vector<2x8x4xf32>, vector<2x8x4xf32> -> vector<2x8x4xf32>
    "tpu.trace_stop"() : () -> ()
    %307 = vector.shape_cast %306 : vector<2x8x4xf32> to vector<16x4xf32>
    %308 = arith.index_cast %c3_i32 : i32 to index
    %c0_108 = arith.constant 0 : index
    %c0_109 = arith.constant 0 : index
    %309 = vector.load %arg4[%308, %c0_108, %c0_109] : memref<4x4x64xf32, #tpu.memory_space<vmem>>, vector<1x4x64xf32>
    %310 = vector.shape_cast %309 : vector<1x4x64xf32> to vector<4x64xf32>
    %cst_110 = arith.constant dense<0.000000e+00> : vector<16x64xf32>
    %311 = tpu.matmul %307, %310, %cst_110 {dimension_numbers = #tpu.dot_dimension_numbers<[1], [0], [0], [1], [0, 0, 1, 1], [], []>} : vector<16x4xf32>, vector<4x64xf32>, vector<16x64xf32> -> vector<16x64xf32>
    %312 = vector.extract_strided_slice %311 {offsets = [0, 0], sizes = [16, 32], strides = [1, 1]} : vector<16x64xf32> to vector<16x32xf32>
    %313 = vector.broadcast %271 : vector<1x32xf32> to vector<16x32xf32>
    %314 = arith.addf %312, %313 : vector<16x32xf32>
    %cst_111 = arith.constant 5.000000e-01 : f32
    %315 = vector.broadcast %cst_111 : f32 to vector<16x32xf32>
    %316 = arith.mulf %315, %314 : vector<16x32xf32>
    %317 = math.tanh %316 : vector<16x32xf32>
    %cst_112 = arith.constant 1.000000e+00 : f32
    %318 = vector.broadcast %cst_112 : f32 to vector<16x32xf32>
    %319 = arith.addf %317, %318 : vector<16x32xf32>
    %cst_113 = arith.constant 5.000000e-01 : f32
    %320 = vector.broadcast %cst_113 : f32 to vector<16x32xf32>
    %321 = arith.mulf %320, %319 : vector<16x32xf32>
    %322 = vector.extract_strided_slice %311 {offsets = [0, 32], sizes = [16, 32], strides = [1, 1]} : vector<16x64xf32> to vector<16x32xf32>
    %323 = vector.broadcast %272 : vector<1x32xf32> to vector<16x32xf32>
    %324 = arith.addf %322, %323 : vector<16x32xf32>
    %cst_114 = arith.constant 5.000000e-01 : f32
    %325 = vector.broadcast %cst_114 : f32 to vector<16x32xf32>
    %326 = arith.mulf %325, %324 : vector<16x32xf32>
    %327 = math.tanh %326 : vector<16x32xf32>
    %cst_115 = arith.constant 1.000000e+00 : f32
    %328 = vector.broadcast %cst_115 : f32 to vector<16x32xf32>
    %329 = arith.addf %327, %328 : vector<16x32xf32>
    %cst_116 = arith.constant 5.000000e-01 : f32
    %330 = vector.broadcast %cst_116 : f32 to vector<16x32xf32>
    %331 = arith.mulf %330, %329 : vector<16x32xf32>
    %332 = arith.mulf %321, %259 : vector<16x32xf32>
    %333 = vector.extract_strided_slice %266 {offsets = [1, 0, 0], sizes = [1, 32, 32], strides = [1, 1, 1]} : vector<2x32x32xf32> to vector<1x32x32xf32>
    %334 = vector.shape_cast %333 : vector<1x32x32xf32> to vector<32x32xf32>
    %cst_117 = arith.constant dense<0.000000e+00> : vector<16x32xf32>
    %335 = tpu.matmul %332, %334, %cst_117 {dimension_numbers = #tpu.dot_dimension_numbers<[1], [0], [0], [1], [0, 0, 1, 1], [], []>} : vector<16x32xf32>, vector<32x32xf32>, vector<16x32xf32> -> vector<16x32xf32>
    %336 = arith.addf %282, %335 : vector<16x32xf32>
    %337 = vector.broadcast %274 : vector<1x32xf32> to vector<16x32xf32>
    %338 = arith.addf %336, %337 : vector<16x32xf32>
    %339 = math.tanh %338 : vector<16x32xf32>
    %340 = arith.mulf %331, %259 : vector<16x32xf32>
    %cst_118 = arith.constant 1.000000e+00 : f32
    %341 = vector.broadcast %cst_118 : f32 to vector<16x32xf32>
    %342 = arith.subf %341, %331 : vector<16x32xf32>
    %343 = arith.mulf %342, %339 : vector<16x32xf32>
    %344 = arith.addf %340, %343 : vector<16x32xf32>
    %c4_i32 = arith.constant 4 : i32
    %345 = vector.shape_cast %344 : vector<16x32xf32> to vector<2x8x32xf32>
    %c0_119 = arith.constant 0 : index
    %c0_120 = arith.constant 0 : index
    %c0_121 = arith.constant 0 : index
    %346 = vector.load %arg7[%c0_119, %c0_120, %c0_121] : memref<2x8x32xf32, #tpu.memory_space<vmem>>, vector<2x8x32xf32>
    tpu.vector_store %arg7[%c0_119, %c0_120, %c0_121], %345 {strides = array<i32>} : memref<2x8x32xf32, #tpu.memory_space<vmem>>, vector<2x8x32xf32>,
    return
  }
  func.func @transform_0(%arg0: i32, %arg1: i32) -> (i32, i32, i32, i32) {
    %c0_i32 = arith.constant 0 : i32
    %c0_i32_0 = arith.constant 0 : i32
    %c0_i32_1 = arith.constant 0 : i32
    return %arg1, %arg0, %c0_i32, %c0_i32_0 : i32, i32, i32, i32
  }
  func.func @transform_1(%arg0: i32, %arg1: i32) -> (i32, i32, i32) {
    %c0_i32 = arith.constant 0 : i32
    %c0_i32_0 = arith.constant 0 : i32
    %c0_i32_1 = arith.constant 0 : i32
    return %arg1, %c0_i32, %c0_i32_0 : i32, i32, i32
  }
  func.func @transform_2(%arg0: i32, %arg1: i32) -> (i32, i32, i32) {
    %c0_i32 = arith.constant 0 : i32
    %c0_i32_0 = arith.constant 0 : i32
    %c0_i32_1 = arith.constant 0 : i32
    return %arg1, %c0_i32, %c0_i32_0 : i32, i32, i32
  }
  func.func @transform_3(%arg0: i32, %arg1: i32) -> (i32, i32, i32, i32) {
    %c0_i32 = arith.constant 0 : i32
    %c0_i32_0 = arith.constant 0 : i32
    %c0_i32_1 = arith.constant 0 : i32
    %c0_i32_2 = arith.constant 0 : i32
    return %arg1, %c0_i32, %c0_i32_0, %c0_i32_1 : i32, i32, i32, i32
  }
  func.func @transform_4(%arg0: i32, %arg1: i32) -> (i32, i32, i32) {
    %c0_i32 = arith.constant 0 : i32
    %c0_i32_0 = arith.constant 0 : i32
    %c0_i32_1 = arith.constant 0 : i32
    return %arg1, %c0_i32, %c0_i32_0 : i32, i32, i32
  }
  func.func @transform_5(%arg0: i32, %arg1: i32) -> (i32, i32, i32) {
    %c0_i32 = arith.constant 0 : i32
    %c0_i32_0 = arith.constant 0 : i32
    %c0_i32_1 = arith.constant 0 : i32
    return %arg0, %c0_i32, %c0_i32_0 : i32, i32, i32
  }
}

</mosaic_0001>

<llo_original>
// kernel: tpu_custom_call.1
$region0: #{tpu_custom_call.1}
  #allocation0 [shape = 'u32[]', space=smem, size = 0x4, offset = 0x4, fixed_abs, tag = 'smem constant byte address 0x4 - core index']
  #allocation1 [shape = 'u32[144,128]{1,0:T(1,128)}', space=vmem, size = 0x12000, scoped, tag = 'internal scratch']
  %s0 = inlined_call_operand.vmem [shape: f32[4,2,8,4], index: 0, kind: input, shape index: {}]
  %s1 = inlined_call_operand.vmem [shape: f32[4,4,64], index: 1, kind: input, shape index: {}]
  %s2 = inlined_call_operand.vmem [shape: f32[4,4,64], index: 2, kind: input, shape index: {}]
  %s3 = inlined_call_operand.hbm [shape: f32[4,2,32,32], index: 3, kind: input, shape index: {}]
  %s4 = inlined_call_operand.vmem [shape: f32[4,5,32], index: 4, kind: input, shape index: {}]
  %s5 = inlined_call_operand.hbm [shape: f32[2,8,32], index: 5, kind: output, shape index: {}]
  %s6 = sld [smem:[#allocation0]]
  $region38: #{tpu_custom_call.1} parent=0
    _
  %s8 = ssub.s32 1, %s6
  %s9 = scalar_select 0, %s8, %s6
  $region1: #{tpu_custom_call.1} parent=0
    #allocation2 [shape = 'u8[131072]{0}', space=vmem, size = 0x20000, scoped, tag = 'input window, operand 3, single buffered']
    #allocation3 [shape = 's32[1]{0}', space=sflag, size = 0x4, scoped, tag = 'scoped memory for tpu_custom_call.1']
    #allocation4 [shape = 's32[1]{0}', space=sflag, size = 0x4, scoped, tag = 'scoped memory for tpu_custom_call.1']
    #allocation5 [shape = 'u8[8192]{0}', space=vmem, size = 0x2000, scoped, tag = 'output window, operand 0, single buffered']
    %10 = vsyncpa [#allocation3], 0
    %11 = vsyncpa [#allocation4], 0
    // Predicated region
    $region2: #{tpu_custom_call.1} parent=1 // pred_check
      _
    $region3: #{tpu_custom_call.1} parent=1 // pred_check_branch
      %13 = sbr.rel (0) target = $region5
    $region4: #{tpu_custom_call.1} parent=1 // pred_region
      _
    $region5: #{tpu_custom_call.1} parent=1 // pred_fallthru
      _
    // Predicated region
    $region6: #{tpu_custom_call.1} parent=1 // pred_check
      _
    $region7: #{tpu_custom_call.1} parent=1 // pred_check_branch
      %15 = sbr.rel (0) target = $region9
    $region8: #{tpu_custom_call.1} parent=1 // pred_region
      _
    $region9: #{tpu_custom_call.1} parent=1 // pred_fallthru
      _
    // Predicated region
    $region10: #{tpu_custom_call.1} parent=1 // pred_check
      _
    $region11: #{tpu_custom_call.1} parent=1 // pred_check_branch
      %17 = sbr.rel (0) target = $region13
    $region12: #{tpu_custom_call.1} parent=1 // pred_region
      _
    $region13: #{tpu_custom_call.1} parent=1 // pred_fallthru
      _
    // Predicated region
    $region14: #{tpu_custom_call.1} parent=1 // pred_check
      _
    $region15: #{tpu_custom_call.1} parent=1 // pred_check_branch
      %19 = sbr.rel (0) target = $region17
    $region16: #{tpu_custom_call.1} parent=1 // pred_region
      %s21 = ssub.s32 4096, 4096
      %22 = vsyncadd [#allocation3], %s21
      %s23 = sshll.u32 [#allocation2], 4
      %s24 = int_to_ptr.vmem [resolvable:$true] %s23
      %29 = dma.hbm_to_vmem [thread:$0]  %s3, 4096, %s24, [#allocation3], 128, 128, 8
    $region17: #{tpu_custom_call.1} parent=1 // pred_fallthru
      _
    // Predicated region
    $region18: #{tpu_custom_call.1} parent=1 // pred_check
      _
    $region19: #{tpu_custom_call.1} parent=1 // pred_check_branch
      %31 = sbr.rel (0) target = $region21
    $region20: #{tpu_custom_call.1} parent=1 // pred_region
      _
    $region21: #{tpu_custom_call.1} parent=1 // pred_fallthru
      _
    // Predicated region
    $region22: #{tpu_custom_call.1} parent=1 // pred_check
      _
    $region23: #{tpu_custom_call.1} parent=1 // pred_check_branch
      %33 = sbr.rel (0) target = $region25
    $region24: #{tpu_custom_call.1} parent=1 // pred_region
      %34 = dma.done [#allocation3], 4096
    $region25: #{tpu_custom_call.1} parent=1 // pred_fallthru
      _
    %p35 = scmp.eq.s32.totalorder 0, 0
    // Predicated region
    $region26: #{tpu_custom_call.1} parent=1 // pred_check
      %p36 = pneg %p35
    $region27: #{tpu_custom_call.1} parent=1 // pred_check_branch
      %38 = sbr.rel (%p36) target = $region29
    $region28: #{tpu_custom_call.1} parent=1 // pred_region
      %vm39 = vcmask 261120
      %40 = vst.msk [vmem:[#allocation5] sm:$0xff] %vm39, 0.0
      %41 = vst.msk [vmem:[#allocation5 + $0x8] sm:$0xff] %vm39, 0.0
    $region29: #{tpu_custom_call.1} parent=1 // pred_fallthru
      _
    %v42 = vld [vmem:[#allocation5] sm:$0xff]
    %v43 = vld [vmem:[#allocation5 + $0x8] sm:$0xff]
    %v44 = vld [vmem:[%s0] sm:$0xff]
    %v45 = vld [vmem:[%s0 + $0x8] sm:$0xff]
    %v46 = vld [vmem:[#allocation2] sm:$0xff]
    %v47 = vld [vmem:[#allocation2 + $0x8] sm:$0xff]
    %v48 = vld [vmem:[#allocation2 + $0x10] sm:$0xff]
    %v49 = vld [vmem:[#allocation2 + $0x18] sm:$0xff]
    %v50 = vld [vmem:[#allocation2 + $0x20] sm:$0xff]
    %v51 = vld [vmem:[#allocation2 + $0x28] sm:$0xff]
    %v52 = vld [vmem:[#allocation2 + $0x30] sm:$0xff]
    %v53 = vld [vmem:[#allocation2 + $0x38] sm:$0xff]
    %v54 = vld [vmem:[%s4] sm:$0x1f]
    %v55 = vld [vmem:[%s1] sm:$0xf]
    %vm56 = vcmask 31744
    %v58 = vsel %vm56, %v44, 0
    %v61 = vsel %vm56, %v45, 0
    %vm63 = vcmask 1043456
    %v65 = vsel %vm63, %v55, 0
    %67 = vmatprep.subr.mxu0 0.0
    %68 = vmatpush1.msra.mxu0 %v65
    %69 = vmatprep.subr.mxu0 0.0
    %70 = vmatpush1.msra.mxu0 0.0
    %71 = vmatprep.subr.mxu0 0.0
    %72 = vmatpush1.msra.mxu0 0.0
    %73 = vmatprep.subr.mxu0 0.0
    %74 = vmatpush1.msra.mxu0 0.0
    %75 = vmatprep.subr.mxu0 0.0
    %76 = vmatpush1.msra.mxu0 0.0
    %77 = vmatprep.subr.mxu0 0.0
    %78 = vmatpush1.msra.mxu0 0.0
    %79 = vmatprep.subr.mxu0 0.0
    %80 = vmatpush1.msra.mxu0 0.0
    %81 = vmatprep.subr.mxu0 0.0
    %82 = vmatpush1.msra.mxu0 0.0
    %83 = vmatprep.subr.mxu0 0.0
    %84 = vmatpush1.msra.mxu0 0.0
    %85 = vmatprep.subr.mxu0 0.0
    %86 = vmatpush1.msra.mxu0 0.0
    %87 = vmatprep.subr.mxu0 0.0
    %88 = vmatpush1.msra.mxu0 0.0
    %89 = vmatprep.subr.mxu0 0.0
    %90 = vmatpush1.msra.mxu0 0.0
    %91 = vmatprep.subr.mxu0 0.0
    %92 = vmatpush1.msra.mxu0 0.0
    %93 = vmatprep.subr.mxu0 0.0
    %94 = vmatpush1.msra.mxu0 0.0
    %95 = vmatprep.subr.mxu0 0.0
    %96 = vmatpush1.msra.mxu0 0.0
    %97 = vmatprep.subr.mxu0 0.0
    %98 = vmatpush1.msra.mxu0 0.0
    %99 = vmatprep.subr.mxu0 0.0
    %100 = vmatpush1.msra.mxu0 0.0
    %101 = vmatprep.subr.mxu0 0.0
    %102 = vmatpush1.msra.mxu0 0.0
    %103 = vmatprep.subr.mxu0 0.0
    %104 = vmatpush1.msra.mxu0 0.0
    %105 = vmatprep.subr.mxu0 0.0
    %106 = vmatpush1.msra.mxu0 0.0
    %107 = vmatprep.subr.mxu0 0.0
    %108 = vmatpush1.msra.mxu0 0.0
    %109 = vmatprep.subr.mxu0 0.0
    %110 = vmatpush1.msra.mxu0 0.0
    %111 = vmatprep.subr.mxu0 0.0
    %112 = vmatpush1.msra.mxu0 0.0
    %113 = vmatprep.subr.mxu0 0.0
    %114 = vmatpush1.msra.mxu0 0.0
    %115 = vmatprep.subr.mxu0 0.0
    %116 = vmatpush1.msra.mxu0 0.0
    %117 = vmatprep.subr.mxu0 0.0
    %118 = vmatpush1.msra.mxu0 0.0
    %119 = vmatprep.subr.mxu0 0.0
    %120 = vmatpush1.msra.mxu0 0.0
    %121 = vmatprep.subr.mxu0 0.0
    %122 = vmatpush1.msra.mxu0 0.0
    %123 = vmatprep.subr.mxu0 0.0
    %124 = vmatpush1.msra.mxu0 0.0
    %125 = vmatprep.subr.mxu0 0.0
    %126 = vmatpush1.msra.mxu0 0.0
    %127 = vmatprep.subr.mxu0 0.0
    %128 = vmatpush1.msra.mxu0 0.0
    %129 = vmatprep.subr.mxu0 0.0
    %130 = vmatpush1.msra.mxu0 0.0
    %131 = vmatprep.mubr.f32.mxu0 0.0
    %132 = vmatmul.mubr.f32.gmra.mrb[0].mxu0 %v58
    %v133 = vpop.f32.mrb[0].mxu0
    %v134 = vadd.f32 0.0, %v133
    %v135 = vpop.f32.mrb[0].mxu0
    %136 = vmatprep.mubr.f32.mxu0 0.0
    %137 = vmatmul.mubr.f32.gmra.mrb[0].mxu0 %v61
    %v138 = vpop.f32.mrb[0].mxu0
    %v139 = vadd.f32 0.0, %v138
    %v140 = vpop.f32.mrb[0].mxu0
    %141 = vdwg.mxu0
    %v142 = vlaneseq
    %v143 = vshrl.u32 %v142, 7
    %v144 = vsub.s32 3, %v143
    %v145 = vrot.slane %v54, %v144
    %147 = vrot.lane.b32.xlu0 %v145, 32
    %v148 = vpop.permute.xlu0 %147
    %v150 = vadd.f32 %v134, %v148
    %v151 = vadd.f32 %v139, %v148
    %v152 = vlaneseq
    %v153 = vshrl.u32 %v152, 7
    %v154 = vsub.s32 0, %v153
    %v155 = vrot.slane %v54, %v154
    %vm156 = vcmask 261120
    %v158 = vsel %vm156, %v42, 0
    %v161 = vsel %vm156, %v43, 0
    %163 = vmatprep.subr.mxu0 0.0
    %164 = vmatpush1.msra.mxu0 %v46
    %165 = vmatprep.subr.mxu0 0.0
    %166 = vmatpush1.msra.mxu0 %v47
    %167 = vmatprep.subr.mxu0 0.0
    %168 = vmatpush1.msra.mxu0 %v48
    %169 = vmatprep.subr.mxu0 0.0
    %170 = vmatpush1.msra.mxu0 %v49
    %171 = vmatprep.subr.mxu0 0.0
    %172 = vmatpush1.msra.mxu0 0.0
    %173 = vmatprep.subr.mxu0 0.0
    %174 = vmatpush1.msra.mxu0 0.0
    %175 = vmatprep.subr.mxu0 0.0
    %176 = vmatpush1.msra.mxu0 0.0
    %177 = vmatprep.subr.mxu0 0.0
    %178 = vmatpush1.msra.mxu0 0.0
    %179 = vmatprep.subr.mxu0 0.0
    %180 = vmatpush1.msra.mxu0 0.0
    %181 = vmatprep.subr.mxu0 0.0
    %182 = vmatpush1.msra.mxu0 0.0
    %183 = vmatprep.subr.mxu0 0.0
    %184 = vmatpush1.msra.mxu0 0.0
    %185 = vmatprep.subr.mxu0 0.0
    %186 = vmatpush1.msra.mxu0 0.0
    %187 = vmatprep.subr.mxu0 0.0
    %188 = vmatpush1.msra.mxu0 0.0
    %189 = vmatprep.subr.mxu0 0.0
    %190 = vmatpush1.msra.mxu0 0.0
    %191 = vmatprep.subr.mxu0 0.0
    %192 = vmatpush1.msra.mxu0 0.0
    %193 = vmatprep.subr.mxu0 0.0
    %194 = vmatpush1.msra.mxu0 0.0
    %195 = vmatprep.subr.mxu0 0.0
    %196 = vmatpush1.msra.mxu0 0.0
    %197 = vmatprep.subr.mxu0 0.0
    %198 = vmatpush1.msra.mxu0 0.0
    %199 = vmatprep.subr.mxu0 0.0
    %200 = vmatpush1.msra.mxu0 0.0
    %201 = vmatprep.subr.mxu0 0.0
    %202 = vmatpush1.msra.mxu0 0.0
    %203 = vmatprep.subr.mxu0 0.0
    %204 = vmatpush1.msra.mxu0 0.0
    %205 = vmatprep.subr.mxu0 0.0
    %206 = vmatpush1.msra.mxu0 0.0
    %207 = vmatprep.subr.mxu0 0.0
    %208 = vmatpush1.msra.mxu0 0.0
    %209 = vmatprep.subr.mxu0 0.0
    %210 = vmatpush1.msra.mxu0 0.0
    %211 = vmatprep.subr.mxu0 0.0
    %212 = vmatpush1.msra.mxu0 0.0
    %213 = vmatprep.subr.mxu0 0.0
    %214 = vmatpush1.msra.mxu0 0.0
    %215 = vmatprep.subr.mxu0 0.0
    %216 = vmatpush1.msra.mxu0 0.0
    %217 = vmatprep.subr.mxu0 0.0
    %218 = vmatpush1.msra.mxu0 0.0
    %219 = vmatprep.subr.mxu0 0.0
    %220 = vmatpush1.msra.mxu0 0.0
    %221 = vmatprep.subr.mxu0 0.0
    %222 = vmatpush1.msra.mxu0 0.0
    %223 = vmatprep.subr.mxu0 0.0
    %224 = vmatpush1.msra.mxu0 0.0
    %225 = vmatprep.subr.mxu0 0.0
    %226 = vmatpush1.msra.mxu0 0.0
    %227 = vmatprep.mubr.f32.mxu0 0.0
    %228 = vmatmul.mubr.f32.gmra.mrb[0].mxu0 %v158
    %v229 = vpop.f32.mrb[0].mxu0
    %v230 = vadd.f32 %v155, %v229
    %v231 = vpop.f32.mrb[0].mxu0
    %232 = vmatprep.mubr.f32.mxu0 0.0
    %233 = vmatmul.mubr.f32.gmra.mrb[0].mxu0 %v161
    %v234 = vpop.f32.mrb[0].mxu0
    %v235 = vadd.f32 %v155, %v234
    %v236 = vpop.f32.mrb[0].mxu0
    %237 = vdwg.mxu0
    %v239 = vsel %vm156, %v134, 0
    %v242 = vsel %vm156, %v230, 0
    %244 = vmatprep.subr.mxu0 0.0
    %245 = vmatpush1.xpose.msra.mxu0 %v242
    %246 = vmatprep.subr.mxu0 0.0
    %247 = vmatpush1.xpose.msra.mxu0 0.0
    %248 = vmatprep.subr.mxu0 0.0
    %249 = vmatpush1.xpose.msra.mxu0 0.0
    %250 = vmatprep.subr.mxu0 0.0
    %251 = vmatpush1.xpose.msra.mxu0 0.0
    %252 = vmatprep.subr.mxu0 0.0
    %253 = vmatpush1.xpose.msra.mxu0 0.0
    %254 = vmatprep.subr.mxu0 0.0
    %255 = vmatpush1.xpose.msra.mxu0 0.0
    %256 = vmatprep.subr.mxu0 0.0
    %257 = vmatpush1.xpose.msra.mxu0 0.0
    %258 = vmatprep.subr.mxu0 0.0
    %259 = vmatpush1.xpose.msra.mxu0 0.0
    %260 = vmatprep.subr.mxu0 0.0
    %261 = vmatpush1.xpose.msra.mxu0 0.0
    %262 = vmatprep.subr.mxu0 0.0
    %263 = vmatpush1.xpose.msra.mxu0 0.0
    %264 = vmatprep.subr.mxu0 0.0
    %265 = vmatpush1.xpose.msra.mxu0 0.0
    %266 = vmatprep.subr.mxu0 0.0
    %267 = vmatpush1.xpose.msra.mxu0 0.0
    %268 = vmatprep.subr.mxu0 0.0
    %269 = vmatpush1.xpose.msra.mxu0 0.0
    %270 = vmatprep.subr.mxu0 0.0
    %271 = vmatpush1.xpose.msra.mxu0 0.0
    %272 = vmatprep.subr.mxu0 0.0
    %273 = vmatpush1.xpose.msra.mxu0 0.0
    %274 = vmatprep.subr.mxu0 0.0
    %275 = vmatpush1.xpose.msra.mxu0 0.0
    %276 = vmatprep.subr.mxu0 0.0
    %277 = vmatpush1.xpose.msra.mxu0 0.0
    %278 = vmatprep.subr.mxu0 0.0
    %279 = vmatpush1.xpose.msra.mxu0 0.0
    %280 = vmatprep.subr.mxu0 0.0
    %281 = vmatpush1.xpose.msra.mxu0 0.0
    %282 = vmatprep.subr.mxu0 0.0
    %283 = vmatpush1.xpose.msra.mxu0 0.0
    %284 = vmatprep.subr.mxu0 0.0
    %285 = vmatpush1.xpose.msra.mxu0 0.0
    %286 = vmatprep.subr.mxu0 0.0
    %287 = vmatpush1.xpose.msra.mxu0 0.0
    %288 = vmatprep.subr.mxu0 0.0
    %289 = vmatpush1.xpose.msra.mxu0 0.0
    %290 = vmatprep.subr.mxu0 0.0
    %291 = vmatpush1.xpose.msra.mxu0 0.0
    %292 = vmatprep.subr.mxu0 0.0
    %293 = vmatpush1.xpose.msra.mxu0 0.0
    %294 = vmatprep.subr.mxu0 0.0
    %295 = vmatpush1.xpose.msra.mxu0 0.0
    %296 = vmatprep.subr.mxu0 0.0
    %297 = vmatpush1.xpose.msra.mxu0 0.0
    %298 = vmatprep.subr.mxu0 0.0
    %299 = vmatpush1.xpose.msra.mxu0 0.0
    %300 = vmatprep.subr.mxu0 0.0
    %301 = vmatpush1.xpose.msra.mxu0 0.0
    %302 = vmatprep.subr.mxu0 0.0
    %303 = vmatpush1.xpose.msra.mxu0 0.0
    %304 = vmatprep.subr.mxu0 0.0
    %305 = vmatpush1.xpose.msra.mxu0 0.0
    %306 = vmatprep.subr.mxu0 0.0
    %307 = vmatpush1.xpose.msra.mxu0 0.0
    %308 = vmatprep.mubr.f32.mxu0 0.0
    %309 = vmatmul.mubr.f32.gmra.mrb[0].mxu0 %v239
    %v310 = vpop.f32.mrb[0].mxu0
    %v311 = vadd.f32 0.0, %v310
    %v312 = vpop.f32.mrb[0].mxu0
    %313 = vdwg.mxu0
    %v315 = vsel %vm156, %v139, 0
    %v318 = vsel %vm156, %v235, 0
    %320 = vmatprep.subr.mxu0 0.0
    %321 = vmatpush1.xpose.msra.mxu0 %v318
    %322 = vmatprep.subr.mxu0 0.0
    %323 = vmatpush1.xpose.msra.mxu0 0.0
    %324 = vmatprep.subr.mxu0 0.0
    %325 = vmatpush1.xpose.msra.mxu0 0.0
    %326 = vmatprep.subr.mxu0 0.0
    %327 = vmatpush1.xpose.msra.mxu0 0.0
    %328 = vmatprep.subr.mxu0 0.0
    %329 = vmatpush1.xpose.msra.mxu0 0.0
    %330 = vmatprep.subr.mxu0 0.0
    %331 = vmatpush1.xpose.msra.mxu0 0.0
    %332 = vmatprep.subr.mxu0 0.0
    %333 = vmatpush1.xpose.msra.mxu0 0.0
    %334 = vmatprep.subr.mxu0 0.0
    %335 = vmatpush1.xpose.msra.mxu0 0.0
    %336 = vmatprep.subr.mxu0 0.0
    %337 = vmatpush1.xpose.msra.mxu0 0.0
    %338 = vmatprep.subr.mxu0 0.0
    %339 = vmatpush1.xpose.msra.mxu0 0.0
    %340 = vmatprep.subr.mxu0 0.0
    %341 = vmatpush1.xpose.msra.mxu0 0.0
    %342 = vmatprep.subr.mxu0 0.0
    %343 = vmatpush1.xpose.msra.mxu0 0.0
    %344 = vmatprep.subr.mxu0 0.0
    %345 = vmatpush1.xpose.msra.mxu0 0.0
    %346 = vmatprep.subr.mxu0 0.0
    %347 = vmatpush1.xpose.msra.mxu0 0.0
    %348 = vmatprep.subr.mxu0 0.0
    %349 = vmatpush1.xpose.msra.mxu0 0.0
    %350 = vmatprep.subr.mxu0 0.0
    %351 = vmatpush1.xpose.msra.mxu0 0.0
    %352 = vmatprep.subr.mxu0 0.0
    %353 = vmatpush1.xpose.msra.mxu0 0.0
    %354 = vmatprep.subr.mxu0 0.0
    %355 = vmatpush1.xpose.msra.mxu0 0.0
    %356 = vmatprep.subr.mxu0 0.0
    %357 = vmatpush1.xpose.msra.mxu0 0.0
    %358 = vmatprep.subr.mxu0 0.0
    %359 = vmatpush1.xpose.msra.mxu0 0.0
    %360 = vmatprep.subr.mxu0 0.0
    %361 = vmatpush1.xpose.msra.mxu0 0.0
    %362 = vmatprep.subr.mxu0 0.0
    %363 = vmatpush1.xpose.msra.mxu0 0.0
    %364 = vmatprep.subr.mxu0 0.0
    %365 = vmatpush1.xpose.msra.mxu0 0.0
    %366 = vmatprep.subr.mxu0 0.0
    %367 = vmatpush1.xpose.msra.mxu0 0.0
    %368 = vmatprep.subr.mxu0 0.0
    %369 = vmatpush1.xpose.msra.mxu0 0.0
    %370 = vmatprep.subr.mxu0 0.0
    %371 = vmatpush1.xpose.msra.mxu0 0.0
    %372 = vmatprep.subr.mxu0 0.0
    %373 = vmatpush1.xpose.msra.mxu0 0.0
    %374 = vmatprep.subr.mxu0 0.0
    %375 = vmatpush1.xpose.msra.mxu0 0.0
    %376 = vmatprep.subr.mxu0 0.0
    %377 = vmatpush1.xpose.msra.mxu0 0.0
    %378 = vmatprep.subr.mxu0 0.0
    %379 = vmatpush1.xpose.msra.mxu0 0.0
    %380 = vmatprep.subr.mxu0 0.0
    %381 = vmatpush1.xpose.msra.mxu0 0.0
    %382 = vmatprep.subr.mxu0 0.0
    %383 = vmatpush1.xpose.msra.mxu0 0.0
    %384 = vmatprep.mubr.f32.mxu0 0.0
    %385 = vmatmul.mubr.f32.gmra.mrb[0].mxu0 %v315
    %v386 = vpop.f32.mrb[0].mxu0
    %v387 = vadd.f32 0.0, %v386
    %v388 = vpop.f32.mrb[0].mxu0
    %389 = vdwg.mxu0
    %vm390 = vcmp.ge.f32.partialorder %v311, 0.0
    %vm391 = vcmp.ge.f32.partialorder %v387, 0.0
    %v392 = vmul.f32 %v311, 0.01
    %v393 = vmul.f32 %v387, 0.01
    %v394 = vsel %vm390, %v311, %v392
    %v395 = vsel %vm391, %v387, %v393
    %vm396 = vcmask 64512
    %v397 = vsel %vm396, %v394, -inf
    %398 = vmax.xlane.f32.xlu0 %v397
    %v399 = vpop.xlane.xlu0 %398
    %v400 = vsel %vm396, %v395, -inf
    %401 = vmax.xlane.f32.xlu0 %v400
    %v402 = vpop.xlane.xlu0 %401
    %v403 = vsub.f32 %v394, %v399
    %v404 = vsub.f32 %v395, %v402
    %v405 = vmul.f32 %v403, 1.442695
    %v406 = vpow.pop %v405
    %v407 = vmul.f32 %v404, 1.442695
    %v408 = vpow.pop %v407
    %v409 = vsel %vm396, %v406, 0.0
    %410 = vadd.xlane.f32.xlu0 %v409
    %v411 = vpop.xlane.xlu0 %410
    %v412 = vsel %vm396, %v408, 0.0
    %413 = vadd.xlane.f32.xlu0 %v412
    %v414 = vpop.xlane.xlu0 %413
    %v415 = vrcp.pop %v411
    %v416 = vrcp.pop %v414
    %v417 = vmul.f32 %v406, %v415
    %v418 = vmul.f32 %v408, %v416
    %v420 = vsel %vm396, %v417, 0
    %422 = vmatprep.subr.mxu0 0.0
    %423 = vmatpush1.msra.mxu0 %v44
    %424 = vmatprep.subr.mxu0 0.0
    %425 = vmatpush1.msra.mxu0 0.0
    %426 = vmatprep.subr.mxu0 0.0
    %427 = vmatpush1.msra.mxu0 0.0
    %428 = vmatprep.subr.mxu0 0.0
    %429 = vmatpush1.msra.mxu0 0.0
    %430 = vmatprep.subr.mxu0 0.0
    %431 = vmatpush1.msra.mxu0 0.0
    %432 = vmatprep.subr.mxu0 0.0
    %433 = vmatpush1.msra.mxu0 0.0
    %434 = vmatprep.subr.mxu0 0.0
    %435 = vmatpush1.msra.mxu0 0.0
    %436 = vmatprep.subr.mxu0 0.0
    %437 = vmatpush1.msra.mxu0 0.0
    %438 = vmatprep.subr.mxu0 0.0
    %439 = vmatpush1.msra.mxu0 0.0
    %440 = vmatprep.subr.mxu0 0.0
    %441 = vmatpush1.msra.mxu0 0.0
    %442 = vmatprep.subr.mxu0 0.0
    %443 = vmatpush1.msra.mxu0 0.0
    %444 = vmatprep.subr.mxu0 0.0
    %445 = vmatpush1.msra.mxu0 0.0
    %446 = vmatprep.subr.mxu0 0.0
    %447 = vmatpush1.msra.mxu0 0.0
    %448 = vmatprep.subr.mxu0 0.0
    %449 = vmatpush1.msra.mxu0 0.0
    %450 = vmatprep.subr.mxu0 0.0
    %451 = vmatpush1.msra.mxu0 0.0
    %452 = vmatprep.subr.mxu0 0.0
    %453 = vmatpush1.msra.mxu0 0.0
    %454 = vmatprep.subr.mxu0 0.0
    %455 = vmatpush1.msra.mxu0 0.0
    %456 = vmatprep.subr.mxu0 0.0
    %457 = vmatpush1.msra.mxu0 0.0
    %458 = vmatprep.subr.mxu0 0.0
    %459 = vmatpush1.msra.mxu0 0.0
    %460 = vmatprep.subr.mxu0 0.0
    %461 = vmatpush1.msra.mxu0 0.0
    %462 = vmatprep.subr.mxu0 0.0
    %463 = vmatpush1.msra.mxu0 0.0
    %464 = vmatprep.subr.mxu0 0.0
    %465 = vmatpush1.msra.mxu0 0.0
    %466 = vmatprep.subr.mxu0 0.0
    %467 = vmatpush1.msra.mxu0 0.0
    %468 = vmatprep.subr.mxu0 0.0
    %469 = vmatpush1.msra.mxu0 0.0
    %470 = vmatprep.subr.mxu0 0.0
    %471 = vmatpush1.msra.mxu0 0.0
    %472 = vmatprep.subr.mxu0 0.0
    %473 = vmatpush1.msra.mxu0 0.0
    %474 = vmatprep.subr.mxu0 0.0
    %475 = vmatpush1.msra.mxu0 0.0
    %476 = vmatprep.subr.mxu0 0.0
    %477 = vmatpush1.msra.mxu0 0.0
    %478 = vmatprep.subr.mxu0 0.0
    %479 = vmatpush1.msra.mxu0 0.0
    %480 = vmatprep.subr.mxu0 0.0
    %481 = vmatpush1.msra.mxu0 0.0
    %482 = vmatprep.subr.mxu0 0.0
    %483 = vmatpush1.msra.mxu0 0.0
    %484 = vmatprep.subr.mxu0 0.0
    %485 = vmatpush1.msra.mxu0 0.0
    %486 = vmatprep.mubr.f32.mxu0 0.0
    %487 = vmatmul.mubr.f32.gmra.mrb[0].mxu0 %v420
    %v488 = vpop.f32.mrb[0].mxu0
    %v489 = vadd.f32 0.0, %v488
    %v490 = vpop.f32.mrb[0].mxu0
    %491 = vdwg.mxu0
    %v493 = vsel %vm396, %v418, 0
    %495 = vmatprep.subr.mxu0 0.0
    %496 = vmatpush1.msra.mxu0 %v45
    %497 = vmatprep.subr.mxu0 0.0
    %498 = vmatpush1.msra.mxu0 0.0
    %499 = vmatprep.subr.mxu0 0.0
    %500 = vmatpush1.msra.mxu0 0.0
    %501 = vmatprep.subr.mxu0 0.0
    %502 = vmatpush1.msra.mxu0 0.0
    %503 = vmatprep.subr.mxu0 0.0
    %504 = vmatpush1.msra.mxu0 0.0
    %505 = vmatprep.subr.mxu0 0.0
    %506 = vmatpush1.msra.mxu0 0.0
    %507 = vmatprep.subr.mxu0 0.0
    %508 = vmatpush1.msra.mxu0 0.0
    %509 = vmatprep.subr.mxu0 0.0
    %510 = vmatpush1.msra.mxu0 0.0
    %511 = vmatprep.subr.mxu0 0.0
    %512 = vmatpush1.msra.mxu0 0.0
    %513 = vmatprep.subr.mxu0 0.0
    %514 = vmatpush1.msra.mxu0 0.0
    %515 = vmatprep.subr.mxu0 0.0
    %516 = vmatpush1.msra.mxu0 0.0
    %517 = vmatprep.subr.mxu0 0.0
    %518 = vmatpush1.msra.mxu0 0.0
    %519 = vmatprep.subr.mxu0 0.0
    %520 = vmatpush1.msra.mxu0 0.0
    %521 = vmatprep.subr.mxu0 0.0
    %522 = vmatpush1.msra.mxu0 0.0
    %523 = vmatprep.subr.mxu0 0.0
    %524 = vmatpush1.msra.mxu0 0.0
    %525 = vmatprep.subr.mxu0 0.0
    %526 = vmatpush1.msra.mxu0 0.0
    %527 = vmatprep.subr.mxu0 0.0
    %528 = vmatpush1.msra.mxu0 0.0
    %529 = vmatprep.subr.mxu0 0.0
    %530 = vmatpush1.msra.mxu0 0.0
    %531 = vmatprep.subr.mxu0 0.0
    %532 = vmatpush1.msra.mxu0 0.0
    %533 = vmatprep.subr.mxu0 0.0
    %534 = vmatpush1.msra.mxu0 0.0
    %535 = vmatprep.subr.mxu0 0.0
    %536 = vmatpush1.msra.mxu0 0.0
    %537 = vmatprep.subr.mxu0 0.0
    %538 = vmatpush1.msra.mxu0 0.0
    %539 = vmatprep.subr.mxu0 0.0
    %540 = vmatpush1.msra.mxu0 0.0
    %541 = vmatprep.subr.mxu0 0.0
    %542 = vmatpush1.msra.mxu0 0.0
    %543 = vmatprep.subr.mxu0 0.0
    %544 = vmatpush1.msra.mxu0 0.0
    %545 = vmatprep.subr.mxu0 0.0
    %546 = vmatpush1.msra.mxu0 0.0
    %547 = vmatprep.subr.mxu0 0.0
    %548 = vmatpush1.msra.mxu0 0.0
    %549 = vmatprep.subr.mxu0 0.0
    %550 = vmatpush1.msra.mxu0 0.0
    %551 = vmatprep.subr.mxu0 0.0
    %552 = vmatpush1.msra.mxu0 0.0
    %553 = vmatprep.subr.mxu0 0.0
    %554 = vmatpush1.msra.mxu0 0.0
    %555 = vmatprep.subr.mxu0 0.0
    %556 = vmatpush1.msra.mxu0 0.0
    %557 = vmatprep.subr.mxu0 0.0
    %558 = vmatpush1.msra.mxu0 0.0
    %559 = vmatprep.mubr.f32.mxu0 0.0
    %560 = vmatmul.mubr.f32.gmra.mrb[0].mxu0 %v493
    %v561 = vpop.f32.mrb[0].mxu0
    %v562 = vadd.f32 0.0, %v561
    %v563 = vpop.f32.mrb[0].mxu0
    %564 = vdwg.mxu0
    %v565 = vld [vmem:[%s2] sm:$0xf]
    %v567 = vsel %vm56, %v489, 0
    %v570 = vsel %vm56, %v562, 0
    %v573 = vsel %vm63, %v565, 0
    %575 = vmatprep.subr.mxu0 0.0
    %576 = vmatpush1.msra.mxu0 %v573
    %577 = vmatprep.subr.mxu0 0.0
    %578 = vmatpush1.msra.mxu0 0.0
    %579 = vmatprep.subr.mxu0 0.0
    %580 = vmatpush1.msra.mxu0 0.0
    %581 = vmatprep.subr.mxu0 0.0
    %582 = vmatpush1.msra.mxu0 0.0
    %583 = vmatprep.subr.mxu0 0.0
    %584 = vmatpush1.msra.mxu0 0.0
    %585 = vmatprep.subr.mxu0 0.0
    %586 = vmatpush1.msra.mxu0 0.0
    %587 = vmatprep.subr.mxu0 0.0
    %588 = vmatpush1.msra.mxu0 0.0
    %589 = vmatprep.subr.mxu0 0.0
    %590 = vmatpush1.msra.mxu0 0.0
    %591 = vmatprep.subr.mxu0 0.0
    %592 = vmatpush1.msra.mxu0 0.0
    %593 = vmatprep.subr.mxu0 0.0
    %594 = vmatpush1.msra.mxu0 0.0
    %595 = vmatprep.subr.mxu0 0.0
    %596 = vmatpush1.msra.mxu0 0.0
    %597 = vmatprep.subr.mxu0 0.0
    %598 = vmatpush1.msra.mxu0 0.0
    %599 = vmatprep.subr.mxu0 0.0
    %600 = vmatpush1.msra.mxu0 0.0
    %601 = vmatprep.subr.mxu0 0.0
    %602 = vmatpush1.msra.mxu0 0.0
    %603 = vmatprep.subr.mxu0 0.0
    %604 = vmatpush1.msra.mxu0 0.0
    %605 = vmatprep.subr.mxu0 0.0
    %606 = vmatpush1.msra.mxu0 0.0
    %607 = vmatprep.subr.mxu0 0.0
    %608 = vmatpush1.msra.mxu0 0.0
    %609 = vmatprep.subr.mxu0 0.0
    %610 = vmatpush1.msra.mxu0 0.0
    %611 = vmatprep.subr.mxu0 0.0
    %612 = vmatpush1.msra.mxu0 0.0
    %613 = vmatprep.subr.mxu0 0.0
    %614 = vmatpush1.msra.mxu0 0.0
    %615 = vmatprep.subr.mxu0 0.0
    %616 = vmatpush1.msra.mxu0 0.0
    %617 = vmatprep.subr.mxu0 0.0
    %618 = vmatpush1.msra.mxu0 0.0
    %619 = vmatprep.subr.mxu0 0.0
    %620 = vmatpush1.msra.mxu0 0.0
    %621 = vmatprep.subr.mxu0 0.0
    %622 = vmatpush1.msra.mxu0 0.0
    %623 = vmatprep.subr.mxu0 0.0
    %624 = vmatpush1.msra.mxu0 0.0
    %625 = vmatprep.subr.mxu0 0.0
    %626 = vmatpush1.msra.mxu0 0.0
    %627 = vmatprep.subr.mxu0 0.0
    %628 = vmatpush1.msra.mxu0 0.0
    %629 = vmatprep.subr.mxu0 0.0
    %630 = vmatpush1.msra.mxu0 0.0
    %631 = vmatprep.subr.mxu0 0.0
    %632 = vmatpush1.msra.mxu0 0.0
    %633 = vmatprep.subr.mxu0 0.0
    %634 = vmatpush1.msra.mxu0 0.0
    %635 = vmatprep.subr.mxu0 0.0
    %636 = vmatpush1.msra.mxu0 0.0
    %637 = vmatprep.subr.mxu0 0.0
    %638 = vmatpush1.msra.mxu0 0.0
    %639 = vmatprep.mubr.f32.mxu0 0.0
    %640 = vmatmul.mubr.f32.gmra.mrb[0].mxu0 %v567
    %v641 = vpop.f32.mrb[0].mxu0
    %v642 = vadd.f32 0.0, %v641
    %v643 = vpop.f32.mrb[0].mxu0
    %644 = vmatprep.mubr.f32.mxu0 0.0
    %645 = vmatmul.mubr.f32.gmra.mrb[0].mxu0 %v570
    %v646 = vpop.f32.mrb[0].mxu0
    %v647 = vadd.f32 0.0, %v646
    %v648 = vpop.f32.mrb[0].mxu0
    %649 = vdwg.mxu0
    %v650 = vlaneseq
    %v651 = vshrl.u32 %v650, 7
    %v652 = vsub.s32 1, %v651
    %v653 = vrot.slane %v54, %v652
    %v654 = vadd.f32 %v642, %v653
    %v655 = vadd.f32 %v647, %v653
    %v656 = vmul.f32 %v654, 0.5
    %v657 = vmul.f32 %v655, 0.5
    %v658 = vtanh.pop %v656
    %v659 = vtanh.pop %v657
    %v660 = vadd.f32 %v658, 1.0
    %v661 = vadd.f32 %v659, 1.0
    %v662 = vmul.f32 %v660, 0.5
    %v663 = vmul.f32 %v661, 0.5
    %v664 = vlaneseq
    %v665 = vshrl.u32 %v664, 7
    %v666 = vsub.s32 2, %v665
    %v667 = vrot.slane %v54, %v666
    %669 = vrot.lane.b32.xlu0 %v667, 32
    %v670 = vpop.permute.xlu0 %669
    %v672 = vadd.f32 %v642, %v670
    %v673 = vadd.f32 %v647, %v670
    %v674 = vmul.f32 %v672, 0.5
    %v675 = vmul.f32 %v673, 0.5
    %v676 = vtanh.pop %v674
    %v677 = vtanh.pop %v675
    %v678 = vadd.f32 %v676, 1.0
    %v679 = vadd.f32 %v677, 1.0
    %v680 = vmul.f32 %v678, 0.5
    %v681 = vmul.f32 %v679, 0.5
    %v682 = vmul.f32 %v662, %v42
    %v683 = vmul.f32 %v663, %v43
    %v685 = vsel %vm156, %v682, 0
    %v688 = vsel %vm156, %v683, 0
    %690 = vmatprep.subr.mxu0 0.0
    %691 = vmatpush1.msra.mxu0 %v50
    %692 = vmatprep.subr.mxu0 0.0
    %693 = vmatpush1.msra.mxu0 %v51
    %694 = vmatprep.subr.mxu0 0.0
    %695 = vmatpush1.msra.mxu0 %v52
    %696 = vmatprep.subr.mxu0 0.0
    %697 = vmatpush1.msra.mxu0 %v53
    %698 = vmatprep.subr.mxu0 0.0
    %699 = vmatpush1.msra.mxu0 0.0
    %700 = vmatprep.subr.mxu0 0.0
    %701 = vmatpush1.msra.mxu0 0.0
    %702 = vmatprep.subr.mxu0 0.0
    %703 = vmatpush1.msra.mxu0 0.0
    %704 = vmatprep.subr.mxu0 0.0
    %705 = vmatpush1.msra.mxu0 0.0
    %706 = vmatprep.subr.mxu0 0.0
    %707 = vmatpush1.msra.mxu0 0.0
    %708 = vmatprep.subr.mxu0 0.0
    %709 = vmatpush1.msra.mxu0 0.0
    %710 = vmatprep.subr.mxu0 0.0
    %711 = vmatpush1.msra.mxu0 0.0
    %712 = vmatprep.subr.mxu0 0.0
    %713 = vmatpush1.msra.mxu0 0.0
    %714 = vmatprep.subr.mxu0 0.0
    %715 = vmatpush1.msra.mxu0 0.0
    %716 = vmatprep.subr.mxu0 0.0
    %717 = vmatpush1.msra.mxu0 0.0
    %718 = vmatprep.subr.mxu0 0.0
    %719 = vmatpush1.msra.mxu0 0.0
    %720 = vmatprep.subr.mxu0 0.0
    %721 = vmatpush1.msra.mxu0 0.0
    %722 = vmatprep.subr.mxu0 0.0
    %723 = vmatpush1.msra.mxu0 0.0
    %724 = vmatprep.subr.mxu0 0.0
    %725 = vmatpush1.msra.mxu0 0.0
    %726 = vmatprep.subr.mxu0 0.0
    %727 = vmatpush1.msra.mxu0 0.0
    %728 = vmatprep.subr.mxu0 0.0
    %729 = vmatpush1.msra.mxu0 0.0
    %730 = vmatprep.subr.mxu0 0.0
    %731 = vmatpush1.msra.mxu0 0.0
    %732 = vmatprep.subr.mxu0 0.0
    %733 = vmatpush1.msra.mxu0 0.0
    %734 = vmatprep.subr.mxu0 0.0
    %735 = vmatpush1.msra.mxu0 0.0
    %736 = vmatprep.subr.mxu0 0.0
    %737 = vmatpush1.msra.mxu0 0.0
    %738 = vmatprep.subr.mxu0 0.0
    %739 = vmatpush1.msra.mxu0 0.0
    %740 = vmatprep.subr.mxu0 0.0
    %741 = vmatpush1.msra.mxu0 0.0
    %742 = vmatprep.subr.mxu0 0.0
    %743 = vmatpush1.msra.mxu0 0.0
    %744 = vmatprep.subr.mxu0 0.0
    %745 = vmatpush1.msra.mxu0 0.0
    %746 = vmatprep.subr.mxu0 0.0
    %747 = vmatpush1.msra.mxu0 0.0
    %748 = vmatprep.subr.mxu0 0.0
    %749 = vmatpush1.msra.mxu0 0.0
    %750 = vmatprep.subr.mxu0 0.0
    %751 = vmatpush1.msra.mxu0 0.0
    %752 = vmatprep.subr.mxu0 0.0
    %753 = vmatpush1.msra.mxu0 0.0
    %754 = vmatprep.mubr.f32.mxu0 0.0
    %755 = vmatmul.mubr.f32.gmra.mrb[0].mxu0 %v685
    %v756 = vpop.f32.mrb[0].mxu0
    %v757 = vadd.f32 0.0, %v756
    %v758 = vpop.f32.mrb[0].mxu0
    %759 = vmatprep.mubr.f32.mxu0 0.0
    %760 = vmatmul.mubr.f32.gmra.mrb[0].mxu0 %v688
    %v761 = vpop.f32.mrb[0].mxu0
    %v762 = vadd.f32 0.0, %v761
    %v763 = vpop.f32.mrb[0].mxu0
    %764 = vdwg.mxu0
    %767 = vrot.lane.b32.xlu0 %v757, 32
    %v768 = vpop.permute.xlu0 %767
    %769 = vrot.lane.b32.xlu0 %v762, 32
    %v770 = vpop.permute.xlu0 %769
    %v773 = vadd.f32 %v150, %v768
    %v774 = vadd.f32 %v151, %v770
    %v775 = vlaneseq
    %v776 = vshrl.u32 %v775, 7
    %v777 = vsub.s32 4, %v776
    %v778 = vrot.slane %v54, %v777
    %780 = vrot.lane.b32.xlu0 %v778, 32
    %v781 = vpop.permute.xlu0 %780
    %v783 = vadd.f32 %v773, %v781
    %v784 = vadd.f32 %v774, %v781
    %v785 = vtanh.pop %v783
    %v786 = vtanh.pop %v784
    %787 = vrot.lane.b32.xlu0 %v42, 32
    %v788 = vpop.permute.xlu0 %787
    %789 = vrot.lane.b32.xlu0 %v43, 32
    %v790 = vpop.permute.xlu0 %789
    %v793 = vmul.f32 %v680, %v788
    %v794 = vmul.f32 %v681, %v790
    %v795 = vsub.f32 1.0, %v680
    %v796 = vsub.f32 1.0, %v681
    %v797 = vmul.f32 %v795, %v785
    %v798 = vmul.f32 %v796, %v786
    %v799 = vadd.f32 %v793, %v797
    %v800 = vadd.f32 %v794, %v798
    %s801 = scalar_lea.vmem %s0, 16
    %v802 = vld [vmem:[%s801] sm:$0xff]
    %v803 = vld [vmem:[%s801 + $0x8] sm:$0xff]
    %s804 = scalar_lea.vmem [#allocation2], 64
    %v805 = vld [vmem:[%s804] sm:$0xff]
    %v806 = vld [vmem:[%s804 + $0x8] sm:$0xff]
    %v807 = vld [vmem:[%s804 + $0x10] sm:$0xff]
    %v808 = vld [vmem:[%s804 + $0x18] sm:$0xff]
    %v809 = vld [vmem:[%s804 + $0x20] sm:$0xff]
    %v810 = vld [vmem:[%s804 + $0x28] sm:$0xff]
    %v811 = vld [vmem:[%s804 + $0x30] sm:$0xff]
    %v812 = vld [vmem:[%s804 + $0x38] sm:$0xff]
    %s813 = scalar_lea.vmem %s4, 8
    %v814 = vld [vmem:[%s813] sm:$0x1f]
    %s815 = scalar_lea.vmem %s1, 4
    %v816 = vld [vmem:[%s815] sm:$0xf]
    %v818 = vsel %vm56, %v802, 0
    %v821 = vsel %vm56, %v803, 0
    %v824 = vsel %vm63, %v816, 0
    %826 = vmatprep.subr.mxu0 0.0
    %827 = vmatpush1.msra.mxu0 %v824
    %828 = vmatprep.subr.mxu0 0.0
    %829 = vmatpush1.msra.mxu0 0.0
    %830 = vmatprep.subr.mxu0 0.0
    %831 = vmatpush1.msra.mxu0 0.0
    %832 = vmatprep.subr.mxu0 0.0
    %833 = vmatpush1.msra.mxu0 0.0
    %834 = vmatprep.subr.mxu0 0.0
    %835 = vmatpush1.msra.mxu0 0.0
    %836 = vmatprep.subr.mxu0 0.0
    %837 = vmatpush1.msra.mxu0 0.0
    %838 = vmatprep.subr.mxu0 0.0
    %839 = vmatpush1.msra.mxu0 0.0
    %840 = vmatprep.subr.mxu0 0.0
    %841 = vmatpush1.msra.mxu0 0.0
    %842 = vmatprep.subr.mxu0 0.0
    %843 = vmatpush1.msra.mxu0 0.0
    %844 = vmatprep.subr.mxu0 0.0
    %845 = vmatpush1.msra.mxu0 0.0
    %846 = vmatprep.subr.mxu0 0.0
    %847 = vmatpush1.msra.mxu0 0.0
    %848 = vmatprep.subr.mxu0 0.0
    %849 = vmatpush1.msra.mxu0 0.0
    %850 = vmatprep.subr.mxu0 0.0
    %851 = vmatpush1.msra.mxu0 0.0
    %852 = vmatprep.subr.mxu0 0.0
    %853 = vmatpush1.msra.mxu0 0.0
    %854 = vmatprep.subr.mxu0 0.0
    %855 = vmatpush1.msra.mxu0 0.0
    %856 = vmatprep.subr.mxu0 0.0
    %857 = vmatpush1.msra.mxu0 0.0
    %858 = vmatprep.subr.mxu0 0.0
    %859 = vmatpush1.msra.mxu0 0.0
    %860 = vmatprep.subr.mxu0 0.0
    %861 = vmatpush1.msra.mxu0 0.0
    %862 = vmatprep.subr.mxu0 0.0
    %863 = vmatpush1.msra.mxu0 0.0
    %864 = vmatprep.subr.mxu0 0.0
    %865 = vmatpush1.msra.mxu0 0.0
    %866 = vmatprep.subr.mxu0 0.0
    %867 = vmatpush1.msra.mxu0 0.0
    %868 = vmatprep.subr.mxu0 0.0
    %869 = vmatpush1.msra.mxu0 0.0
    %870 = vmatprep.subr.mxu0 0.0
    %871 = vmatpush1.msra.mxu0 0.0
    %872 = vmatprep.subr.mxu0 0.0
    %873 = vmatpush1.msra.mxu0 0.0
    %874 = vmatprep.subr.mxu0 0.0
    %875 = vmatpush1.msra.mxu0 0.0
    %876 = vmatprep.subr.mxu0 0.0
    %877 = vmatpush1.msra.mxu0 0.0
    %878 = vmatprep.subr.mxu0 0.0
    %879 = vmatpush1.msra.mxu0 0.0
    %880 = vmatprep.subr.mxu0 0.0
    %881 = vmatpush1.msra.mxu0 0.0
    %882 = vmatprep.subr.mxu0 0.0
    %883 = vmatpush1.msra.mxu0 0.0
    %884 = vmatprep.subr.mxu0 0.0
    %885 = vmatpush1.msra.mxu0 0.0
    %886 = vmatprep.subr.mxu0 0.0
    %887 = vmatpush1.msra.mxu0 0.0
    %888 = vmatprep.subr.mxu0 0.0
    %889 = vmatpush1.msra.mxu0 0.0
    %890 = vmatprep.mubr.f32.mxu0 0.0
    %891 = vmatmul.mubr.f32.gmra.mrb[0].mxu0 %v818
    %v892 = vpop.f32.mrb[0].mxu0
    %v893 = vadd.f32 0.0, %v892
    %v894 = vpop.f32.mrb[0].mxu0
    %895 = vmatprep.mubr.f32.mxu0 0.0
    %896 = vmatmul.mubr.f32.gmra.mrb[0].mxu0 %v821
    %v897 = vpop.f32.mrb[0].mxu0
    %v898 = vadd.f32 0.0, %v897
    %v899 = vpop.f32.mrb[0].mxu0
    %900 = vdwg.mxu0
    %v901 = vlaneseq
    %v902 = vshrl.u32 %v901, 7
    %v903 = vsub.s32 3, %v902
    %v904 = vrot.slane %v814, %v903
    %906 = vrot.lane.b32.xlu0 %v904, 32
    %v907 = vpop.permute.xlu0 %906
    %v909 = vadd.f32 %v893, %v907
    %v910 = vadd.f32 %v898, %v907
    %v911 = vlaneseq
    %v912 = vshrl.u32 %v911, 7
    %v913 = vsub.s32 0, %v912
    %v914 = vrot.slane %v814, %v913
    %917 = vrot.lane.b32.xlu0 %v799, 96
    %v918 = vpop.permute.xlu0 %917
    %919 = vrot.lane.b32.xlu0 %v800, 96
    %v920 = vpop.permute.xlu0 %919
    %v921 = vsel %vm156, %v918, 0
    %v923 = vsel %vm156, %v920, 0
    %925 = vmatprep.subr.mxu0 0.0
    %926 = vmatpush1.msra.mxu0 %v805
    %927 = vmatprep.subr.mxu0 0.0
    %928 = vmatpush1.msra.mxu0 %v806
    %929 = vmatprep.subr.mxu0 0.0
    %930 = vmatpush1.msra.mxu0 %v807
    %931 = vmatprep.subr.mxu0 0.0
    %932 = vmatpush1.msra.mxu0 %v808
    %933 = vmatprep.subr.mxu0 0.0
    %934 = vmatpush1.msra.mxu0 0.0
    %935 = vmatprep.subr.mxu0 0.0
    %936 = vmatpush1.msra.mxu0 0.0
    %937 = vmatprep.subr.mxu0 0.0
    %938 = vmatpush1.msra.mxu0 0.0
    %939 = vmatprep.subr.mxu0 0.0
    %940 = vmatpush1.msra.mxu0 0.0
    %941 = vmatprep.subr.mxu0 0.0
    %942 = vmatpush1.msra.mxu0 0.0
    %943 = vmatprep.subr.mxu0 0.0
    %944 = vmatpush1.msra.mxu0 0.0
    %945 = vmatprep.subr.mxu0 0.0
    %946 = vmatpush1.msra.mxu0 0.0
    %947 = vmatprep.subr.mxu0 0.0
    %948 = vmatpush1.msra.mxu0 0.0
    %949 = vmatprep.subr.mxu0 0.0
    %950 = vmatpush1.msra.mxu0 0.0
    %951 = vmatprep.subr.mxu0 0.0
    %952 = vmatpush1.msra.mxu0 0.0
    %953 = vmatprep.subr.mxu0 0.0
    %954 = vmatpush1.msra.mxu0 0.0
    %955 = vmatprep.subr.mxu0 0.0
    %956 = vmatpush1.msra.mxu0 0.0
    %957 = vmatprep.subr.mxu0 0.0
    %958 = vmatpush1.msra.mxu0 0.0
    %959 = vmatprep.subr.mxu0 0.0
    %960 = vmatpush1.msra.mxu0 0.0
    %961 = vmatprep.subr.mxu0 0.0
    %962 = vmatpush1.msra.mxu0 0.0
    %963 = vmatprep.subr.mxu0 0.0
    %964 = vmatpush1.msra.mxu0 0.0
    %965 = vmatprep.subr.mxu0 0.0
    %966 = vmatpush1.msra.mxu0 0.0
    %967 = vmatprep.subr.mxu0 0.0
    %968 = vmatpush1.msra.mxu0 0.0
    %969 = vmatprep.subr.mxu0 0.0
    %970 = vmatpush1.msra.mxu0 0.0
    %971 = vmatprep.subr.mxu0 0.0
    %972 = vmatpush1.msra.mxu0 0.0
    %973 = vmatprep.subr.mxu0 0.0
    %974 = vmatpush1.msra.mxu0 0.0
    %975 = vmatprep.subr.mxu0 0.0
    %976 = vmatpush1.msra.mxu0 0.0
    %977 = vmatprep.subr.mxu0 0.0
    %978 = vmatpush1.msra.mxu0 0.0
    %979 = vmatprep.subr.mxu0 0.0
    %980 = vmatpush1.msra.mxu0 0.0
    %981 = vmatprep.subr.mxu0 0.0
    %982 = vmatpush1.msra.mxu0 0.0
    %983 = vmatprep.subr.mxu0 0.0
    %984 = vmatpush1.msra.mxu0 0.0
    %985 = vmatprep.subr.mxu0 0.0
    %986 = vmatpush1.msra.mxu0 0.0
    %987 = vmatprep.subr.mxu0 0.0
    %988 = vmatpush1.msra.mxu0 0.0
    %989 = vmatprep.mubr.f32.mxu0 0.0
    %990 = vmatmul.mubr.f32.gmra.mrb[0].mxu0 %v921
    %v991 = vpop.f32.mrb[0].mxu0
    %v992 = vadd.f32 %v914, %v991
    %v993 = vpop.f32.mrb[0].mxu0
    %994 = vmatprep.mubr.f32.mxu0 0.0
    %995 = vmatmul.mubr.f32.gmra.mrb[0].mxu0 %v923
    %v996 = vpop.f32.mrb[0].mxu0
    %v997 = vadd.f32 %v914, %v996
    %v998 = vpop.f32.mrb[0].mxu0
    %999 = vdwg.mxu0
    %v1001 = vsel %vm156, %v893, 0
    %v1004 = vsel %vm156, %v992, 0
    %1006 = vmatprep.subr.mxu0 0.0
    %1007 = vmatpush1.xpose.msra.mxu0 %v1004
    %1008 = vmatprep.subr.mxu0 0.0
    %1009 = vmatpush1.xpose.msra.mxu0 0.0
    %1010 = vmatprep.subr.mxu0 0.0
    %1011 = vmatpush1.xpose.msra.mxu0 0.0
    %1012 = vmatprep.subr.mxu0 0.0
    %1013 = vmatpush1.xpose.msra.mxu0 0.0
    %1014 = vmatprep.subr.mxu0 0.0
    %1015 = vmatpush1.xpose.msra.mxu0 0.0
    %1016 = vmatprep.subr.mxu0 0.0
    %1017 = vmatpush1.xpose.msra.mxu0 0.0
    %1018 = vmatprep.subr.mxu0 0.0
    %1019 = vmatpush1.xpose.msra.mxu0 0.0
    %1020 = vmatprep.subr.mxu0 0.0
    %1021 = vmatpush1.xpose.msra.mxu0 0.0
    %1022 = vmatprep.subr.mxu0 0.0
    %1023 = vmatpush1.xpose.msra.mxu0 0.0
    %1024 = vmatprep.subr.mxu0 0.0
    %1025 = vmatpush1.xpose.msra.mxu0 0.0
    %1026 = vmatprep.subr.mxu0 0.0
    %1027 = vmatpush1.xpose.msra.mxu0 0.0
    %1028 = vmatprep.subr.mxu0 0.0
    %1029 = vmatpush1.xpose.msra.mxu0 0.0
    %1030 = vmatprep.subr.mxu0 0.0
    %1031 = vmatpush1.xpose.msra.mxu0 0.0
    %1032 = vmatprep.subr.mxu0 0.0
    %1033 = vmatpush1.xpose.msra.mxu0 0.0
    %1034 = vmatprep.subr.mxu0 0.0
    %1035 = vmatpush1.xpose.msra.mxu0 0.0
    %1036 = vmatprep.subr.mxu0 0.0
    %1037 = vmatpush1.xpose.msra.mxu0 0.0
    %1038 = vmatprep.subr.mxu0 0.0
    %1039 = vmatpush1.xpose.msra.mxu0 0.0
    %1040 = vmatprep.subr.mxu0 0.0
    %1041 = vmatpush1.xpose.msra.mxu0 0.0
    %1042 = vmatprep.subr.mxu0 0.0
    %1043 = vmatpush1.xpose.msra.mxu0 0.0
    %1044 = vmatprep.subr.mxu0 0.0
    %1045 = vmatpush1.xpose.msra.mxu0 0.0
    %1046 = vmatprep.subr.mxu0 0.0
    %1047 = vmatpush1.xpose.msra.mxu0 0.0
    %1048 = vmatprep.subr.mxu0 0.0
    %1049 = vmatpush1.xpose.msra.mxu0 0.0
    %1050 = vmatprep.subr.mxu0 0.0
    %1051 = vmatpush1.xpose.msra.mxu0 0.0
    %1052 = vmatprep.subr.mxu0 0.0
    %1053 = vmatpush1.xpose.msra.mxu0 0.0
    %1054 = vmatprep.subr.mxu0 0.0
    %1055 = vmatpush1.xpose.msra.mxu0 0.0
    %1056 = vmatprep.subr.mxu0 0.0
    %1057 = vmatpush1.xpose.msra.mxu0 0.0
    %1058 = vmatprep.subr.mxu0 0.0
    %1059 = vmatpush1.xpose.msra.mxu0 0.0
    %1060 = vmatprep.subr.mxu0 0.0
    %1061 = vmatpush1.xpose.msra.mxu0 0.0
    %1062 = vmatprep.subr.mxu0 0.0
    %1063 = vmatpush1.xpose.msra.mxu0 0.0
    %1064 = vmatprep.subr.mxu0 0.0
    %1065 = vmatpush1.xpose.msra.mxu0 0.0
    %1066 = vmatprep.subr.mxu0 0.0
    %1067 = vmatpush1.xpose.msra.mxu0 0.0
    %1068 = vmatprep.subr.mxu0 0.0
    %1069 = vmatpush1.xpose.msra.mxu0 0.0
    %1070 = vmatprep.mubr.f32.mxu0 0.0
    %1071 = vmatmul.mubr.f32.gmra.mrb[0].mxu0 %v1001
    %v1072 = vpop.f32.mrb[0].mxu0
    %v1073 = vadd.f32 0.0, %v1072
    %v1074 = vpop.f32.mrb[0].mxu0
    %1075 = vdwg.mxu0
    %v1077 = vsel %vm156, %v898, 0
    %v1080 = vsel %vm156, %v997, 0
    %1082 = vmatprep.subr.mxu0 0.0
    %1083 = vmatpush1.xpose.msra.mxu0 %v1080
    %1084 = vmatprep.subr.mxu0 0.0
    %1085 = vmatpush1.xpose.msra.mxu0 0.0
    %1086 = vmatprep.subr.mxu0 0.0
    %1087 = vmatpush1.xpose.msra.mxu0 0.0
    %1088 = vmatprep.subr.mxu0 0.0
    %1089 = vmatpush1.xpose.msra.mxu0 0.0
    %1090 = vmatprep.subr.mxu0 0.0
    %1091 = vmatpush1.xpose.msra.mxu0 0.0
    %1092 = vmatprep.subr.mxu0 0.0
    %1093 = vmatpush1.xpose.msra.mxu0 0.0
    %1094 = vmatprep.subr.mxu0 0.0
    %1095 = vmatpush1.xpose.msra.mxu0 0.0
    %1096 = vmatprep.subr.mxu0 0.0
    %1097 = vmatpush1.xpose.msra.mxu0 0.0
    %1098 = vmatprep.subr.mxu0 0.0
    %1099 = vmatpush1.xpose.msra.mxu0 0.0
    %1100 = vmatprep.subr.mxu0 0.0
    %1101 = vmatpush1.xpose.msra.mxu0 0.0
    %1102 = vmatprep.subr.mxu0 0.0
    %1103 = vmatpush1.xpose.msra.mxu0 0.0
    %1104 = vmatprep.subr.mxu0 0.0
    %1105 = vmatpush1.xpose.msra.mxu0 0.0
    %1106 = vmatprep.subr.mxu0 0.0
    %1107 = vmatpush1.xpose.msra.mxu0 0.0
    %1108 = vmatprep.subr.mxu0 0.0
    %1109 = vmatpush1.xpose.msra.mxu0 0.0
    %1110 = vmatprep.subr.mxu0 0.0
    %1111 = vmatpush1.xpose.msra.mxu0 0.0
    %1112 = vmatprep.subr.mxu0 0.0
    %1113 = vmatpush1.xpose.msra.mxu0 0.0
    %1114 = vmatprep.subr.mxu0 0.0
    %1115 = vmatpush1.xpose.msra.mxu0 0.0
    %1116 = vmatprep.subr.mxu0 0.0
    %1117 = vmatpush1.xpose.msra.mxu0 0.0
    %1118 = vmatprep.subr.mxu0 0.0
    %1119 = vmatpush1.xpose.msra.mxu0 0.0
    %1120 = vmatprep.subr.mxu0 0.0
    %1121 = vmatpush1.xpose.msra.mxu0 0.0
    %1122 = vmatprep.subr.mxu0 0.0
    %1123 = vmatpush1.xpose.msra.mxu0 0.0
    %1124 = vmatprep.subr.mxu0 0.0
    %1125 = vmatpush1.xpose.msra.mxu0 0.0
    %1126 = vmatprep.subr.mxu0 0.0
    %1127 = vmatpush1.xpose.msra.mxu0 0.0
    %1128 = vmatprep.subr.mxu0 0.0
    %1129 = vmatpush1.xpose.msra.mxu0 0.0
    %1130 = vmatprep.subr.mxu0 0.0
    %1131 = vmatpush1.xpose.msra.mxu0 0.0
    %1132 = vmatprep.subr.mxu0 0.0
    %1133 = vmatpush1.xpose.msra.mxu0 0.0
    %1134 = vmatprep.subr.mxu0 0.0
    %1135 = vmatpush1.xpose.msra.mxu0 0.0
    %1136 = vmatprep.subr.mxu0 0.0
    %1137 = vmatpush1.xpose.msra.mxu0 0.0
    %1138 = vmatprep.subr.mxu0 0.0
    %1139 = vmatpush1.xpose.msra.mxu0 0.0
    %1140 = vmatprep.subr.mxu0 0.0
    %1141 = vmatpush1.xpose.msra.mxu0 0.0
    %1142 = vmatprep.subr.mxu0 0.0
    %1143 = vmatpush1.xpose.msra.mxu0 0.0
    %1144 = vmatprep.subr.mxu0 0.0
    %1145 = vmatpush1.xpose.msra.mxu0 0.0
    %1146 = vmatprep.mubr.f32.mxu0 0.0
    %1147 = vmatmul.mubr.f32.gmra.mrb[0].mxu0 %v1077
    %v1148 = vpop.f32.mrb[0].mxu0
    %v1149 = vadd.f32 0.0, %v1148
    %v1150 = vpop.f32.mrb[0].mxu0
    %1151 = vdwg.mxu0
    %vm1152 = vcmp.ge.f32.partialorder %v1073, 0.0
    %vm1153 = vcmp.ge.f32.partialorder %v1149, 0.0
    %v1154 = vmul.f32 %v1073, 0.01
    %v1155 = vmul.f32 %v1149, 0.01
    %v1156 = vsel %vm1152, %v1073, %v1154
    %v1157 = vsel %vm1153, %v1149, %v1155
    %v1158 = vsel %vm396, %v1156, -inf
    %1159 = vmax.xlane.f32.xlu0 %v1158
    %v1160 = vpop.xlane.xlu0 %1159
    %v1161 = vsel %vm396, %v1157, -inf
    %1162 = vmax.xlane.f32.xlu0 %v1161
    %v1163 = vpop.xlane.xlu0 %1162
    %v1164 = vsub.f32 %v1156, %v1160
    %v1165 = vsub.f32 %v1157, %v1163
    %v1166 = vmul.f32 %v1164, 1.442695
    %v1167 = vpow.pop %v1166
    %v1168 = vmul.f32 %v1165, 1.442695
    %v1169 = vpow.pop %v1168
    %v1170 = vsel %vm396, %v1167, 0.0
    %1171 = vadd.xlane.f32.xlu0 %v1170
    %v1172 = vpop.xlane.xlu0 %1171
    %v1173 = vsel %vm396, %v1169, 0.0
    %1174 = vadd.xlane.f32.xlu0 %v1173
    %v1175 = vpop.xlane.xlu0 %1174
    %v1176 = vrcp.pop %v1172
    %v1177 = vrcp.pop %v1175
    %v1178 = vmul.f32 %v1167, %v1176
    %v1179 = vmul.f32 %v1169, %v1177
    %v1181 = vsel %vm396, %v1178, 0
    %1183 = vmatprep.subr.mxu0 0.0
    %1184 = vmatpush1.msra.mxu0 %v802
    %1185 = vmatprep.subr.mxu0 0.0
    %1186 = vmatpush1.msra.mxu0 0.0
    %1187 = vmatprep.subr.mxu0 0.0
    %1188 = vmatpush1.msra.mxu0 0.0
    %1189 = vmatprep.subr.mxu0 0.0
    %1190 = vmatpush1.msra.mxu0 0.0
    %1191 = vmatprep.subr.mxu0 0.0
    %1192 = vmatpush1.msra.mxu0 0.0
    %1193 = vmatprep.subr.mxu0 0.0
    %1194 = vmatpush1.msra.mxu0 0.0
    %1195 = vmatprep.subr.mxu0 0.0
    %1196 = vmatpush1.msra.mxu0 0.0
    %1197 = vmatprep.subr.mxu0 0.0
    %1198 = vmatpush1.msra.mxu0 0.0
    %1199 = vmatprep.subr.mxu0 0.0
    %1200 = vmatpush1.msra.mxu0 0.0
    %1201 = vmatprep.subr.mxu0 0.0
    %1202 = vmatpush1.msra.mxu0 0.0
    %1203 = vmatprep.subr.mxu0 0.0
    %1204 = vmatpush1.msra.mxu0 0.0
    %1205 = vmatprep.subr.mxu0 0.0
    %1206 = vmatpush1.msra.mxu0 0.0
    %1207 = vmatprep.subr.mxu0 0.0
    %1208 = vmatpush1.msra.mxu0 0.0
    %1209 = vmatprep.subr.mxu0 0.0
    %1210 = vmatpush1.msra.mxu0 0.0
    %1211 = vmatprep.subr.mxu0 0.0
    %1212 = vmatpush1.msra.mxu0 0.0
    %1213 = vmatprep.subr.mxu0 0.0
    %1214 = vmatpush1.msra.mxu0 0.0
    %1215 = vmatprep.subr.mxu0 0.0
    %1216 = vmatpush1.msra.mxu0 0.0
    %1217 = vmatprep.subr.mxu0 0.0
    %1218 = vmatpush1.msra.mxu0 0.0
    %1219 = vmatprep.subr.mxu0 0.0
    %1220 = vmatpush1.msra.mxu0 0.0
    %1221 = vmatprep.subr.mxu0 0.0
    %1222 = vmatpush1.msra.mxu0 0.0
    %1223 = vmatprep.subr.mxu0 0.0
    %1224 = vmatpush1.msra.mxu0 0.0
    %1225 = vmatprep.subr.mxu0 0.0
    %1226 = vmatpush1.msra.mxu0 0.0
    %1227 = vmatprep.subr.mxu0 0.0
    %1228 = vmatpush1.msra.mxu0 0.0
    %1229 = vmatprep.subr.mxu0 0.0
    %1230 = vmatpush1.msra.mxu0 0.0
    %1231 = vmatprep.subr.mxu0 0.0
    %1232 = vmatpush1.msra.mxu0 0.0
    %1233 = vmatprep.subr.mxu0 0.0
    %1234 = vmatpush1.msra.mxu0 0.0
    %1235 = vmatprep.subr.mxu0 0.0
    %1236 = vmatpush1.msra.mxu0 0.0
    %1237 = vmatprep.subr.mxu0 0.0
    %1238 = vmatpush1.msra.mxu0 0.0
    %1239 = vmatprep.subr.mxu0 0.0
    %1240 = vmatpush1.msra.mxu0 0.0
    %1241 = vmatprep.subr.mxu0 0.0
    %1242 = vmatpush1.msra.mxu0 0.0
    %1243 = vmatprep.subr.mxu0 0.0
    %1244 = vmatpush1.msra.mxu0 0.0
    %1245 = vmatprep.subr.mxu0 0.0
    %1246 = vmatpush1.msra.mxu0 0.0
    %1247 = vmatprep.mubr.f32.mxu0 0.0
    %1248 = vmatmul.mubr.f32.gmra.mrb[0].mxu0 %v1181
    %v1249 = vpop.f32.mrb[0].mxu0
    %v1250 = vadd.f32 0.0, %v1249
    %v1251 = vpop.f32.mrb[0].mxu0
    %1252 = vdwg.mxu0
    %v1254 = vsel %vm396, %v1179, 0
    %1256 = vmatprep.subr.mxu0 0.0
    %1257 = vmatpush1.msra.mxu0 %v803
    %1258 = vmatprep.subr.mxu0 0.0
    %1259 = vmatpush1.msra.mxu0 0.0
    %1260 = vmatprep.subr.mxu0 0.0
    %1261 = vmatpush1.msra.mxu0 0.0
    %1262 = vmatprep.subr.mxu0 0.0
    %1263 = vmatpush1.msra.mxu0 0.0
    %1264 = vmatprep.subr.mxu0 0.0
    %1265 = vmatpush1.msra.mxu0 0.0
    %1266 = vmatprep.subr.mxu0 0.0
    %1267 = vmatpush1.msra.mxu0 0.0
    %1268 = vmatprep.subr.mxu0 0.0
    %1269 = vmatpush1.msra.mxu0 0.0
    %1270 = vmatprep.subr.mxu0 0.0
    %1271 = vmatpush1.msra.mxu0 0.0
    %1272 = vmatprep.subr.mxu0 0.0
    %1273 = vmatpush1.msra.mxu0 0.0
    %1274 = vmatprep.subr.mxu0 0.0
    %1275 = vmatpush1.msra.mxu0 0.0
    %1276 = vmatprep.subr.mxu0 0.0
    %1277 = vmatpush1.msra.mxu0 0.0
    %1278 = vmatprep.subr.mxu0 0.0
    %1279 = vmatpush1.msra.mxu0 0.0
    %1280 = vmatprep.subr.mxu0 0.0
    %1281 = vmatpush1.msra.mxu0 0.0
    %1282 = vmatprep.subr.mxu0 0.0
    %1283 = vmatpush1.msra.mxu0 0.0
    %1284 = vmatprep.subr.mxu0 0.0
    %1285 = vmatpush1.msra.mxu0 0.0
    %1286 = vmatprep.subr.mxu0 0.0
    %1287 = vmatpush1.msra.mxu0 0.0
    %1288 = vmatprep.subr.mxu0 0.0
    %1289 = vmatpush1.msra.mxu0 0.0
    %1290 = vmatprep.subr.mxu0 0.0
    %1291 = vmatpush1.msra.mxu0 0.0
    %1292 = vmatprep.subr.mxu0 0.0
    %1293 = vmatpush1.msra.mxu0 0.0
    %1294 = vmatprep.subr.mxu0 0.0
    %1295 = vmatpush1.msra.mxu0 0.0
    %1296 = vmatprep.subr.mxu0 0.0
    %1297 = vmatpush1.msra.mxu0 0.0
    %1298 = vmatprep.subr.mxu0 0.0
    %1299 = vmatpush1.msra.mxu0 0.0
    %1300 = vmatprep.subr.mxu0 0.0
    %1301 = vmatpush1.msra.mxu0 0.0
    %1302 = vmatprep.subr.mxu0 0.0
    %1303 = vmatpush1.msra.mxu0 0.0
    %1304 = vmatprep.subr.mxu0 0.0
    %1305 = vmatpush1.msra.mxu0 0.0
    %1306 = vmatprep.subr.mxu0 0.0
    %1307 = vmatpush1.msra.mxu0 0.0
    %1308 = vmatprep.subr.mxu0 0.0
    %1309 = vmatpush1.msra.mxu0 0.0
    %1310 = vmatprep.subr.mxu0 0.0
    %1311 = vmatpush1.msra.mxu0 0.0
    %1312 = vmatprep.subr.mxu0 0.0
    %1313 = vmatpush1.msra.mxu0 0.0
    %1314 = vmatprep.subr.mxu0 0.0
    %1315 = vmatpush1.msra.mxu0 0.0
    %1316 = vmatprep.subr.mxu0 0.0
    %1317 = vmatpush1.msra.mxu0 0.0
    %1318 = vmatprep.subr.mxu0 0.0
    %1319 = vmatpush1.msra.mxu0 0.0
    %1320 = vmatprep.mubr.f32.mxu0 0.0
    %1321 = vmatmul.mubr.f32.gmra.mrb[0].mxu0 %v1254
    %v1322 = vpop.f32.mrb[0].mxu0
    %v1323 = vadd.f32 0.0, %v1322
    %v1324 = vpop.f32.mrb[0].mxu0
    %1325 = vdwg.mxu0
    %s1326 = scalar_lea.vmem %s2, 4
    %v1327 = vld [vmem:[%s1326] sm:$0xf]
    %v1329 = vsel %vm56, %v1250, 0
    %v1332 = vsel %vm56, %v1323, 0
    %v1335 = vsel %vm63, %v1327, 0
    %1337 = vmatprep.subr.mxu0 0.0
    %1338 = vmatpush1.msra.mxu0 %v1335
    %1339 = vmatprep.subr.mxu0 0.0
    %1340 = vmatpush1.msra.mxu0 0.0
    %1341 = vmatprep.subr.mxu0 0.0
    %1342 = vmatpush1.msra.mxu0 0.0
    %1343 = vmatprep.subr.mxu0 0.0
    %1344 = vmatpush1.msra.mxu0 0.0
    %1345 = vmatprep.subr.mxu0 0.0
    %1346 = vmatpush1.msra.mxu0 0.0
    %1347 = vmatprep.subr.mxu0 0.0
    %1348 = vmatpush1.msra.mxu0 0.0
    %1349 = vmatprep.subr.mxu0 0.0
    %1350 = vmatpush1.msra.mxu0 0.0
    %1351 = vmatprep.subr.mxu0 0.0
    %1352 = vmatpush1.msra.mxu0 0.0
    %1353 = vmatprep.subr.mxu0 0.0
    %1354 = vmatpush1.msra.mxu0 0.0
    %1355 = vmatprep.subr.mxu0 0.0
    %1356 = vmatpush1.msra.mxu0 0.0
    %1357 = vmatprep.subr.mxu0 0.0
    %1358 = vmatpush1.msra.mxu0 0.0
    %1359 = vmatprep.subr.mxu0 0.0
    %1360 = vmatpush1.msra.mxu0 0.0
    %1361 = vmatprep.subr.mxu0 0.0
    %1362 = vmatpush1.msra.mxu0 0.0
    %1363 = vmatprep.subr.mxu0 0.0
    %1364 = vmatpush1.msra.mxu0 0.0
    %1365 = vmatprep.subr.mxu0 0.0
    %1366 = vmatpush1.msra.mxu0 0.0
    %1367 = vmatprep.subr.mxu0 0.0
    %1368 = vmatpush1.msra.mxu0 0.0
    %1369 = vmatprep.subr.mxu0 0.0
    %1370 = vmatpush1.msra.mxu0 0.0
    %1371 = vmatprep.subr.mxu0 0.0
    %1372 = vmatpush1.msra.mxu0 0.0
    %1373 = vmatprep.subr.mxu0 0.0
    %1374 = vmatpush1.msra.mxu0 0.0
    %1375 = vmatprep.subr.mxu0 0.0
    %1376 = vmatpush1.msra.mxu0 0.0
    %1377 = vmatprep.subr.mxu0 0.0
    %1378 = vmatpush1.msra.mxu0 0.0
    %1379 = vmatprep.subr.mxu0 0.0
    %1380 = vmatpush1.msra.mxu0 0.0
    %1381 = vmatprep.subr.mxu0 0.0
    %1382 = vmatpush1.msra.mxu0 0.0
    %1383 = vmatprep.subr.mxu0 0.0
    %1384 = vmatpush1.msra.mxu0 0.0
    %1385 = vmatprep.subr.mxu0 0.0
    %1386 = vmatpush1.msra.mxu0 0.0
    %1387 = vmatprep.subr.mxu0 0.0
    %1388 = vmatpush1.msra.mxu0 0.0
    %1389 = vmatprep.subr.mxu0 0.0
    %1390 = vmatpush1.msra.mxu0 0.0
    %1391 = vmatprep.subr.mxu0 0.0
    %1392 = vmatpush1.msra.mxu0 0.0
    %1393 = vmatprep.subr.mxu0 0.0
    %1394 = vmatpush1.msra.mxu0 0.0
    %1395 = vmatprep.subr.mxu0 0.0
    %1396 = vmatpush1.msra.mxu0 0.0
    %1397 = vmatprep.subr.mxu0 0.0
    %1398 = vmatpush1.msra.mxu0 0.0
    %1399 = vmatprep.subr.mxu0 0.0
    %1400 = vmatpush1.msra.mxu0 0.0
    %1401 = vmatprep.mubr.f32.mxu0 0.0
    %1402 = vmatmul.mubr.f32.gmra.mrb[0].mxu0 %v1329
    %v1403 = vpop.f32.mrb[0].mxu0
    %v1404 = vadd.f32 0.0, %v1403
    %v1405 = vpop.f32.mrb[0].mxu0
    %1406 = vmatprep.mubr.f32.mxu0 0.0
    %1407 = vmatmul.mubr.f32.gmra.mrb[0].mxu0 %v1332
    %v1408 = vpop.f32.mrb[0].mxu0
    %v1409 = vadd.f32 0.0, %v1408
    %v1410 = vpop.f32.mrb[0].mxu0
    %1411 = vdwg.mxu0
    %v1412 = vlaneseq
    %v1413 = vshrl.u32 %v1412, 7
    %v1414 = vsub.s32 1, %v1413
    %v1415 = vrot.slane %v814, %v1414
    %v1416 = vadd.f32 %v1404, %v1415
    %v1417 = vadd.f32 %v1409, %v1415
    %v1418 = vmul.f32 %v1416, 0.5
    %v1419 = vmul.f32 %v1417, 0.5
    %v1420 = vtanh.pop %v1418
    %v1421 = vtanh.pop %v1419
    %v1422 = vadd.f32 %v1420, 1.0
    %v1423 = vadd.f32 %v1421, 1.0
    %v1424 = vmul.f32 %v1422, 0.5
    %v1425 = vmul.f32 %v1423, 0.5
    %v1426 = vlaneseq
    %v1427 = vshrl.u32 %v1426, 7
    %v1428 = vsub.s32 2, %v1427
    %v1429 = vrot.slane %v814, %v1428
    %1431 = vrot.lane.b32.xlu0 %v1429, 32
    %v1432 = vpop.permute.xlu0 %1431
    %v1434 = vadd.f32 %v1404, %v1432
    %v1435 = vadd.f32 %v1409, %v1432
    %v1436 = vmul.f32 %v1434, 0.5
    %v1437 = vmul.f32 %v1435, 0.5
    %v1438 = vtanh.pop %v1436
    %v1439 = vtanh.pop %v1437
    %v1440 = vadd.f32 %v1438, 1.0
    %v1441 = vadd.f32 %v1439, 1.0
    %v1442 = vmul.f32 %v1440, 0.5
    %v1443 = vmul.f32 %v1441, 0.5
    %v1446 = vmul.f32 %v1424, %v918
    %v1447 = vmul.f32 %v1425, %v920
    %v1449 = vsel %vm156, %v1446, 0
    %v1452 = vsel %vm156, %v1447, 0
    %1454 = vmatprep.subr.mxu0 0.0
    %1455 = vmatpush1.msra.mxu0 %v809
    %1456 = vmatprep.subr.mxu0 0.0
    %1457 = vmatpush1.msra.mxu0 %v810
    %1458 = vmatprep.subr.mxu0 0.0
    %1459 = vmatpush1.msra.mxu0 %v811
    %1460 = vmatprep.subr.mxu0 0.0
    %1461 = vmatpush1.msra.mxu0 %v812
    %1462 = vmatprep.subr.mxu0 0.0
    %1463 = vmatpush1.msra.mxu0 0.0
    %1464 = vmatprep.subr.mxu0 0.0
    %1465 = vmatpush1.msra.mxu0 0.0
    %1466 = vmatprep.subr.mxu0 0.0
    %1467 = vmatpush1.msra.mxu0 0.0
    %1468 = vmatprep.subr.mxu0 0.0
    %1469 = vmatpush1.msra.mxu0 0.0
    %1470 = vmatprep.subr.mxu0 0.0
    %1471 = vmatpush1.msra.mxu0 0.0
    %1472 = vmatprep.subr.mxu0 0.0
    %1473 = vmatpush1.msra.mxu0 0.0
    %1474 = vmatprep.subr.mxu0 0.0
    %1475 = vmatpush1.msra.mxu0 0.0
    %1476 = vmatprep.subr.mxu0 0.0
    %1477 = vmatpush1.msra.mxu0 0.0
    %1478 = vmatprep.subr.mxu0 0.0
    %1479 = vmatpush1.msra.mxu0 0.0
    %1480 = vmatprep.subr.mxu0 0.0
    %1481 = vmatpush1.msra.mxu0 0.0
    %1482 = vmatprep.subr.mxu0 0.0
    %1483 = vmatpush1.msra.mxu0 0.0
    %1484 = vmatprep.subr.mxu0 0.0
    %1485 = vmatpush1.msra.mxu0 0.0
    %1486 = vmatprep.subr.mxu0 0.0
    %1487 = vmatpush1.msra.mxu0 0.0
    %1488 = vmatprep.subr.mxu0 0.0
    %1489 = vmatpush1.msra.mxu0 0.0
    %1490 = vmatprep.subr.mxu0 0.0
    %1491 = vmatpush1.msra.mxu0 0.0
    %1492 = vmatprep.subr.mxu0 0.0
    %1493 = vmatpush1.msra.mxu0 0.0
    %1494 = vmatprep.subr.mxu0 0.0
    %1495 = vmatpush1.msra.mxu0 0.0
    %1496 = vmatprep.subr.mxu0 0.0
    %1497 = vmatpush1.msra.mxu0 0.0
    %1498 = vmatprep.subr.mxu0 0.0
    %1499 = vmatpush1.msra.mxu0 0.0
    %1500 = vmatprep.subr.mxu0 0.0
    %1501 = vmatpush1.msra.mxu0 0.0
    %1502 = vmatprep.subr.mxu0 0.0
    %1503 = vmatpush1.msra.mxu0 0.0
    %1504 = vmatprep.subr.mxu0 0.0
    %1505 = vmatpush1.msra.mxu0 0.0
    %1506 = vmatprep.subr.mxu0 0.0
    %1507 = vmatpush1.msra.mxu0 0.0
    %1508 = vmatprep.subr.mxu0 0.0
    %1509 = vmatpush1.msra.mxu0 0.0
    %1510 = vmatprep.subr.mxu0 0.0
    %1511 = vmatpush1.msra.mxu0 0.0
    %1512 = vmatprep.subr.mxu0 0.0
    %1513 = vmatpush1.msra.mxu0 0.0
    %1514 = vmatprep.subr.mxu0 0.0
    %1515 = vmatpush1.msra.mxu0 0.0
    %1516 = vmatprep.subr.mxu0 0.0
    %1517 = vmatpush1.msra.mxu0 0.0
    %1518 = vmatprep.mubr.f32.mxu0 0.0
    %1519 = vmatmul.mubr.f32.gmra.mrb[0].mxu0 %v1449
    %v1520 = vpop.f32.mrb[0].mxu0
    %v1521 = vadd.f32 0.0, %v1520
    %v1522 = vpop.f32.mrb[0].mxu0
    %1523 = vmatprep.mubr.f32.mxu0 0.0
    %1524 = vmatmul.mubr.f32.gmra.mrb[0].mxu0 %v1452
    %v1525 = vpop.f32.mrb[0].mxu0
    %v1526 = vadd.f32 0.0, %v1525
    %v1527 = vpop.f32.mrb[0].mxu0
    %1528 = vdwg.mxu0
    %1531 = vrot.lane.b32.xlu0 %v1521, 32
    %v1532 = vpop.permute.xlu0 %1531
    %1533 = vrot.lane.b32.xlu0 %v1526, 32
    %v1534 = vpop.permute.xlu0 %1533
    %v1537 = vadd.f32 %v909, %v1532
    %v1538 = vadd.f32 %v910, %v1534
    %v1539 = vlaneseq
    %v1540 = vshrl.u32 %v1539, 7
    %v1541 = vsub.s32 4, %v1540
    %v1542 = vrot.slane %v814, %v1541
    %1544 = vrot.lane.b32.xlu0 %v1542, 32
    %v1545 = vpop.permute.xlu0 %1544
    %v1547 = vadd.f32 %v1537, %v1545
    %v1548 = vadd.f32 %v1538, %v1545
    %v1549 = vtanh.pop %v1547
    %v1550 = vtanh.pop %v1548
    %v1551 = vmul.f32 %v1442, %v799
    %v1552 = vmul.f32 %v1443, %v800
    %v1553 = vsub.f32 1.0, %v1442
    %v1554 = vsub.f32 1.0, %v1443
    %v1555 = vmul.f32 %v1553, %v1549
    %v1556 = vmul.f32 %v1554, %v1550
    %v1557 = vadd.f32 %v1551, %v1555
    %v1558 = vadd.f32 %v1552, %v1556
    %s1559 = scalar_lea.vmem %s0, 32
    %v1560 = vld [vmem:[%s1559] sm:$0xff]
    %v1561 = vld [vmem:[%s1559 + $0x8] sm:$0xff]
    %s1562 = scalar_lea.vmem [#allocation2], 128
    %v1563 = vld [vmem:[%s1562] sm:$0xff]
    %v1564 = vld [vmem:[%s1562 + $0x8] sm:$0xff]
    %v1565 = vld [vmem:[%s1562 + $0x10] sm:$0xff]
    %v1566 = vld [vmem:[%s1562 + $0x18] sm:$0xff]
    %v1567 = vld [vmem:[%s1562 + $0x20] sm:$0xff]
    %v1568 = vld [vmem:[%s1562 + $0x28] sm:$0xff]
    %v1569 = vld [vmem:[%s1562 + $0x30] sm:$0xff]
    %v1570 = vld [vmem:[%s1562 + $0x38] sm:$0xff]
    %s1571 = scalar_lea.vmem %s4, 16
    %v1572 = vld [vmem:[%s1571] sm:$0x1f]
    %s1573 = scalar_lea.vmem %s1, 8
    %v1574 = vld [vmem:[%s1573] sm:$0xf]
    %v1576 = vsel %vm56, %v1560, 0
    %v1579 = vsel %vm56, %v1561, 0
    %v1582 = vsel %vm63, %v1574, 0
    %1584 = vmatprep.subr.mxu0 0.0
    %1585 = vmatpush1.msra.mxu0 %v1582
    %1586 = vmatprep.subr.mxu0 0.0
    %1587 = vmatpush1.msra.mxu0 0.0
    %1588 = vmatprep.subr.mxu0 0.0
    %1589 = vmatpush1.msra.mxu0 0.0
    %1590 = vmatprep.subr.mxu0 0.0
    %1591 = vmatpush1.msra.mxu0 0.0
    %1592 = vmatprep.subr.mxu0 0.0
    %1593 = vmatpush1.msra.mxu0 0.0
    %1594 = vmatprep.subr.mxu0 0.0
    %1595 = vmatpush1.msra.mxu0 0.0
    %1596 = vmatprep.subr.mxu0 0.0
    %1597 = vmatpush1.msra.mxu0 0.0
    %1598 = vmatprep.subr.mxu0 0.0
    %1599 = vmatpush1.msra.mxu0 0.0
    %1600 = vmatprep.subr.mxu0 0.0
    %1601 = vmatpush1.msra.mxu0 0.0
    %1602 = vmatprep.subr.mxu0 0.0
    %1603 = vmatpush1.msra.mxu0 0.0
    %1604 = vmatprep.subr.mxu0 0.0
    %1605 = vmatpush1.msra.mxu0 0.0
    %1606 = vmatprep.subr.mxu0 0.0
    %1607 = vmatpush1.msra.mxu0 0.0
    %1608 = vmatprep.subr.mxu0 0.0
    %1609 = vmatpush1.msra.mxu0 0.0
    %1610 = vmatprep.subr.mxu0 0.0
    %1611 = vmatpush1.msra.mxu0 0.0
    %1612 = vmatprep.subr.mxu0 0.0
    %1613 = vmatpush1.msra.mxu0 0.0
    %1614 = vmatprep.subr.mxu0 0.0
    %1615 = vmatpush1.msra.mxu0 0.0
    %1616 = vmatprep.subr.mxu0 0.0
    %1617 = vmatpush1.msra.mxu0 0.0
    %1618 = vmatprep.subr.mxu0 0.0
    %1619 = vmatpush1.msra.mxu0 0.0
    %1620 = vmatprep.subr.mxu0 0.0
    %1621 = vmatpush1.msra.mxu0 0.0
    %1622 = vmatprep.subr.mxu0 0.0
    %1623 = vmatpush1.msra.mxu0 0.0
    %1624 = vmatprep.subr.mxu0 0.0
    %1625 = vmatpush1.msra.mxu0 0.0
    %1626 = vmatprep.subr.mxu0 0.0
    %1627 = vmatpush1.msra.mxu0 0.0
    %1628 = vmatprep.subr.mxu0 0.0
    %1629 = vmatpush1.msra.mxu0 0.0
    %1630 = vmatprep.subr.mxu0 0.0
    %1631 = vmatpush1.msra.mxu0 0.0
    %1632 = vmatprep.subr.mxu0 0.0
    %1633 = vmatpush1.msra.mxu0 0.0
    %1634 = vmatprep.subr.mxu0 0.0
    %1635 = vmatpush1.msra.mxu0 0.0
    %1636 = vmatprep.subr.mxu0 0.0
    %1637 = vmatpush1.msra.mxu0 0.0
    %1638 = vmatprep.subr.mxu0 0.0
    %1639 = vmatpush1.msra.mxu0 0.0
    %1640 = vmatprep.subr.mxu0 0.0
    %1641 = vmatpush1.msra.mxu0 0.0
    %1642 = vmatprep.subr.mxu0 0.0
    %1643 = vmatpush1.msra.mxu0 0.0
    %1644 = vmatprep.subr.mxu0 0.0
    %1645 = vmatpush1.msra.mxu0 0.0
    %1646 = vmatprep.subr.mxu0 0.0
    %1647 = vmatpush1.msra.mxu0 0.0
    %1648 = vmatprep.mubr.f32.mxu0 0.0
    %1649 = vmatmul.mubr.f32.gmra.mrb[0].mxu0 %v1576
    %v1650 = vpop.f32.mrb[0].mxu0
    %v1651 = vadd.f32 0.0, %v1650
    %v1652 = vpop.f32.mrb[0].mxu0
    %1653 = vmatprep.mubr.f32.mxu0 0.0
    %1654 = vmatmul.mubr.f32.gmra.mrb[0].mxu0 %v1579
    %v1655 = vpop.f32.mrb[0].mxu0
    %v1656 = vadd.f32 0.0, %v1655
    %v1657 = vpop.f32.mrb[0].mxu0
    %1658 = vdwg.mxu0
    %v1659 = vlaneseq
    %v1660 = vshrl.u32 %v1659, 7
    %v1661 = vsub.s32 3, %v1660
    %v1662 = vrot.slane %v1572, %v1661
    %1664 = vrot.lane.b32.xlu0 %v1662, 32
    %v1665 = vpop.permute.xlu0 %1664
    %v1667 = vadd.f32 %v1651, %v1665
    %v1668 = vadd.f32 %v1656, %v1665
    %v1669 = vlaneseq
    %v1670 = vshrl.u32 %v1669, 7
    %v1671 = vsub.s32 0, %v1670
    %v1672 = vrot.slane %v1572, %v1671
    %1675 = vrot.lane.b32.xlu0 %v1557, 96
    %v1676 = vpop.permute.xlu0 %1675
    %1677 = vrot.lane.b32.xlu0 %v1558, 96
    %v1678 = vpop.permute.xlu0 %1677
    %v1679 = vsel %vm156, %v1676, 0
    %v1681 = vsel %vm156, %v1678, 0
    %1683 = vmatprep.subr.mxu0 0.0
    %1684 = vmatpush1.msra.mxu0 %v1563
    %1685 = vmatprep.subr.mxu0 0.0
    %1686 = vmatpush1.msra.mxu0 %v1564
    %1687 = vmatprep.subr.mxu0 0.0
    %1688 = vmatpush1.msra.mxu0 %v1565
    %1689 = vmatprep.subr.mxu0 0.0
    %1690 = vmatpush1.msra.mxu0 %v1566
    %1691 = vmatprep.subr.mxu0 0.0
    %1692 = vmatpush1.msra.mxu0 0.0
    %1693 = vmatprep.subr.mxu0 0.0
    %1694 = vmatpush1.msra.mxu0 0.0
    %1695 = vmatprep.subr.mxu0 0.0
    %1696 = vmatpush1.msra.mxu0 0.0
    %1697 = vmatprep.subr.mxu0 0.0
    %1698 = vmatpush1.msra.mxu0 0.0
    %1699 = vmatprep.subr.mxu0 0.0
    %1700 = vmatpush1.msra.mxu0 0.0
    %1701 = vmatprep.subr.mxu0 0.0
    %1702 = vmatpush1.msra.mxu0 0.0
    %1703 = vmatprep.subr.mxu0 0.0
    %1704 = vmatpush1.msra.mxu0 0.0
    %1705 = vmatprep.subr.mxu0 0.0
    %1706 = vmatpush1.msra.mxu0 0.0
    %1707 = vmatprep.subr.mxu0 0.0
    %1708 = vmatpush1.msra.mxu0 0.0
    %1709 = vmatprep.subr.mxu0 0.0
    %1710 = vmatpush1.msra.mxu0 0.0
    %1711 = vmatprep.subr.mxu0 0.0
    %1712 = vmatpush1.msra.mxu0 0.0
    %1713 = vmatprep.subr.mxu0 0.0
    %1714 = vmatpush1.msra.mxu0 0.0
    %1715 = vmatprep.subr.mxu0 0.0
    %1716 = vmatpush1.msra.mxu0 0.0
    %1717 = vmatprep.subr.mxu0 0.0
    %1718 = vmatpush1.msra.mxu0 0.0
    %1719 = vmatprep.subr.mxu0 0.0
    %1720 = vmatpush1.msra.mxu0 0.0
    %1721 = vmatprep.subr.mxu0 0.0
    %1722 = vmatpush1.msra.mxu0 0.0
    %1723 = vmatprep.subr.mxu0 0.0
    %1724 = vmatpush1.msra.mxu0 0.0
    %1725 = vmatprep.subr.mxu0 0.0
    %1726 = vmatpush1.msra.mxu0 0.0
    %1727 = vmatprep.subr.mxu0 0.0
    %1728 = vmatpush1.msra.mxu0 0.0
    %1729 = vmatprep.subr.mxu0 0.0
    %1730 = vmatpush1.msra.mxu0 0.0
    %1731 = vmatprep.subr.mxu0 0.0
    %1732 = vmatpush1.msra.mxu0 0.0
    %1733 = vmatprep.subr.mxu0 0.0
    %1734 = vmatpush1.msra.mxu0 0.0
    %1735 = vmatprep.subr.mxu0 0.0
    %1736 = vmatpush1.msra.mxu0 0.0
    %1737 = vmatprep.subr.mxu0 0.0
    %1738 = vmatpush1.msra.mxu0 0.0
    %1739 = vmatprep.subr.mxu0 0.0
    %1740 = vmatpush1.msra.mxu0 0.0
    %1741 = vmatprep.subr.mxu0 0.0
    %1742 = vmatpush1.msra.mxu0 0.0
    %1743 = vmatprep.subr.mxu0 0.0
    %1744 = vmatpush1.msra.mxu0 0.0
    %1745 = vmatprep.subr.mxu0 0.0
    %1746 = vmatpush1.msra.mxu0 0.0
    %1747 = vmatprep.mubr.f32.mxu0 0.0
    %1748 = vmatmul.mubr.f32.gmra.mrb[0].mxu0 %v1679
    %v1749 = vpop.f32.mrb[0].mxu0
    %v1750 = vadd.f32 %v1672, %v1749
    %v1751 = vpop.f32.mrb[0].mxu0
    %1752 = vmatprep.mubr.f32.mxu0 0.0
    %1753 = vmatmul.mubr.f32.gmra.mrb[0].mxu0 %v1681
    %v1754 = vpop.f32.mrb[0].mxu0
    %v1755 = vadd.f32 %v1672, %v1754
    %v1756 = vpop.f32.mrb[0].mxu0
    %1757 = vdwg.mxu0
    %v1759 = vsel %vm156, %v1651, 0
    %v1762 = vsel %vm156, %v1750, 0
    %1764 = vmatprep.subr.mxu0 0.0
    %1765 = vmatpush1.xpose.msra.mxu0 %v1762
    %1766 = vmatprep.subr.mxu0 0.0
    %1767 = vmatpush1.xpose.msra.mxu0 0.0
    %1768 = vmatprep.subr.mxu0 0.0
    %1769 = vmatpush1.xpose.msra.mxu0 0.0
    %1770 = vmatprep.subr.mxu0 0.0
    %1771 = vmatpush1.xpose.msra.mxu0 0.0
    %1772 = vmatprep.subr.mxu0 0.0
    %1773 = vmatpush1.xpose.msra.mxu0 0.0
    %1774 = vmatprep.subr.mxu0 0.0
    %1775 = vmatpush1.xpose.msra.mxu0 0.0
    %1776 = vmatprep.subr.mxu0 0.0
    %1777 = vmatpush1.xpose.msra.mxu0 0.0
    %1778 = vmatprep.subr.mxu0 0.0
    %1779 = vmatpush1.xpose.msra.mxu0 0.0
    %1780 = vmatprep.subr.mxu0 0.0
    %1781 = vmatpush1.xpose.msra.mxu0 0.0
    %1782 = vmatprep.subr.mxu0 0.0
    %1783 = vmatpush1.xpose.msra.mxu0 0.0
    %1784 = vmatprep.subr.mxu0 0.0
    %1785 = vmatpush1.xpose.msra.mxu0 0.0
    %1786 = vmatprep.subr.mxu0 0.0
    %1787 = vmatpush1.xpose.msra.mxu0 0.0
    %1788 = vmatprep.subr.mxu0 0.0
    %1789 = vmatpush1.xpose.msra.mxu0 0.0
    %1790 = vmatprep.subr.mxu0 0.0
    %1791 = vmatpush1.xpose.msra.mxu0 0.0
    %1792 = vmatprep.subr.mxu0 0.0
    %1793 = vmatpush1.xpose.msra.mxu0 0.0
    %1794 = vmatprep.subr.mxu0 0.0
    %1795 = vmatpush1.xpose.msra.mxu0 0.0
    %1796 = vmatprep.subr.mxu0 0.0
    %1797 = vmatpush1.xpose.msra.mxu0 0.0
    %1798 = vmatprep.subr.mxu0 0.0
    %1799 = vmatpush1.xpose.msra.mxu0 0.0
    %1800 = vmatprep.subr.mxu0 0.0
    %1801 = vmatpush1.xpose.msra.mxu0 0.0
    %1802 = vmatprep.subr.mxu0 0.0
    %1803 = vmatpush1.xpose.msra.mxu0 0.0
    %1804 = vmatprep.subr.mxu0 0.0
    %1805 = vmatpush1.xpose.msra.mxu0 0.0
    %1806 = vmatprep.subr.mxu0 0.0
    %1807 = vmatpush1.xpose.msra.mxu0 0.0
    %1808 = vmatprep.subr.mxu0 0.0
    %1809 = vmatpush1.xpose.msra.mxu0 0.0
    %1810 = vmatprep.subr.mxu0 0.0
    %1811 = vmatpush1.xpose.msra.mxu0 0.0
    %1812 = vmatprep.subr.mxu0 0.0
    %1813 = vmatpush1.xpose.msra.mxu0 0.0
    %1814 = vmatprep.subr.mxu0 0.0
    %1815 = vmatpush1.xpose.msra.mxu0 0.0
    %1816 = vmatprep.subr.mxu0 0.0
    %1817 = vmatpush1.xpose.msra.mxu0 0.0
    %1818 = vmatprep.subr.mxu0 0.0
    %1819 = vmatpush1.xpose.msra.mxu0 0.0
    %1820 = vmatprep.subr.mxu0 0.0
    %1821 = vmatpush1.xpose.msra.mxu0 0.0
    %1822 = vmatprep.subr.mxu0 0.0
    %1823 = vmatpush1.xpose.msra.mxu0 0.0
    %1824 = vmatprep.subr.mxu0 0.0
    %1825 = vmatpush1.xpose.msra.mxu0 0.0
    %1826 = vmatprep.subr.mxu0 0.0
    %1827 = vmatpush1.xpose.msra.mxu0 0.0
    %1828 = vmatprep.mubr.f32.mxu0 0.0
    %1829 = vmatmul.mubr.f32.gmra.mrb[0].mxu0 %v1759
    %v1830 = vpop.f32.mrb[0].mxu0
    %v1831 = vadd.f32 0.0, %v1830
    %v1832 = vpop.f32.mrb[0].mxu0
    %1833 = vdwg.mxu0
    %v1835 = vsel %vm156, %v1656, 0
    %v1838 = vsel %vm156, %v1755, 0
    %1840 = vmatprep.subr.mxu0 0.0
    %1841 = vmatpush1.xpose.msra.mxu0 %v1838
    %1842 = vmatprep.subr.mxu0 0.0
    %1843 = vmatpush1.xpose.msra.mxu0 0.0
    %1844 = vmatprep.subr.mxu0 0.0
    %1845 = vmatpush1.xpose.msra.mxu0 0.0
    %1846 = vmatprep.subr.mxu0 0.0
    %1847 = vmatpush1.xpose.msra.mxu0 0.0
    %1848 = vmatprep.subr.mxu0 0.0
    %1849 = vmatpush1.xpose.msra.mxu0 0.0
    %1850 = vmatprep.subr.mxu0 0.0
    %1851 = vmatpush1.xpose.msra.mxu0 0.0
    %1852 = vmatprep.subr.mxu0 0.0
    %1853 = vmatpush1.xpose.msra.mxu0 0.0
    %1854 = vmatprep.subr.mxu0 0.0
    %1855 = vmatpush1.xpose.msra.mxu0 0.0
    %1856 = vmatprep.subr.mxu0 0.0
    %1857 = vmatpush1.xpose.msra.mxu0 0.0
    %1858 = vmatprep.subr.mxu0 0.0
    %1859 = vmatpush1.xpose.msra.mxu0 0.0
    %1860 = vmatprep.subr.mxu0 0.0
    %1861 = vmatpush1.xpose.msra.mxu0 0.0
    %1862 = vmatprep.subr.mxu0 0.0
    %1863 = vmatpush1.xpose.msra.mxu0 0.0
    %1864 = vmatprep.subr.mxu0 0.0
    %1865 = vmatpush1.xpose.msra.mxu0 0.0
    %1866 = vmatprep.subr.mxu0 0.0
    %1867 = vmatpush1.xpose.msra.mxu0 0.0
    %1868 = vmatprep.subr.mxu0 0.0
    %1869 = vmatpush1.xpose.msra.mxu0 0.0
    %1870 = vmatprep.subr.mxu0 0.0
    %1871 = vmatpush1.xpose.msra.mxu0 0.0
    %1872 = vmatprep.subr.mxu0 0.0
    %1873 = vmatpush1.xpose.msra.mxu0 0.0
    %1874 = vmatprep.subr.mxu0 0.0
    %1875 = vmatpush1.xpose.msra.mxu0 0.0
    %1876 = vmatprep.subr.mxu0 0.0
    %1877 = vmatpush1.xpose.msra.mxu0 0.0
    %1878 = vmatprep.subr.mxu0 0.0
    %1879 = vmatpush1.xpose.msra.mxu0 0.0
    %1880 = vmatprep.subr.mxu0 0.0
    %1881 = vmatpush1.xpose.msra.mxu0 0.0
    %1882 = vmatprep.subr.mxu0 0.0
    %1883 = vmatpush1.xpose.msra.mxu0 0.0
    %1884 = vmatprep.subr.mxu0 0.0
    %1885 = vmatpush1.xpose.msra.mxu0 0.0
    %1886 = vmatprep.subr.mxu0 0.0
    %1887 = vmatpush1.xpose.msra.mxu0 0.0
    %1888 = vmatprep.subr.mxu0 0.0
    %1889 = vmatpush1.xpose.msra.mxu0 0.0
    %1890 = vmatprep.subr.mxu0 0.0
    %1891 = vmatpush1.xpose.msra.mxu0 0.0
    %1892 = vmatprep.subr.mxu0 0.0
    %1893 = vmatpush1.xpose.msra.mxu0 0.0
    %1894 = vmatprep.subr.mxu0 0.0
    %1895 = vmatpush1.xpose.msra.mxu0 0.0
    %1896 = vmatprep.subr.mxu0 0.0
    %1897 = vmatpush1.xpose.msra.mxu0 0.0
    %1898 = vmatprep.subr.mxu0 0.0
    %1899 = vmatpush1.xpose.msra.mxu0 0.0
    %1900 = vmatprep.subr.mxu0 0.0
    %1901 = vmatpush1.xpose.msra.mxu0 0.0
    %1902 = vmatprep.subr.mxu0 0.0
    %1903 = vmatpush1.xpose.msra.mxu0 0.0
    %1904 = vmatprep.mubr.f32.mxu0 0.0
    %1905 = vmatmul.mubr.f32.gmra.mrb[0].mxu0 %v1835
    %v1906 = vpop.f32.mrb[0].mxu0
    %v1907 = vadd.f32 0.0, %v1906
    %v1908 = vpop.f32.mrb[0].mxu0
    %1909 = vdwg.mxu0
    %vm1910 = vcmp.ge.f32.partialorder %v1831, 0.0
    %vm1911 = vcmp.ge.f32.partialorder %v1907, 0.0
    %v1912 = vmul.f32 %v1831, 0.01
    %v1913 = vmul.f32 %v1907, 0.01
    %v1914 = vsel %vm1910, %v1831, %v1912
    %v1915 = vsel %vm1911, %v1907, %v1913
    %v1916 = vsel %vm396, %v1914, -inf
    %1917 = vmax.xlane.f32.xlu0 %v1916
    %v1918 = vpop.xlane.xlu0 %1917
    %v1919 = vsel %vm396, %v1915, -inf
    %1920 = vmax.xlane.f32.xlu0 %v1919
    %v1921 = vpop.xlane.xlu0 %1920
    %v1922 = vsub.f32 %v1914, %v1918
    %v1923 = vsub.f32 %v1915, %v1921
    %v1924 = vmul.f32 %v1922, 1.442695
    %v1925 = vpow.pop %v1924
    %v1926 = vmul.f32 %v1923, 1.442695
    %v1927 = vpow.pop %v1926
    %v1928 = vsel %vm396, %v1925, 0.0
    %1929 = vadd.xlane.f32.xlu0 %v1928
    %v1930 = vpop.xlane.xlu0 %1929
    %v1931 = vsel %vm396, %v1927, 0.0
    %1932 = vadd.xlane.f32.xlu0 %v1931
    %v1933 = vpop.xlane.xlu0 %1932
    %v1934 = vrcp.pop %v1930
    %v1935 = vrcp.pop %v1933
    %v1936 = vmul.f32 %v1925, %v1934
    %v1937 = vmul.f32 %v1927, %v1935
    %v1939 = vsel %vm396, %v1936, 0
    %1941 = vmatprep.subr.mxu0 0.0
    %1942 = vmatpush1.msra.mxu0 %v1560
    %1943 = vmatprep.subr.mxu0 0.0
    %1944 = vmatpush1.msra.mxu0 0.0
    %1945 = vmatprep.subr.mxu0 0.0
    %1946 = vmatpush1.msra.mxu0 0.0
    %1947 = vmatprep.subr.mxu0 0.0
    %1948 = vmatpush1.msra.mxu0 0.0
    %1949 = vmatprep.subr.mxu0 0.0
    %1950 = vmatpush1.msra.mxu0 0.0
    %1951 = vmatprep.subr.mxu0 0.0
    %1952 = vmatpush1.msra.mxu0 0.0
    %1953 = vmatprep.subr.mxu0 0.0
    %1954 = vmatpush1.msra.mxu0 0.0
    %1955 = vmatprep.subr.mxu0 0.0
    %1956 = vmatpush1.msra.mxu0 0.0
    %1957 = vmatprep.subr.mxu0 0.0
    %1958 = vmatpush1.msra.mxu0 0.0
    %1959 = vmatprep.subr.mxu0 0.0
    %1960 = vmatpush1.msra.mxu0 0.0
    %1961 = vmatprep.subr.mxu0 0.0
    %1962 = vmatpush1.msra.mxu0 0.0
    %1963 = vmatprep.subr.mxu0 0.0
    %1964 = vmatpush1.msra.mxu0 0.0
    %1965 = vmatprep.subr.mxu0 0.0
    %1966 = vmatpush1.msra.mxu0 0.0
    %1967 = vmatprep.subr.mxu0 0.0
    %1968 = vmatpush1.msra.mxu0 0.0
    %1969 = vmatprep.subr.mxu0 0.0
    %1970 = vmatpush1.msra.mxu0 0.0
    %1971 = vmatprep.subr.mxu0 0.0
    %1972 = vmatpush1.msra.mxu0 0.0
    %1973 = vmatprep.subr.mxu0 0.0
    %1974 = vmatpush1.msra.mxu0 0.0
    %1975 = vmatprep.subr.mxu0 0.0
    %1976 = vmatpush1.msra.mxu0 0.0
    %1977 = vmatprep.subr.mxu0 0.0
    %1978 = vmatpush1.msra.mxu0 0.0
    %1979 = vmatprep.subr.mxu0 0.0
    %1980 = vmatpush1.msra.mxu0 0.0
    %1981 = vmatprep.subr.mxu0 0.0
    %1982 = vmatpush1.msra.mxu0 0.0
    %1983 = vmatprep.subr.mxu0 0.0
    %1984 = vmatpush1.msra.mxu0 0.0
    %1985 = vmatprep.subr.mxu0 0.0
    %1986 = vmatpush1.msra.mxu0 0.0
    %1987 = vmatprep.subr.mxu0 0.0
    %1988 = vmatpush1.msra.mxu0 0.0
    %1989 = vmatprep.subr.mxu0 0.0
    %1990 = vmatpush1.msra.mxu0 0.0
    %1991 = vmatprep.subr.mxu0 0.0
    %1992 = vmatpush1.msra.mxu0 0.0
    %1993 = vmatprep.subr.mxu0 0.0
    %1994 = vmatpush1.msra.mxu0 0.0
    %1995 = vmatprep.subr.mxu0 0.0
    %1996 = vmatpush1.msra.mxu0 0.0
    %1997 = vmatprep.subr.mxu0 0.0
    %1998 = vmatpush1.msra.mxu0 0.0
    %1999 = vmatprep.subr.mxu0 0.0
    %2000 = vmatpush1.msra.mxu0 0.0
    %2001 = vmatprep.subr.mxu0 0.0
    %2002 = vmatpush1.msra.mxu0 0.0
    %2003 = vmatprep.subr.mxu0 0.0
    %2004 = vmatpush1.msra.mxu0 0.0
    %2005 = vmatprep.mubr.f32.mxu0 0.0
    %2006 = vmatmul.mubr.f32.gmra.mrb[0].mxu0 %v1939
    %v2007 = vpop.f32.mrb[0].mxu0
    %v2008 = vadd.f32 0.0, %v2007
    %v2009 = vpop.f32.mrb[0].mxu0
    %2010 = vdwg.mxu0
    %v2012 = vsel %vm396, %v1937, 0
    %2014 = vmatprep.subr.mxu0 0.0
    %2015 = vmatpush1.msra.mxu0 %v1561
    %2016 = vmatprep.subr.mxu0 0.0
    %2017 = vmatpush1.msra.mxu0 0.0
    %2018 = vmatprep.subr.mxu0 0.0
    %2019 = vmatpush1.msra.mxu0 0.0
    %2020 = vmatprep.subr.mxu0 0.0
    %2021 = vmatpush1.msra.mxu0 0.0
    %2022 = vmatprep.subr.mxu0 0.0
    %2023 = vmatpush1.msra.mxu0 0.0
    %2024 = vmatprep.subr.mxu0 0.0
    %2025 = vmatpush1.msra.mxu0 0.0
    %2026 = vmatprep.subr.mxu0 0.0
    %2027 = vmatpush1.msra.mxu0 0.0
    %2028 = vmatprep.subr.mxu0 0.0
    %2029 = vmatpush1.msra.mxu0 0.0
    %2030 = vmatprep.subr.mxu0 0.0
    %2031 = vmatpush1.msra.mxu0 0.0
    %2032 = vmatprep.subr.mxu0 0.0
    %2033 = vmatpush1.msra.mxu0 0.0
    %2034 = vmatprep.subr.mxu0 0.0
    %2035 = vmatpush1.msra.mxu0 0.0
    %2036 = vmatprep.subr.mxu0 0.0
    %2037 = vmatpush1.msra.mxu0 0.0
    %2038 = vmatprep.subr.mxu0 0.0
    %2039 = vmatpush1.msra.mxu0 0.0
    %2040 = vmatprep.subr.mxu0 0.0
    %2041 = vmatpush1.msra.mxu0 0.0
    %2042 = vmatprep.subr.mxu0 0.0
    %2043 = vmatpush1.msra.mxu0 0.0
    %2044 = vmatprep.subr.mxu0 0.0
    %2045 = vmatpush1.msra.mxu0 0.0
    %2046 = vmatprep.subr.mxu0 0.0
    %2047 = vmatpush1.msra.mxu0 0.0
    %2048 = vmatprep.subr.mxu0 0.0
    %2049 = vmatpush1.msra.mxu0 0.0
    %2050 = vmatprep.subr.mxu0 0.0
    %2051 = vmatpush1.msra.mxu0 0.0
    %2052 = vmatprep.subr.mxu0 0.0
    %2053 = vmatpush1.msra.mxu0 0.0
    %2054 = vmatprep.subr.mxu0 0.0
    %2055 = vmatpush1.msra.mxu0 0.0
    %2056 = vmatprep.subr.mxu0 0.0
    %2057 = vmatpush1.msra.mxu0 0.0
    %2058 = vmatprep.subr.mxu0 0.0
    %2059 = vmatpush1.msra.mxu0 0.0
    %2060 = vmatprep.subr.mxu0 0.0
    %2061 = vmatpush1.msra.mxu0 0.0
    %2062 = vmatprep.subr.mxu0 0.0
    %2063 = vmatpush1.msra.mxu0 0.0
    %2064 = vmatprep.subr.mxu0 0.0
    %2065 = vmatpush1.msra.mxu0 0.0
    %2066 = vmatprep.subr.mxu0 0.0
    %2067 = vmatpush1.msra.mxu0 0.0
    %2068 = vmatprep.subr.mxu0 0.0
    %2069 = vmatpush1.msra.mxu0 0.0
    %2070 = vmatprep.subr.mxu0 0.0
    %2071 = vmatpush1.msra.mxu0 0.0
    %2072 = vmatprep.subr.mxu0 0.0
    %2073 = vmatpush1.msra.mxu0 0.0
    %2074 = vmatprep.subr.mxu0 0.0
    %2075 = vmatpush1.msra.mxu0 0.0
    %2076 = vmatprep.subr.mxu0 0.0
    %2077 = vmatpush1.msra.mxu0 0.0
    %2078 = vmatprep.mubr.f32.mxu0 0.0
    %2079 = vmatmul.mubr.f32.gmra.mrb[0].mxu0 %v2012
    %v2080 = vpop.f32.mrb[0].mxu0
    %v2081 = vadd.f32 0.0, %v2080
    %v2082 = vpop.f32.mrb[0].mxu0
    %2083 = vdwg.mxu0
    %s2084 = scalar_lea.vmem %s2, 8
    %v2085 = vld [vmem:[%s2084] sm:$0xf]
    %v2087 = vsel %vm56, %v2008, 0
    %v2090 = vsel %vm56, %v2081, 0
    %v2093 = vsel %vm63, %v2085, 0
    %2095 = vmatprep.subr.mxu0 0.0
    %2096 = vmatpush1.msra.mxu0 %v2093
    %2097 = vmatprep.subr.mxu0 0.0
    %2098 = vmatpush1.msra.mxu0 0.0
    %2099 = vmatprep.subr.mxu0 0.0
    %2100 = vmatpush1.msra.mxu0 0.0
    %2101 = vmatprep.subr.mxu0 0.0
    %2102 = vmatpush1.msra.mxu0 0.0
    %2103 = vmatprep.subr.mxu0 0.0
    %2104 = vmatpush1.msra.mxu0 0.0
    %2105 = vmatprep.subr.mxu0 0.0
    %2106 = vmatpush1.msra.mxu0 0.0
    %2107 = vmatprep.subr.mxu0 0.0
    %2108 = vmatpush1.msra.mxu0 0.0
    %2109 = vmatprep.subr.mxu0 0.0
    %2110 = vmatpush1.msra.mxu0 0.0
    %2111 = vmatprep.subr.mxu0 0.0
    %2112 = vmatpush1.msra.mxu0 0.0
    %2113 = vmatprep.subr.mxu0 0.0
    %2114 = vmatpush1.msra.mxu0 0.0
    %2115 = vmatprep.subr.mxu0 0.0
    %2116 = vmatpush1.msra.mxu0 0.0
    %2117 = vmatprep.subr.mxu0 0.0
    %2118 = vmatpush1.msra.mxu0 0.0
    %2119 = vmatprep.subr.mxu0 0.0
    %2120 = vmatpush1.msra.mxu0 0.0
    %2121 = vmatprep.subr.mxu0 0.0
    %2122 = vmatpush1.msra.mxu0 0.0
    %2123 = vmatprep.subr.mxu0 0.0
    %2124 = vmatpush1.msra.mxu0 0.0
    %2125 = vmatprep.subr.mxu0 0.0
    %2126 = vmatpush1.msra.mxu0 0.0
    %2127 = vmatprep.subr.mxu0 0.0
    %2128 = vmatpush1.msra.mxu0 0.0
    %2129 = vmatprep.subr.mxu0 0.0
    %2130 = vmatpush1.msra.mxu0 0.0
    %2131 = vmatprep.subr.mxu0 0.0
    %2132 = vmatpush1.msra.mxu0 0.0
    %2133 = vmatprep.subr.mxu0 0.0
    %2134 = vmatpush1.msra.mxu0 0.0
    %2135 = vmatprep.subr.mxu0 0.0
    %2136 = vmatpush1.msra.mxu0 0.0
    %2137 = vmatprep.subr.mxu0 0.0
    %2138 = vmatpush1.msra.mxu0 0.0
    %2139 = vmatprep.subr.mxu0 0.0
    %2140 = vmatpush1.msra.mxu0 0.0
    %2141 = vmatprep.subr.mxu0 0.0
    %2142 = vmatpush1.msra.mxu0 0.0
    %2143 = vmatprep.subr.mxu0 0.0
    %2144 = vmatpush1.msra.mxu0 0.0
    %2145 = vmatprep.subr.mxu0 0.0
    %2146 = vmatpush1.msra.mxu0 0.0
    %2147 = vmatprep.subr.mxu0 0.0
    %2148 = vmatpush1.msra.mxu0 0.0
    %2149 = vmatprep.subr.mxu0 0.0
    %2150 = vmatpush1.msra.mxu0 0.0
    %2151 = vmatprep.subr.mxu0 0.0
    %2152 = vmatpush1.msra.mxu0 0.0
    %2153 = vmatprep.subr.mxu0 0.0
    %2154 = vmatpush1.msra.mxu0 0.0
    %2155 = vmatprep.subr.mxu0 0.0
    %2156 = vmatpush1.msra.mxu0 0.0
    %2157 = vmatprep.subr.mxu0 0.0
    %2158 = vmatpush1.msra.mxu0 0.0
    %2159 = vmatprep.mubr.f32.mxu0 0.0
    %2160 = vmatmul.mubr.f32.gmra.mrb[0].mxu0 %v2087
    %v2161 = vpop.f32.mrb[0].mxu0
    %v2162 = vadd.f32 0.0, %v2161
    %v2163 = vpop.f32.mrb[0].mxu0
    %2164 = vmatprep.mubr.f32.mxu0 0.0
    %2165 = vmatmul.mubr.f32.gmra.mrb[0].mxu0 %v2090
    %v2166 = vpop.f32.mrb[0].mxu0
    %v2167 = vadd.f32 0.0, %v2166
    %v2168 = vpop.f32.mrb[0].mxu0
    %2169 = vdwg.mxu0
    %v2170 = vlaneseq
    %v2171 = vshrl.u32 %v2170, 7
    %v2172 = vsub.s32 1, %v2171
    %v2173 = vrot.slane %v1572, %v2172
    %v2174 = vadd.f32 %v2162, %v2173
    %v2175 = vadd.f32 %v2167, %v2173
    %v2176 = vmul.f32 %v2174, 0.5
    %v2177 = vmul.f32 %v2175, 0.5
    %v2178 = vtanh.pop %v2176
    %v2179 = vtanh.pop %v2177
    %v2180 = vadd.f32 %v2178, 1.0
    %v2181 = vadd.f32 %v2179, 1.0
    %v2182 = vmul.f32 %v2180, 0.5
    %v2183 = vmul.f32 %v2181, 0.5
    %v2184 = vlaneseq
    %v2185 = vshrl.u32 %v2184, 7
    %v2186 = vsub.s32 2, %v2185
    %v2187 = vrot.slane %v1572, %v2186
    %2189 = vrot.lane.b32.xlu0 %v2187, 32
    %v2190 = vpop.permute.xlu0 %2189
    %v2192 = vadd.f32 %v2162, %v2190
    %v2193 = vadd.f32 %v2167, %v2190
    %v2194 = vmul.f32 %v2192, 0.5
    %v2195 = vmul.f32 %v2193, 0.5
    %v2196 = vtanh.pop %v2194
    %v2197 = vtanh.pop %v2195
    %v2198 = vadd.f32 %v2196, 1.0
    %v2199 = vadd.f32 %v2197, 1.0
    %v2200 = vmul.f32 %v2198, 0.5
    %v2201 = vmul.f32 %v2199, 0.5
    %v2204 = vmul.f32 %v2182, %v1676
    %v2205 = vmul.f32 %v2183, %v1678
    %v2207 = vsel %vm156, %v2204, 0
    %v2210 = vsel %vm156, %v2205, 0
    %2212 = vmatprep.subr.mxu0 0.0
    %2213 = vmatpush1.msra.mxu0 %v1567
    %2214 = vmatprep.subr.mxu0 0.0
    %2215 = vmatpush1.msra.mxu0 %v1568
    %2216 = vmatprep.subr.mxu0 0.0
    %2217 = vmatpush1.msra.mxu0 %v1569
    %2218 = vmatprep.subr.mxu0 0.0
    %2219 = vmatpush1.msra.mxu0 %v1570
    %2220 = vmatprep.subr.mxu0 0.0
    %2221 = vmatpush1.msra.mxu0 0.0
    %2222 = vmatprep.subr.mxu0 0.0
    %2223 = vmatpush1.msra.mxu0 0.0
    %2224 = vmatprep.subr.mxu0 0.0
    %2225 = vmatpush1.msra.mxu0 0.0
    %2226 = vmatprep.subr.mxu0 0.0
    %2227 = vmatpush1.msra.mxu0 0.0
    %2228 = vmatprep.subr.mxu0 0.0
    %2229 = vmatpush1.msra.mxu0 0.0
    %2230 = vmatprep.subr.mxu0 0.0
    %2231 = vmatpush1.msra.mxu0 0.0
    %2232 = vmatprep.subr.mxu0 0.0
    %2233 = vmatpush1.msra.mxu0 0.0
    %2234 = vmatprep.subr.mxu0 0.0
    %2235 = vmatpush1.msra.mxu0 0.0
    %2236 = vmatprep.subr.mxu0 0.0
    %2237 = vmatpush1.msra.mxu0 0.0
    %2238 = vmatprep.subr.mxu0 0.0
    %2239 = vmatpush1.msra.mxu0 0.0
    %2240 = vmatprep.subr.mxu0 0.0
    %2241 = vmatpush1.msra.mxu0 0.0
    %2242 = vmatprep.subr.mxu0 0.0
    %2243 = vmatpush1.msra.mxu0 0.0
    %2244 = vmatprep.subr.mxu0 0.0
    %2245 = vmatpush1.msra.mxu0 0.0
    %2246 = vmatprep.subr.mxu0 0.0
    %2247 = vmatpush1.msra.mxu0 0.0
    %2248 = vmatprep.subr.mxu0 0.0
    %2249 = vmatpush1.msra.mxu0 0.0
    %2250 = vmatprep.subr.mxu0 0.0
    %2251 = vmatpush1.msra.mxu0 0.0
    %2252 = vmatprep.subr.mxu0 0.0
    %2253 = vmatpush1.msra.mxu0 0.0
    %2254 = vmatprep.subr.mxu0 0.0
    %2255 = vmatpush1.msra.mxu0 0.0
    %2256 = vmatprep.subr.mxu0 0.0
    %2257 = vmatpush1.msra.mxu0 0.0
    %2258 = vmatprep.subr.mxu0 0.0
    %2259 = vmatpush1.msra.mxu0 0.0
    %2260 = vmatprep.subr.mxu0 0.0
    %2261 = vmatpush1.msra.mxu0 0.0
    %2262 = vmatprep.subr.mxu0 0.0
    %2263 = vmatpush1.msra.mxu0 0.0
    %2264 = vmatprep.subr.mxu0 0.0
    %2265 = vmatpush1.msra.mxu0 0.0
    %2266 = vmatprep.subr.mxu0 0.0
    %2267 = vmatpush1.msra.mxu0 0.0
    %2268 = vmatprep.subr.mxu0 0.0
    %2269 = vmatpush1.msra.mxu0 0.0
    %2270 = vmatprep.subr.mxu0 0.0
    %2271 = vmatpush1.msra.mxu0 0.0
    %2272 = vmatprep.subr.mxu0 0.0
    %2273 = vmatpush1.msra.mxu0 0.0
    %2274 = vmatprep.subr.mxu0 0.0
    %2275 = vmatpush1.msra.mxu0 0.0
    %2276 = vmatprep.mubr.f32.mxu0 0.0
    %2277 = vmatmul.mubr.f32.gmra.mrb[0].mxu0 %v2207
    %v2278 = vpop.f32.mrb[0].mxu0
    %v2279 = vadd.f32 0.0, %v2278
    %v2280 = vpop.f32.mrb[0].mxu0
    %2281 = vmatprep.mubr.f32.mxu0 0.0
    %2282 = vmatmul.mubr.f32.gmra.mrb[0].mxu0 %v2210
    %v2283 = vpop.f32.mrb[0].mxu0
    %v2284 = vadd.f32 0.0, %v2283
    %v2285 = vpop.f32.mrb[0].mxu0
    %2286 = vdwg.mxu0
    %2289 = vrot.lane.b32.xlu0 %v2279, 32
    %v2290 = vpop.permute.xlu0 %2289
    %2291 = vrot.lane.b32.xlu0 %v2284, 32
    %v2292 = vpop.permute.xlu0 %2291
    %v2295 = vadd.f32 %v1667, %v2290
    %v2296 = vadd.f32 %v1668, %v2292
    %v2297 = vlaneseq
    %v2298 = vshrl.u32 %v2297, 7
    %v2299 = vsub.s32 4, %v2298
    %v2300 = vrot.slane %v1572, %v2299
    %2302 = vrot.lane.b32.xlu0 %v2300, 32
    %v2303 = vpop.permute.xlu0 %2302
    %v2305 = vadd.f32 %v2295, %v2303
    %v2306 = vadd.f32 %v2296, %v2303
    %v2307 = vtanh.pop %v2305
    %v2308 = vtanh.pop %v2306
    %v2309 = vmul.f32 %v2200, %v1557
    %v2310 = vmul.f32 %v2201, %v1558
    %v2311 = vsub.f32 1.0, %v2200
    %v2312 = vsub.f32 1.0, %v2201
    %v2313 = vmul.f32 %v2311, %v2307
    %v2314 = vmul.f32 %v2312, %v2308
    %v2315 = vadd.f32 %v2309, %v2313
    %v2316 = vadd.f32 %v2310, %v2314
    %s2317 = scalar_lea.vmem %s0, 48
    %v2318 = vld [vmem:[%s2317] sm:$0xff]
    %v2319 = vld [vmem:[%s2317 + $0x8] sm:$0xff]
    %s2320 = scalar_lea.vmem [#allocation2], 192
    %v2321 = vld [vmem:[%s2320] sm:$0xff]
    %v2322 = vld [vmem:[%s2320 + $0x8] sm:$0xff]
    %v2323 = vld [vmem:[%s2320 + $0x10] sm:$0xff]
    %v2324 = vld [vmem:[%s2320 + $0x18] sm:$0xff]
    %v2325 = vld [vmem:[%s2320 + $0x20] sm:$0xff]
    %v2326 = vld [vmem:[%s2320 + $0x28] sm:$0xff]
    %v2327 = vld [vmem:[%s2320 + $0x30] sm:$0xff]
    %v2328 = vld [vmem:[%s2320 + $0x38] sm:$0xff]
    %s2329 = scalar_lea.vmem %s4, 24
    %v2330 = vld [vmem:[%s2329] sm:$0x1f]
    %s2331 = scalar_lea.vmem %s1, 12
    %v2332 = vld [vmem:[%s2331] sm:$0xf]
    %v2334 = vsel %vm56, %v2318, 0
    %v2337 = vsel %vm56, %v2319, 0
    %v2340 = vsel %vm63, %v2332, 0
    %2342 = vmatprep.subr.mxu0 0.0
    %2343 = vmatpush1.msra.mxu0 %v2340
    %2344 = vmatprep.subr.mxu0 0.0
    %2345 = vmatpush1.msra.mxu0 0.0
    %2346 = vmatprep.subr.mxu0 0.0
    %2347 = vmatpush1.msra.mxu0 0.0
    %2348 = vmatprep.subr.mxu0 0.0
    %2349 = vmatpush1.msra.mxu0 0.0
    %2350 = vmatprep.subr.mxu0 0.0
    %2351 = vmatpush1.msra.mxu0 0.0
    %2352 = vmatprep.subr.mxu0 0.0
    %2353 = vmatpush1.msra.mxu0 0.0
    %2354 = vmatprep.subr.mxu0 0.0
    %2355 = vmatpush1.msra.mxu0 0.0
    %2356 = vmatprep.subr.mxu0 0.0
    %2357 = vmatpush1.msra.mxu0 0.0
    %2358 = vmatprep.subr.mxu0 0.0
    %2359 = vmatpush1.msra.mxu0 0.0
    %2360 = vmatprep.subr.mxu0 0.0
    %2361 = vmatpush1.msra.mxu0 0.0
    %2362 = vmatprep.subr.mxu0 0.0
    %2363 = vmatpush1.msra.mxu0 0.0
    %2364 = vmatprep.subr.mxu0 0.0
    %2365 = vmatpush1.msra.mxu0 0.0
    %2366 = vmatprep.subr.mxu0 0.0
    %2367 = vmatpush1.msra.mxu0 0.0
    %2368 = vmatprep.subr.mxu0 0.0
    %2369 = vmatpush1.msra.mxu0 0.0
    %2370 = vmatprep.subr.mxu0 0.0
    %2371 = vmatpush1.msra.mxu0 0.0
    %2372 = vmatprep.subr.mxu0 0.0
    %2373 = vmatpush1.msra.mxu0 0.0
    %2374 = vmatprep.subr.mxu0 0.0
    %2375 = vmatpush1.msra.mxu0 0.0
    %2376 = vmatprep.subr.mxu0 0.0
    %2377 = vmatpush1.msra.mxu0 0.0
    %2378 = vmatprep.subr.mxu0 0.0
    %2379 = vmatpush1.msra.mxu0 0.0
    %2380 = vmatprep.subr.mxu0 0.0
    %2381 = vmatpush1.msra.mxu0 0.0
    %2382 = vmatprep.subr.mxu0 0.0
    %2383 = vmatpush1.msra.mxu0 0.0
    %2384 = vmatprep.subr.mxu0 0.0
    %2385 = vmatpush1.msra.mxu0 0.0
    %2386 = vmatprep.subr.mxu0 0.0
    %2387 = vmatpush1.msra.mxu0 0.0
    %2388 = vmatprep.subr.mxu0 0.0
    %2389 = vmatpush1.msra.mxu0 0.0
    %2390 = vmatprep.subr.mxu0 0.0
    %2391 = vmatpush1.msra.mxu0 0.0
    %2392 = vmatprep.subr.mxu0 0.0
    %2393 = vmatpush1.msra.mxu0 0.0
    %2394 = vmatprep.subr.mxu0 0.0
    %2395 = vmatpush1.msra.mxu0 0.0
    %2396 = vmatprep.subr.mxu0 0.0
    %2397 = vmatpush1.msra.mxu0 0.0
    %2398 = vmatprep.subr.mxu0 0.0
    %2399 = vmatpush1.msra.mxu0 0.0
    %2400 = vmatprep.subr.mxu0 0.0
    %2401 = vmatpush1.msra.mxu0 0.0
    %2402 = vmatprep.subr.mxu0 0.0
    %2403 = vmatpush1.msra.mxu0 0.0
    %2404 = vmatprep.subr.mxu0 0.0
    %2405 = vmatpush1.msra.mxu0 0.0
    %2406 = vmatprep.mubr.f32.mxu0 0.0
    %2407 = vmatmul.mubr.f32.gmra.mrb[0].mxu0 %v2334
    %v2408 = vpop.f32.mrb[0].mxu0
    %v2409 = vadd.f32 0.0, %v2408
    %v2410 = vpop.f32.mrb[0].mxu0
    %2411 = vmatprep.mubr.f32.mxu0 0.0
    %2412 = vmatmul.mubr.f32.gmra.mrb[0].mxu0 %v2337
    %v2413 = vpop.f32.mrb[0].mxu0
    %v2414 = vadd.f32 0.0, %v2413
    %v2415 = vpop.f32.mrb[0].mxu0
    %2416 = vdwg.mxu0
    %v2417 = vlaneseq
    %v2418 = vshrl.u32 %v2417, 7
    %v2419 = vsub.s32 3, %v2418
    %v2420 = vrot.slane %v2330, %v2419
    %2422 = vrot.lane.b32.xlu0 %v2420, 32
    %v2423 = vpop.permute.xlu0 %2422
    %v2425 = vadd.f32 %v2409, %v2423
    %v2426 = vadd.f32 %v2414, %v2423
    %v2427 = vlaneseq
    %v2428 = vshrl.u32 %v2427, 7
    %v2429 = vsub.s32 0, %v2428
    %v2430 = vrot.slane %v2330, %v2429
    %2433 = vrot.lane.b32.xlu0 %v2315, 96
    %v2434 = vpop.permute.xlu0 %2433
    %2435 = vrot.lane.b32.xlu0 %v2316, 96
    %v2436 = vpop.permute.xlu0 %2435
    %v2437 = vsel %vm156, %v2434, 0
    %v2439 = vsel %vm156, %v2436, 0
    %2441 = vmatprep.subr.mxu0 0.0
    %2442 = vmatpush1.msra.mxu0 %v2321
    %2443 = vmatprep.subr.mxu0 0.0
    %2444 = vmatpush1.msra.mxu0 %v2322
    %2445 = vmatprep.subr.mxu0 0.0
    %2446 = vmatpush1.msra.mxu0 %v2323
    %2447 = vmatprep.subr.mxu0 0.0
    %2448 = vmatpush1.msra.mxu0 %v2324
    %2449 = vmatprep.subr.mxu0 0.0
    %2450 = vmatpush1.msra.mxu0 0.0
    %2451 = vmatprep.subr.mxu0 0.0
    %2452 = vmatpush1.msra.mxu0 0.0
    %2453 = vmatprep.subr.mxu0 0.0
    %2454 = vmatpush1.msra.mxu0 0.0
    %2455 = vmatprep.subr.mxu0 0.0
    %2456 = vmatpush1.msra.mxu0 0.0
    %2457 = vmatprep.subr.mxu0 0.0
    %2458 = vmatpush1.msra.mxu0 0.0
    %2459 = vmatprep.subr.mxu0 0.0
    %2460 = vmatpush1.msra.mxu0 0.0
    %2461 = vmatprep.subr.mxu0 0.0
    %2462 = vmatpush1.msra.mxu0 0.0
    %2463 = vmatprep.subr.mxu0 0.0
    %2464 = vmatpush1.msra.mxu0 0.0
    %2465 = vmatprep.subr.mxu0 0.0
    %2466 = vmatpush1.msra.mxu0 0.0
    %2467 = vmatprep.subr.mxu0 0.0
    %2468 = vmatpush1.msra.mxu0 0.0
    %2469 = vmatprep.subr.mxu0 0.0
    %2470 = vmatpush1.msra.mxu0 0.0
    %2471 = vmatprep.subr.mxu0 0.0
    %2472 = vmatpush1.msra.mxu0 0.0
    %2473 = vmatprep.subr.mxu0 0.0
    %2474 = vmatpush1.msra.mxu0 0.0
    %2475 = vmatprep.subr.mxu0 0.0
    %2476 = vmatpush1.msra.mxu0 0.0
    %2477 = vmatprep.subr.mxu0 0.0
    %2478 = vmatpush1.msra.mxu0 0.0
    %2479 = vmatprep.subr.mxu0 0.0
    %2480 = vmatpush1.msra.mxu0 0.0
    %2481 = vmatprep.subr.mxu0 0.0
    %2482 = vmatpush1.msra.mxu0 0.0
    %2483 = vmatprep.subr.mxu0 0.0
    %2484 = vmatpush1.msra.mxu0 0.0
    %2485 = vmatprep.subr.mxu0 0.0
    %2486 = vmatpush1.msra.mxu0 0.0
    %2487 = vmatprep.subr.mxu0 0.0
    %2488 = vmatpush1.msra.mxu0 0.0
    %2489 = vmatprep.subr.mxu0 0.0
    %2490 = vmatpush1.msra.mxu0 0.0
    %2491 = vmatprep.subr.mxu0 0.0
    %2492 = vmatpush1.msra.mxu0 0.0
    %2493 = vmatprep.subr.mxu0 0.0
    %2494 = vmatpush1.msra.mxu0 0.0
    %2495 = vmatprep.subr.mxu0 0.0
    %2496 = vmatpush1.msra.mxu0 0.0
    %2497 = vmatprep.subr.mxu0 0.0
    %2498 = vmatpush1.msra.mxu0 0.0
    %2499 = vmatprep.subr.mxu0 0.0
    %2500 = vmatpush1.msra.mxu0 0.0
    %2501 = vmatprep.subr.mxu0 0.0
    %2502 = vmatpush1.msra.mxu0 0.0
    %2503 = vmatprep.subr.mxu0 0.0
    %2504 = vmatpush1.msra.mxu0 0.0
    %2505 = vmatprep.mubr.f32.mxu0 0.0
    %2506 = vmatmul.mubr.f32.gmra.mrb[0].mxu0 %v2437
    %v2507 = vpop.f32.mrb[0].mxu0
    %v2508 = vadd.f32 %v2430, %v2507
    %v2509 = vpop.f32.mrb[0].mxu0
    %2510 = vmatprep.mubr.f32.mxu0 0.0
    %2511 = vmatmul.mubr.f32.gmra.mrb[0].mxu0 %v2439
    %v2512 = vpop.f32.mrb[0].mxu0
    %v2513 = vadd.f32 %v2430, %v2512
    %v2514 = vpop.f32.mrb[0].mxu0
    %2515 = vdwg.mxu0
    %v2517 = vsel %vm156, %v2409, 0
    %v2520 = vsel %vm156, %v2508, 0
    %2522 = vmatprep.subr.mxu0 0.0
    %2523 = vmatpush1.xpose.msra.mxu0 %v2520
    %2524 = vmatprep.subr.mxu0 0.0
    %2525 = vmatpush1.xpose.msra.mxu0 0.0
    %2526 = vmatprep.subr.mxu0 0.0
    %2527 = vmatpush1.xpose.msra.mxu0 0.0
    %2528 = vmatprep.subr.mxu0 0.0
    %2529 = vmatpush1.xpose.msra.mxu0 0.0
    %2530 = vmatprep.subr.mxu0 0.0
    %2531 = vmatpush1.xpose.msra.mxu0 0.0
    %2532 = vmatprep.subr.mxu0 0.0
    %2533 = vmatpush1.xpose.msra.mxu0 0.0
    %2534 = vmatprep.subr.mxu0 0.0
    %2535 = vmatpush1.xpose.msra.mxu0 0.0
    %2536 = vmatprep.subr.mxu0 0.0
    %2537 = vmatpush1.xpose.msra.mxu0 0.0
    %2538 = vmatprep.subr.mxu0 0.0
    %2539 = vmatpush1.xpose.msra.mxu0 0.0
    %2540 = vmatprep.subr.mxu0 0.0
    %2541 = vmatpush1.xpose.msra.mxu0 0.0
    %2542 = vmatprep.subr.mxu0 0.0
    %2543 = vmatpush1.xpose.msra.mxu0 0.0
    %2544 = vmatprep.subr.mxu0 0.0
    %2545 = vmatpush1.xpose.msra.mxu0 0.0
    %2546 = vmatprep.subr.mxu0 0.0
    %2547 = vmatpush1.xpose.msra.mxu0 0.0
    %2548 = vmatprep.subr.mxu0 0.0
    %2549 = vmatpush1.xpose.msra.mxu0 0.0
    %2550 = vmatprep.subr.mxu0 0.0
    %2551 = vmatpush1.xpose.msra.mxu0 0.0
    %2552 = vmatprep.subr.mxu0 0.0
    %2553 = vmatpush1.xpose.msra.mxu0 0.0
    %2554 = vmatprep.subr.mxu0 0.0
    %2555 = vmatpush1.xpose.msra.mxu0 0.0
    %2556 = vmatprep.subr.mxu0 0.0
    %2557 = vmatpush1.xpose.msra.mxu0 0.0
    %2558 = vmatprep.subr.mxu0 0.0
    %2559 = vmatpush1.xpose.msra.mxu0 0.0
    %2560 = vmatprep.subr.mxu0 0.0
    %2561 = vmatpush1.xpose.msra.mxu0 0.0
    %2562 = vmatprep.subr.mxu0 0.0
    %2563 = vmatpush1.xpose.msra.mxu0 0.0
    %2564 = vmatprep.subr.mxu0 0.0
    %2565 = vmatpush1.xpose.msra.mxu0 0.0
    %2566 = vmatprep.subr.mxu0 0.0
    %2567 = vmatpush1.xpose.msra.mxu0 0.0
    %2568 = vmatprep.subr.mxu0 0.0
    %2569 = vmatpush1.xpose.msra.mxu0 0.0
    %2570 = vmatprep.subr.mxu0 0.0
    %2571 = vmatpush1.xpose.msra.mxu0 0.0
    %2572 = vmatprep.subr.mxu0 0.0
    %2573 = vmatpush1.xpose.msra.mxu0 0.0
    %2574 = vmatprep.subr.mxu0 0.0
    %2575 = vmatpush1.xpose.msra.mxu0 0.0
    %2576 = vmatprep.subr.mxu0 0.0
    %2577 = vmatpush1.xpose.msra.mxu0 0.0
    %2578 = vmatprep.subr.mxu0 0.0
    %2579 = vmatpush1.xpose.msra.mxu0 0.0
    %2580 = vmatprep.subr.mxu0 0.0
    %2581 = vmatpush1.xpose.msra.mxu0 0.0
    %2582 = vmatprep.subr.mxu0 0.0
    %2583 = vmatpush1.xpose.msra.mxu0 0.0
    %2584 = vmatprep.subr.mxu0 0.0
    %2585 = vmatpush1.xpose.msra.mxu0 0.0
    %2586 = vmatprep.mubr.f32.mxu0 0.0
    %2587 = vmatmul.mubr.f32.gmra.mrb[0].mxu0 %v2517
    %v2588 = vpop.f32.mrb[0].mxu0
    %v2589 = vadd.f32 0.0, %v2588
    %v2590 = vpop.f32.mrb[0].mxu0
    %2591 = vdwg.mxu0
    %v2593 = vsel %vm156, %v2414, 0
    %v2596 = vsel %vm156, %v2513, 0
    %2598 = vmatprep.subr.mxu0 0.0
    %2599 = vmatpush1.xpose.msra.mxu0 %v2596
    %2600 = vmatprep.subr.mxu0 0.0
    %2601 = vmatpush1.xpose.msra.mxu0 0.0
    %2602 = vmatprep.subr.mxu0 0.0
    %2603 = vmatpush1.xpose.msra.mxu0 0.0
    %2604 = vmatprep.subr.mxu0 0.0
    %2605 = vmatpush1.xpose.msra.mxu0 0.0
    %2606 = vmatprep.subr.mxu0 0.0
    %2607 = vmatpush1.xpose.msra.mxu0 0.0
    %2608 = vmatprep.subr.mxu0 0.0
    %2609 = vmatpush1.xpose.msra.mxu0 0.0
    %2610 = vmatprep.subr.mxu0 0.0
    %2611 = vmatpush1.xpose.msra.mxu0 0.0
    %2612 = vmatprep.subr.mxu0 0.0
    %2613 = vmatpush1.xpose.msra.mxu0 0.0
    %2614 = vmatprep.subr.mxu0 0.0
    %2615 = vmatpush1.xpose.msra.mxu0 0.0
    %2616 = vmatprep.subr.mxu0 0.0
    %2617 = vmatpush1.xpose.msra.mxu0 0.0
    %2618 = vmatprep.subr.mxu0 0.0
    %2619 = vmatpush1.xpose.msra.mxu0 0.0
    %2620 = vmatprep.subr.mxu0 0.0
    %2621 = vmatpush1.xpose.msra.mxu0 0.0
    %2622 = vmatprep.subr.mxu0 0.0
    %2623 = vmatpush1.xpose.msra.mxu0 0.0
    %2624 = vmatprep.subr.mxu0 0.0
    %2625 = vmatpush1.xpose.msra.mxu0 0.0
    %2626 = vmatprep.subr.mxu0 0.0
    %2627 = vmatpush1.xpose.msra.mxu0 0.0
    %2628 = vmatprep.subr.mxu0 0.0
    %2629 = vmatpush1.xpose.msra.mxu0 0.0
    %2630 = vmatprep.subr.mxu0 0.0
    %2631 = vmatpush1.xpose.msra.mxu0 0.0
    %2632 = vmatprep.subr.mxu0 0.0
    %2633 = vmatpush1.xpose.msra.mxu0 0.0
    %2634 = vmatprep.subr.mxu0 0.0
    %2635 = vmatpush1.xpose.msra.mxu0 0.0
    %2636 = vmatprep.subr.mxu0 0.0
    %2637 = vmatpush1.xpose.msra.mxu0 0.0
    %2638 = vmatprep.subr.mxu0 0.0
    %2639 = vmatpush1.xpose.msra.mxu0 0.0
    %2640 = vmatprep.subr.mxu0 0.0
    %2641 = vmatpush1.xpose.msra.mxu0 0.0
    %2642 = vmatprep.subr.mxu0 0.0
    %2643 = vmatpush1.xpose.msra.mxu0 0.0
    %2644 = vmatprep.subr.mxu0 0.0
    %2645 = vmatpush1.xpose.msra.mxu0 0.0
    %2646 = vmatprep.subr.mxu0 0.0
    %2647 = vmatpush1.xpose.msra.mxu0 0.0
    %2648 = vmatprep.subr.mxu0 0.0
    %2649 = vmatpush1.xpose.msra.mxu0 0.0
    %2650 = vmatprep.subr.mxu0 0.0
    %2651 = vmatpush1.xpose.msra.mxu0 0.0
    %2652 = vmatprep.subr.mxu0 0.0
    %2653 = vmatpush1.xpose.msra.mxu0 0.0
    %2654 = vmatprep.subr.mxu0 0.0
    %2655 = vmatpush1.xpose.msra.mxu0 0.0
    %2656 = vmatprep.subr.mxu0 0.0
    %2657 = vmatpush1.xpose.msra.mxu0 0.0
    %2658 = vmatprep.subr.mxu0 0.0
    %2659 = vmatpush1.xpose.msra.mxu0 0.0
    %2660 = vmatprep.subr.mxu0 0.0
    %2661 = vmatpush1.xpose.msra.mxu0 0.0
    %2662 = vmatprep.mubr.f32.mxu0 0.0
    %2663 = vmatmul.mubr.f32.gmra.mrb[0].mxu0 %v2593
    %v2664 = vpop.f32.mrb[0].mxu0
    %v2665 = vadd.f32 0.0, %v2664
    %v2666 = vpop.f32.mrb[0].mxu0
    %2667 = vdwg.mxu0
    %vm2668 = vcmp.ge.f32.partialorder %v2589, 0.0
    %vm2669 = vcmp.ge.f32.partialorder %v2665, 0.0
    %v2670 = vmul.f32 %v2589, 0.01
    %v2671 = vmul.f32 %v2665, 0.01
    %v2672 = vsel %vm2668, %v2589, %v2670
    %v2673 = vsel %vm2669, %v2665, %v2671
    %v2674 = vsel %vm396, %v2672, -inf
    %2675 = vmax.xlane.f32.xlu0 %v2674
    %v2676 = vpop.xlane.xlu0 %2675
    %v2677 = vsel %vm396, %v2673, -inf
    %2678 = vmax.xlane.f32.xlu0 %v2677
    %v2679 = vpop.xlane.xlu0 %2678
    %v2680 = vsub.f32 %v2672, %v2676
    %v2681 = vsub.f32 %v2673, %v2679
    %v2682 = vmul.f32 %v2680, 1.442695
    %v2683 = vpow.pop %v2682
    %v2684 = vmul.f32 %v2681, 1.442695
    %v2685 = vpow.pop %v2684
    %v2686 = vsel %vm396, %v2683, 0.0
    %2687 = vadd.xlane.f32.xlu0 %v2686
    %v2688 = vpop.xlane.xlu0 %2687
    %v2689 = vsel %vm396, %v2685, 0.0
    %2690 = vadd.xlane.f32.xlu0 %v2689
    %v2691 = vpop.xlane.xlu0 %2690
    %v2692 = vrcp.pop %v2688
    %v2693 = vrcp.pop %v2691
    %v2694 = vmul.f32 %v2683, %v2692
    %v2695 = vmul.f32 %v2685, %v2693
    %v2697 = vsel %vm396, %v2694, 0
    %2699 = vmatprep.subr.mxu0 0.0
    %2700 = vmatpush1.msra.mxu0 %v2318
    %2701 = vmatprep.subr.mxu0 0.0
    %2702 = vmatpush1.msra.mxu0 0.0
    %2703 = vmatprep.subr.mxu0 0.0
    %2704 = vmatpush1.msra.mxu0 0.0
    %2705 = vmatprep.subr.mxu0 0.0
    %2706 = vmatpush1.msra.mxu0 0.0
    %2707 = vmatprep.subr.mxu0 0.0
    %2708 = vmatpush1.msra.mxu0 0.0
    %2709 = vmatprep.subr.mxu0 0.0
    %2710 = vmatpush1.msra.mxu0 0.0
    %2711 = vmatprep.subr.mxu0 0.0
    %2712 = vmatpush1.msra.mxu0 0.0
    %2713 = vmatprep.subr.mxu0 0.0
    %2714 = vmatpush1.msra.mxu0 0.0
    %2715 = vmatprep.subr.mxu0 0.0
    %2716 = vmatpush1.msra.mxu0 0.0
    %2717 = vmatprep.subr.mxu0 0.0
    %2718 = vmatpush1.msra.mxu0 0.0
    %2719 = vmatprep.subr.mxu0 0.0
    %2720 = vmatpush1.msra.mxu0 0.0
    %2721 = vmatprep.subr.mxu0 0.0
    %2722 = vmatpush1.msra.mxu0 0.0
    %2723 = vmatprep.subr.mxu0 0.0
    %2724 = vmatpush1.msra.mxu0 0.0
    %2725 = vmatprep.subr.mxu0 0.0
    %2726 = vmatpush1.msra.mxu0 0.0
    %2727 = vmatprep.subr.mxu0 0.0
    %2728 = vmatpush1.msra.mxu0 0.0
    %2729 = vmatprep.subr.mxu0 0.0
    %2730 = vmatpush1.msra.mxu0 0.0
    %2731 = vmatprep.subr.mxu0 0.0
    %2732 = vmatpush1.msra.mxu0 0.0
    %2733 = vmatprep.subr.mxu0 0.0
    %2734 = vmatpush1.msra.mxu0 0.0
    %2735 = vmatprep.subr.mxu0 0.0
    %2736 = vmatpush1.msra.mxu0 0.0
    %2737 = vmatprep.subr.mxu0 0.0
    %2738 = vmatpush1.msra.mxu0 0.0
    %2739 = vmatprep.subr.mxu0 0.0
    %2740 = vmatpush1.msra.mxu0 0.0
    %2741 = vmatprep.subr.mxu0 0.0
    %2742 = vmatpush1.msra.mxu0 0.0
    %2743 = vmatprep.subr.mxu0 0.0
    %2744 = vmatpush1.msra.mxu0 0.0
    %2745 = vmatprep.subr.mxu0 0.0
    %2746 = vmatpush1.msra.mxu0 0.0
    %2747 = vmatprep.subr.mxu0 0.0
    %2748 = vmatpush1.msra.mxu0 0.0
    %2749 = vmatprep.subr.mxu0 0.0
    %2750 = vmatpush1.msra.mxu0 0.0
    %2751 = vmatprep.subr.mxu0 0.0
    %2752 = vmatpush1.msra.mxu0 0.0
    %2753 = vmatprep.subr.mxu0 0.0
    %2754 = vmatpush1.msra.mxu0 0.0
    %2755 = vmatprep.subr.mxu0 0.0
    %2756 = vmatpush1.msra.mxu0 0.0
    %2757 = vmatprep.subr.mxu0 0.0
    %2758 = vmatpush1.msra.mxu0 0.0
    %2759 = vmatprep.subr.mxu0 0.0
    %2760 = vmatpush1.msra.mxu0 0.0
    %2761 = vmatprep.subr.mxu0 0.0
    %2762 = vmatpush1.msra.mxu0 0.0
    %2763 = vmatprep.mubr.f32.mxu0 0.0
    %2764 = vmatmul.mubr.f32.gmra.mrb[0].mxu0 %v2697
    %v2765 = vpop.f32.mrb[0].mxu0
    %v2766 = vadd.f32 0.0, %v2765
    %v2767 = vpop.f32.mrb[0].mxu0
    %2768 = vdwg.mxu0
    %v2770 = vsel %vm396, %v2695, 0
    %2772 = vmatprep.subr.mxu0 0.0
    %2773 = vmatpush1.msra.mxu0 %v2319
    %2774 = vmatprep.subr.mxu0 0.0
    %2775 = vmatpush1.msra.mxu0 0.0
    %2776 = vmatprep.subr.mxu0 0.0
    %2777 = vmatpush1.msra.mxu0 0.0
    %2778 = vmatprep.subr.mxu0 0.0
    %2779 = vmatpush1.msra.mxu0 0.0
    %2780 = vmatprep.subr.mxu0 0.0
    %2781 = vmatpush1.msra.mxu0 0.0
    %2782 = vmatprep.subr.mxu0 0.0
    %2783 = vmatpush1.msra.mxu0 0.0
    %2784 = vmatprep.subr.mxu0 0.0
    %2785 = vmatpush1.msra.mxu0 0.0
    %2786 = vmatprep.subr.mxu0 0.0
    %2787 = vmatpush1.msra.mxu0 0.0
    %2788 = vmatprep.subr.mxu0 0.0
    %2789 = vmatpush1.msra.mxu0 0.0
    %2790 = vmatprep.subr.mxu0 0.0
    %2791 = vmatpush1.msra.mxu0 0.0
    %2792 = vmatprep.subr.mxu0 0.0
    %2793 = vmatpush1.msra.mxu0 0.0
    %2794 = vmatprep.subr.mxu0 0.0
    %2795 = vmatpush1.msra.mxu0 0.0
    %2796 = vmatprep.subr.mxu0 0.0
    %2797 = vmatpush1.msra.mxu0 0.0
    %2798 = vmatprep.subr.mxu0 0.0
    %2799 = vmatpush1.msra.mxu0 0.0
    %2800 = vmatprep.subr.mxu0 0.0
    %2801 = vmatpush1.msra.mxu0 0.0
    %2802 = vmatprep.subr.mxu0 0.0
    %2803 = vmatpush1.msra.mxu0 0.0
    %2804 = vmatprep.subr.mxu0 0.0
    %2805 = vmatpush1.msra.mxu0 0.0
    %2806 = vmatprep.subr.mxu0 0.0
    %2807 = vmatpush1.msra.mxu0 0.0
    %2808 = vmatprep.subr.mxu0 0.0
    %2809 = vmatpush1.msra.mxu0 0.0
    %2810 = vmatprep.subr.mxu0 0.0
    %2811 = vmatpush1.msra.mxu0 0.0
    %2812 = vmatprep.subr.mxu0 0.0
    %2813 = vmatpush1.msra.mxu0 0.0
    %2814 = vmatprep.subr.mxu0 0.0
    %2815 = vmatpush1.msra.mxu0 0.0
    %2816 = vmatprep.subr.mxu0 0.0
    %2817 = vmatpush1.msra.mxu0 0.0
    %2818 = vmatprep.subr.mxu0 0.0
    %2819 = vmatpush1.msra.mxu0 0.0
    %2820 = vmatprep.subr.mxu0 0.0
    %2821 = vmatpush1.msra.mxu0 0.0
    %2822 = vmatprep.subr.mxu0 0.0
    %2823 = vmatpush1.msra.mxu0 0.0
    %2824 = vmatprep.subr.mxu0 0.0
    %2825 = vmatpush1.msra.mxu0 0.0
    %2826 = vmatprep.subr.mxu0 0.0
    %2827 = vmatpush1.msra.mxu0 0.0
    %2828 = vmatprep.subr.mxu0 0.0
    %2829 = vmatpush1.msra.mxu0 0.0
    %2830 = vmatprep.subr.mxu0 0.0
    %2831 = vmatpush1.msra.mxu0 0.0
    %2832 = vmatprep.subr.mxu0 0.0
    %2833 = vmatpush1.msra.mxu0 0.0
    %2834 = vmatprep.subr.mxu0 0.0
    %2835 = vmatpush1.msra.mxu0 0.0
    %2836 = vmatprep.mubr.f32.mxu0 0.0
    %2837 = vmatmul.mubr.f32.gmra.mrb[0].mxu0 %v2770
    %v2838 = vpop.f32.mrb[0].mxu0
    %v2839 = vadd.f32 0.0, %v2838
    %v2840 = vpop.f32.mrb[0].mxu0
    %2841 = vdwg.mxu0
    %s2842 = scalar_lea.vmem %s2, 12
    %v2843 = vld [vmem:[%s2842] sm:$0xf]
    %v2845 = vsel %vm56, %v2766, 0
    %v2848 = vsel %vm56, %v2839, 0
    %v2851 = vsel %vm63, %v2843, 0
    %2853 = vmatprep.subr.mxu0 0.0
    %2854 = vmatpush1.msra.mxu0 %v2851
    %2855 = vmatprep.subr.mxu0 0.0
    %2856 = vmatpush1.msra.mxu0 0.0
    %2857 = vmatprep.subr.mxu0 0.0
    %2858 = vmatpush1.msra.mxu0 0.0
    %2859 = vmatprep.subr.mxu0 0.0
    %2860 = vmatpush1.msra.mxu0 0.0
    %2861 = vmatprep.subr.mxu0 0.0
    %2862 = vmatpush1.msra.mxu0 0.0
    %2863 = vmatprep.subr.mxu0 0.0
    %2864 = vmatpush1.msra.mxu0 0.0
    %2865 = vmatprep.subr.mxu0 0.0
    %2866 = vmatpush1.msra.mxu0 0.0
    %2867 = vmatprep.subr.mxu0 0.0
    %2868 = vmatpush1.msra.mxu0 0.0
    %2869 = vmatprep.subr.mxu0 0.0
    %2870 = vmatpush1.msra.mxu0 0.0
    %2871 = vmatprep.subr.mxu0 0.0
    %2872 = vmatpush1.msra.mxu0 0.0
    %2873 = vmatprep.subr.mxu0 0.0
    %2874 = vmatpush1.msra.mxu0 0.0
    %2875 = vmatprep.subr.mxu0 0.0
    %2876 = vmatpush1.msra.mxu0 0.0
    %2877 = vmatprep.subr.mxu0 0.0
    %2878 = vmatpush1.msra.mxu0 0.0
    %2879 = vmatprep.subr.mxu0 0.0
    %2880 = vmatpush1.msra.mxu0 0.0
    %2881 = vmatprep.subr.mxu0 0.0
    %2882 = vmatpush1.msra.mxu0 0.0
    %2883 = vmatprep.subr.mxu0 0.0
    %2884 = vmatpush1.msra.mxu0 0.0
    %2885 = vmatprep.subr.mxu0 0.0
    %2886 = vmatpush1.msra.mxu0 0.0
    %2887 = vmatprep.subr.mxu0 0.0
    %2888 = vmatpush1.msra.mxu0 0.0
    %2889 = vmatprep.subr.mxu0 0.0
    %2890 = vmatpush1.msra.mxu0 0.0
    %2891 = vmatprep.subr.mxu0 0.0
    %2892 = vmatpush1.msra.mxu0 0.0
    %2893 = vmatprep.subr.mxu0 0.0
    %2894 = vmatpush1.msra.mxu0 0.0
    %2895 = vmatprep.subr.mxu0 0.0
    %2896 = vmatpush1.msra.mxu0 0.0
    %2897 = vmatprep.subr.mxu0 0.0
    %2898 = vmatpush1.msra.mxu0 0.0
    %2899 = vmatprep.subr.mxu0 0.0
    %2900 = vmatpush1.msra.mxu0 0.0
    %2901 = vmatprep.subr.mxu0 0.0
    %2902 = vmatpush1.msra.mxu0 0.0
    %2903 = vmatprep.subr.mxu0 0.0
    %2904 = vmatpush1.msra.mxu0 0.0
    %2905 = vmatprep.subr.mxu0 0.0
    %2906 = vmatpush1.msra.mxu0 0.0
    %2907 = vmatprep.subr.mxu0 0.0
    %2908 = vmatpush1.msra.mxu0 0.0
    %2909 = vmatprep.subr.mxu0 0.0
    %2910 = vmatpush1.msra.mxu0 0.0
    %2911 = vmatprep.subr.mxu0 0.0
    %2912 = vmatpush1.msra.mxu0 0.0
    %2913 = vmatprep.subr.mxu0 0.0
    %2914 = vmatpush1.msra.mxu0 0.0
    %2915 = vmatprep.subr.mxu0 0.0
    %2916 = vmatpush1.msra.mxu0 0.0
    %2917 = vmatprep.mubr.f32.mxu0 0.0
    %2918 = vmatmul.mubr.f32.gmra.mrb[0].mxu0 %v2845
    %v2919 = vpop.f32.mrb[0].mxu0
    %v2920 = vadd.f32 0.0, %v2919
    %v2921 = vpop.f32.mrb[0].mxu0
    %2922 = vmatprep.mubr.f32.mxu0 0.0
    %2923 = vmatmul.mubr.f32.gmra.mrb[0].mxu0 %v2848
    %v2924 = vpop.f32.mrb[0].mxu0
    %v2925 = vadd.f32 0.0, %v2924
    %v2926 = vpop.f32.mrb[0].mxu0
    %2927 = vdwg.mxu0
    %v2928 = vlaneseq
    %v2929 = vshrl.u32 %v2928, 7
    %v2930 = vsub.s32 1, %v2929
    %v2931 = vrot.slane %v2330, %v2930
    %v2932 = vadd.f32 %v2920, %v2931
    %v2933 = vadd.f32 %v2925, %v2931
    %v2934 = vmul.f32 %v2932, 0.5
    %v2935 = vmul.f32 %v2933, 0.5
    %v2936 = vtanh.pop %v2934
    %v2937 = vtanh.pop %v2935
    %v2938 = vadd.f32 %v2936, 1.0
    %v2939 = vadd.f32 %v2937, 1.0
    %v2940 = vmul.f32 %v2938, 0.5
    %v2941 = vmul.f32 %v2939, 0.5
    %v2942 = vlaneseq
    %v2943 = vshrl.u32 %v2942, 7
    %v2944 = vsub.s32 2, %v2943
    %v2945 = vrot.slane %v2330, %v2944
    %2947 = vrot.lane.b32.xlu0 %v2945, 32
    %v2948 = vpop.permute.xlu0 %2947
    %v2950 = vadd.f32 %v2920, %v2948
    %v2951 = vadd.f32 %v2925, %v2948
    %v2952 = vmul.f32 %v2950, 0.5
    %v2953 = vmul.f32 %v2951, 0.5
    %v2954 = vtanh.pop %v2952
    %v2955 = vtanh.pop %v2953
    %v2956 = vadd.f32 %v2954, 1.0
    %v2957 = vadd.f32 %v2955, 1.0
    %v2958 = vmul.f32 %v2956, 0.5
    %v2959 = vmul.f32 %v2957, 0.5
    %v2962 = vmul.f32 %v2940, %v2434
    %v2963 = vmul.f32 %v2941, %v2436
    %v2965 = vsel %vm156, %v2962, 0
    %v2968 = vsel %vm156, %v2963, 0
    %2970 = vmatprep.subr.mxu0 0.0
    %2971 = vmatpush1.msra.mxu0 %v2325
    %2972 = vmatprep.subr.mxu0 0.0
    %2973 = vmatpush1.msra.mxu0 %v2326
    %2974 = vmatprep.subr.mxu0 0.0
    %2975 = vmatpush1.msra.mxu0 %v2327
    %2976 = vmatprep.subr.mxu0 0.0
    %2977 = vmatpush1.msra.mxu0 %v2328
    %2978 = vmatprep.subr.mxu0 0.0
    %2979 = vmatpush1.msra.mxu0 0.0
    %2980 = vmatprep.subr.mxu0 0.0
    %2981 = vmatpush1.msra.mxu0 0.0
    %2982 = vmatprep.subr.mxu0 0.0
    %2983 = vmatpush1.msra.mxu0 0.0
    %2984 = vmatprep.subr.mxu0 0.0
    %2985 = vmatpush1.msra.mxu0 0.0
    %2986 = vmatprep.subr.mxu0 0.0
    %2987 = vmatpush1.msra.mxu0 0.0
    %2988 = vmatprep.subr.mxu0 0.0
    %2989 = vmatpush1.msra.mxu0 0.0
    %2990 = vmatprep.subr.mxu0 0.0
    %2991 = vmatpush1.msra.mxu0 0.0
    %2992 = vmatprep.subr.mxu0 0.0
    %2993 = vmatpush1.msra.mxu0 0.0
    %2994 = vmatprep.subr.mxu0 0.0
    %2995 = vmatpush1.msra.mxu0 0.0
    %2996 = vmatprep.subr.mxu0 0.0
    %2997 = vmatpush1.msra.mxu0 0.0
    %2998 = vmatprep.subr.mxu0 0.0
    %2999 = vmatpush1.msra.mxu0 0.0
    %3000 = vmatprep.subr.mxu0 0.0
    %3001 = vmatpush1.msra.mxu0 0.0
    %3002 = vmatprep.subr.mxu0 0.0
    %3003 = vmatpush1.msra.mxu0 0.0
    %3004 = vmatprep.subr.mxu0 0.0
    %3005 = vmatpush1.msra.mxu0 0.0
    %3006 = vmatprep.subr.mxu0 0.0
    %3007 = vmatpush1.msra.mxu0 0.0
    %3008 = vmatprep.subr.mxu0 0.0
    %3009 = vmatpush1.msra.mxu0 0.0
    %3010 = vmatprep.subr.mxu0 0.0
    %3011 = vmatpush1.msra.mxu0 0.0
    %3012 = vmatprep.subr.mxu0 0.0
    %3013 = vmatpush1.msra.mxu0 0.0
    %3014 = vmatprep.subr.mxu0 0.0
    %3015 = vmatpush1.msra.mxu0 0.0
    %3016 = vmatprep.subr.mxu0 0.0
    %3017 = vmatpush1.msra.mxu0 0.0
    %3018 = vmatprep.subr.mxu0 0.0
    %3019 = vmatpush1.msra.mxu0 0.0
    %3020 = vmatprep.subr.mxu0 0.0
    %3021 = vmatpush1.msra.mxu0 0.0
    %3022 = vmatprep.subr.mxu0 0.0
    %3023 = vmatpush1.msra.mxu0 0.0
    %3024 = vmatprep.subr.mxu0 0.0
    %3025 = vmatpush1.msra.mxu0 0.0
    %3026 = vmatprep.subr.mxu0 0.0
    %3027 = vmatpush1.msra.mxu0 0.0
    %3028 = vmatprep.subr.mxu0 0.0
    %3029 = vmatpush1.msra.mxu0 0.0
    %3030 = vmatprep.subr.mxu0 0.0
    %3031 = vmatpush1.msra.mxu0 0.0
    %3032 = vmatprep.subr.mxu0 0.0
    %3033 = vmatpush1.msra.mxu0 0.0
    %3034 = vmatprep.mubr.f32.mxu0 0.0
    %3035 = vmatmul.mubr.f32.gmra.mrb[0].mxu0 %v2965
    %v3036 = vpop.f32.mrb[0].mxu0
    %v3037 = vadd.f32 0.0, %v3036
    %v3038 = vpop.f32.mrb[0].mxu0
    %3039 = vmatprep.mubr.f32.mxu0 0.0
    %3040 = vmatmul.mubr.f32.gmra.mrb[0].mxu0 %v2968
    %v3041 = vpop.f32.mrb[0].mxu0
    %v3042 = vadd.f32 0.0, %v3041
    %v3043 = vpop.f32.mrb[0].mxu0
    %3044 = vdwg.mxu0
    %3047 = vrot.lane.b32.xlu0 %v3037, 32
    %v3048 = vpop.permute.xlu0 %3047
    %3049 = vrot.lane.b32.xlu0 %v3042, 32
    %v3050 = vpop.permute.xlu0 %3049
    %v3053 = vadd.f32 %v2425, %v3048
    %v3054 = vadd.f32 %v2426, %v3050
    %v3055 = vlaneseq
    %v3056 = vshrl.u32 %v3055, 7
    %v3057 = vsub.s32 4, %v3056
    %v3058 = vrot.slane %v2330, %v3057
    %3060 = vrot.lane.b32.xlu0 %v3058, 32
    %v3061 = vpop.permute.xlu0 %3060
    %v3063 = vadd.f32 %v3053, %v3061
    %v3064 = vadd.f32 %v3054, %v3061
    %v3065 = vtanh.pop %v3063
    %v3066 = vtanh.pop %v3064
    %v3067 = vmul.f32 %v2958, %v2315
    %v3068 = vmul.f32 %v2959, %v2316
    %v3069 = vsub.f32 1.0, %v2958
    %v3070 = vsub.f32 1.0, %v2959
    %v3071 = vmul.f32 %v3069, %v3065
    %v3072 = vmul.f32 %v3070, %v3066
    %v3073 = vadd.f32 %v3067, %v3071
    %v3074 = vadd.f32 %v3068, %v3072
    %3077 = vrot.lane.b32.xlu0 %v3073, 96
    %v3078 = vpop.permute.xlu0 %3077
    %3079 = vrot.lane.b32.xlu0 %v3074, 96
    %v3080 = vpop.permute.xlu0 %3079
    %3083 = vst.msk [vmem:[#allocation5] sm:$0xff] %vm156, %v3078
    %3084 = vst.msk [vmem:[#allocation5 + $0x8] sm:$0xff] %vm156, %v3080
    // Predicated region
    $region30: #{tpu_custom_call.1} parent=1 // pred_check
      _
    $region31: #{tpu_custom_call.1} parent=1 // pred_check_branch
      %3086 = sbr.rel (0) target = $region33
    $region32: #{tpu_custom_call.1} parent=1 // pred_region
      %s3088 = ssub.s32 256, 256
      %3089 = vsyncadd [#allocation4], %s3088
      %s3090 = sshll.u32 [#allocation5], 4
      %s3091 = int_to_ptr.vmem [resolvable:$true] %s3090
      %3096 = dma.vmem_to_hbm [thread:$0]  %s3091, 256, %s5, [#allocation4], 128, 128, 8
    $region33: #{tpu_custom_call.1} parent=1 // pred_fallthru
      _
    // Predicated region
    $region34: #{tpu_custom_call.1} parent=1 // pred_check
      _
    $region35: #{tpu_custom_call.1} parent=1 // pred_check_branch
      %3098 = sbr.rel (0) target = $region37
    $region36: #{tpu_custom_call.1} parent=1 // pred_region
      %3099 = dma.done [#allocation4], 256
    $region37: #{tpu_custom_call.1} parent=1 // pred_fallthru
      _
    %3100 = vsyncpa [#allocation3], 1
    %3101 = vsyncpa [#allocation4], 1

</llo_original>
